<compile_context>
chip_gen: v5e
topology: v5e:2x2
jax: 0.10.0
libtpu: 0.0.40
codegen_flags: <defaults>
</compile_context>

<pallas_src>
import functools

import jax
import jax.numpy as jnp
from jax import lax
from jax.experimental import pallas as pl
from jax.experimental.pallas import tpu as pltpu


def _round_up(x, m):
    return (x + m - 1) // m * m


# ----------------------------------------------------------------------------
# Fused kernel: one row tile of R = Bt*K entity sequences (grouped K per batch
# element), LSTM over T steps, then per-group attention + output linear.
# ----------------------------------------------------------------------------
def fused_lstm_attn_kernel(x_ref, wxa_ref, whh_ref, wout_ref, bout_ref,
                           sq_ref, sg_ref, sgt_ref,
                           out_ref, h_out_ref, c_out_ref,
                           h_scr, c_scr,
                           *, hidden_dim, n_steps, mxu_dtype, approx_recip):
    # x_ref   : [T, R, Daug]  raw inputs (+ ones-feature for the bias), MXU dtype
    # wxa_ref : [Daug, G]     folded (W_emb @ W_ih | bias row), MXU dtype
    # whh_ref : [Hp, G]       recurrent weights, MXU dtype
    # wout_ref: [Hp, Op]; bout_ref: [1, Op] f32
    # sq_ref  : [Bt, R] f32   selects each group's agent row (entity 0)
    # sg_ref  : [Bt, R] f32   group membership (row r belongs to group r // K)
    # sgt_ref : [R, Bt] f32   sg transposed (precomputed -> no in-kernel XLU .T)
    # out_ref : [Bt, Op]; h_out_ref / c_out_ref: [Bt, Hp]
    # h_scr / c_scr : [R, Hp] f32 running LSTM state for this row tile.
    Hp = h_scr.shape[-1]

    h_scr[...] = jnp.zeros_like(h_scr)
    c_scr[...] = jnp.zeros_like(c_scr)

    def step(t, carry):
        # Input projection: independent of the h-chain, so the unrolled
        # scheduler overlaps it with the recurrent matmul.  The bias rides the
        # ones-feature -> no per-step broadcast add.
        gx = jnp.dot(x_ref[t], wxa_ref[...],
                     preferred_element_type=jnp.float32)             # [R, G]
        # W_hh is re-read from VMEM each step (NOT hoisted) so it is not held
        # live in vregs across the unrolled loop.
        gh = jnp.dot(h_scr[...].astype(mxu_dtype), whh_ref[...],
                     preferred_element_type=jnp.float32)             # [R, G]
        gates = gx + gh
        # Lane-dense gate slices (Hp is a multiple of 128).  Padded gate
        # columns are exactly zero => i/f/o pads = 0.5, g pad = 0, so padded
        # h/c lanes stay 0 (invariant the attention dot relies on).
        i_g = jax.nn.sigmoid(gates[:, 0 * Hp:1 * Hp])
        f_g = jax.nn.sigmoid(gates[:, 1 * Hp:2 * Hp])
        g_g = jnp.tanh(gates[:, 2 * Hp:3 * Hp])
        o_g = jax.nn.sigmoid(gates[:, 3 * Hp:4 * Hp])
        c_new = f_g * c_scr[...] + i_g * g_g
        h_scr[...] = o_g * jnp.tanh(c_new)
        c_scr[...] = c_new
        return carry

    # Short static trip count: fully unroll so step t+1's independent x-proj
    # matmul overlaps step t's gate VPU/EUP work.
    lax.fori_loop(0, n_steps, step, 0, unroll=True)

    # ---- Attention: each group's agent row attends over its K rows. --------
    h_all = h_scr[...]                                                # [R, Hp]
    q_all = jnp.dot(sq_ref[...], h_all,
                    preferred_element_type=jnp.float32)               # [Bt, Hp]
    q_rep = jnp.dot(sgt_ref[...], q_all,
                    preferred_element_type=jnp.float32)               # [R, Hp]
    # VPU multiply + lane reduce (no transpose, no masked-lane MXU output).
    s = jnp.sum(q_rep * h_all, axis=-1, keepdims=True) * (
        1.0 / (float(hidden_dim) ** 0.5))                             # [R, 1]
    # Subtract a tile-global max: the same constant within every group leaves
    # each group's softmax mathematically unchanged.
    s = s - jnp.max(s, axis=0, keepdims=True)
    e = jnp.exp(s)                                                    # [R, 1]
    d = jnp.dot(sg_ref[...], e, preferred_element_type=jnp.float32)   # [Bt, 1]
    d_rep = jnp.dot(sgt_ref[...], d,
                    preferred_element_type=jnp.float32)               # [R, 1]
    if approx_recip:
        alpha = e * pl.reciprocal(d_rep, approx=True)
    else:
        alpha = e / d_rep                                             # exact f32 path
    ctx = jnp.dot(sg_ref[...], alpha * h_all,
                  preferred_element_type=jnp.float32)                 # [Bt, Hp]
    out = jnp.dot(ctx.astype(mxu_dtype), wout_ref[...],
                  preferred_element_type=jnp.float32) + bout_ref[...]

    out_ref[...] = out                                                # [Bt, Op]
    h_out_ref[...] = q_all
    c_out_ref[...] = jnp.dot(sq_ref[...], c_scr[...],
                             preferred_element_type=jnp.float32)


# ----------------------------------------------------------------------------
# Wrapper
# ----------------------------------------------------------------------------
@functools.partial(jax.jit, static_argnames=("mxu_dtype", "rows_target"))
def lstm_attention_forward(state, params, mxu_dtype=jnp.bfloat16,
                           rows_target=256):
    """state: [B, T, D, K] f32 -> (out [B, O], agent_h [B, H], agent_c [B, H])."""
    B, T, D, K = state.shape
    H = params["w_emb"].shape[1]
    O = params["w_out"].shape[1]
    Hp = _round_up(H, 128)            # lane-dense hidden
    Op = _round_up(O, 128)            # lane-dense output
    G = 4 * Hp
    Daug = _round_up(D + 1, 8)        # raw features + ones-feature (bias)

    # ---- Row tiling: all B*K entity sequences become LSTM rows. ------------
    # rows_target ~256 keeps the per-tile footprint v7x-safe (64 MiB VMEM);
    # on v6e/v5e (128 MiB) rows_target can be raised to 512-1024.
    if B * K <= rows_target or B <= 16:
        Bt = B                                     # single tile: full-extent blocks
    else:
        Bt = max(16, (rows_target // K) // 16 * 16)  # mult of 16 -> clean tiling
    B_pad = _round_up(B, Bt)
    num_tiles = B_pad // Bt
    R = Bt * K                                     # rows per grid tile

    # ---- Fold the (linear) embedding into the LSTM input projection --------
    # (exact: there is no nonlinearity between embedding and the gate matmul).
    w_x = params["w_emb"] @ params["w_ih"]                       # [D, 4H]
    b_x = params["b_emb"] @ params["w_ih"] + params["b_lstm"]    # [1, 4H]

    def pad_gates(w):   # [rows, 4H] -> [rows, G], per-gate blocks zero-padded
        r = w.shape[0]
        w4 = w.reshape(r, 4, H)
        return jnp.zeros((r, 4, Hp), w.dtype).at[:, :, :H].set(w4).reshape(r, G)

    w_xa = jnp.zeros((Daug, 4 * H), jnp.float32)
    w_xa = w_xa.at[:D, :].set(w_x).at[D:D + 1, :].set(b_x)       # bias row
    w_xa_p = pad_gates(w_xa).astype(mxu_dtype)                   # [Daug, G]
    w_hh_p = jnp.zeros((Hp, G), jnp.float32).at[:H, :].set(
        pad_gates(params["w_hh"])).astype(mxu_dtype)             # [Hp, G]
    w_out_p = jnp.zeros((Hp, Op), jnp.float32).at[:H, :O].set(
        params["w_out"]).astype(mxu_dtype)                       # [Hp, Op]
    b_out_p = jnp.zeros((1, Op), jnp.float32).at[:, :O].set(params["b_out"])

    # ---- Raw state goes to the kernel (no pre-projected f32 x_proj). -------
    # neighbors_state = state[:, :, :, 0:] includes the agent as entity 0, so
    # each entity sequence runs once; entity 0 doubles as the agent query.
    seqs = jnp.transpose(state, (0, 3, 1, 2))                    # [B, K, T, D]
    if B_pad > B:
        seqs = jnp.pad(seqs, ((0, B_pad - B), (0, 0), (0, 0), (0, 0)))
    x_rows = jnp.transpose(seqs.reshape(B_pad * K, T, D), (1, 0, 2))  # [T,NR,D]
    ones = jnp.ones((T, B_pad * K, 1), jnp.float32)              # bias feature
    feat_pad = jnp.zeros((T, B_pad * K, Daug - D - 1), jnp.float32)
    x_arr = jnp.concatenate([x_rows, ones, feat_pad],
                            axis=-1).astype(mxu_dtype)           # [T, NR, Daug]

    # ---- Static per-tile selector matrices (identical for every tile). -----
    rows = jnp.arange(R)
    grp = jnp.arange(Bt)
    sg = (rows[None, :] // K == grp[:, None]).astype(jnp.float32)   # [Bt, R]
    sq = (rows[None, :] == grp[:, None] * K).astype(jnp.float32)    # [Bt, R]
    sgt = sg.T                                                      # [R, Bt]

    approx_recip = jnp.dtype(mxu_dtype) != jnp.dtype(jnp.float32)
    kernel = functools.partial(
        fused_lstm_attn_kernel, hidden_dim=H, n_steps=T,
        mxu_dtype=mxu_dtype, approx_recip=approx_recip)

    out_p, h_p, c_p = pl.pallas_call(
        kernel,
        out_shape=(jax.ShapeDtypeStruct((B_pad, Op), jnp.float32),
                   jax.ShapeDtypeStruct((B_pad, Hp), jnp.float32),
                   jax.ShapeDtypeStruct((B_pad, Hp), jnp.float32)),
        grid_spec=pltpu.PrefetchScalarGridSpec(
            num_scalar_prefetch=0,
            grid=(num_tiles,),
            in_specs=[
                pl.BlockSpec((T, R, Daug), lambda r: (0, r, 0)),   # raw inputs
                pl.BlockSpec((Daug, G), lambda r: (0, 0)),         # W_x | b_x
                pl.BlockSpec((Hp, G), lambda r: (0, 0)),           # W_hh
                pl.BlockSpec((Hp, Op), lambda r: (0, 0)),          # W_out
                pl.BlockSpec((1, Op), lambda r: (0, 0)),           # b_out
                pl.BlockSpec((Bt, R), lambda r: (0, 0)),           # Sq
                pl.BlockSpec((Bt, R), lambda r: (0, 0)),           # Sg
                pl.BlockSpec((R, Bt), lambda r: (0, 0)),           # Sg^T
            ],
            out_specs=(
                pl.BlockSpec((Bt, Op), lambda r: (r, 0)),
                pl.BlockSpec((Bt, Hp), lambda r: (r, 0)),
                pl.BlockSpec((Bt, Hp), lambda r: (r, 0)),
            ),
            scratch_shapes=[pltpu.VMEM((R, Hp), jnp.float32),
                            pltpu.VMEM((R, Hp), jnp.float32)],
        ),
        compiler_params=pltpu.CompilerParams(
            dimension_semantics=("parallel",),       # tiles split across TCs
            vmem_limit_bytes=32 * 1024 * 1024),
    )(x_arr, w_xa_p, w_hh_p, w_out_p, b_out_p, sq, sg, sgt)

    out = out_p[:B, :O]
    agent_h = h_p[:B, :H]        # module stashes these in self.hidden/self.cell
    agent_c = c_p[:B, :H]
    return out, agent_h, agent_c


# ----------------------------------------------------------------------------
# Pure-JAX reference (same math) for a correctness check.  Note: it builds K+1
# sequences (agent duplicated) and attends over h[:, 1:]; since entity 0 IS
# the agent this is mathematically identical to the kernel, which runs each of
# the K entities once and uses entity 0 as the query.
# ----------------------------------------------------------------------------
def reference_forward(state, params):
    B, T, D, K = state.shape
    H = params["w_emb"].shape[1]
    agent = state[:, :, :, 0]
    neighbors = jnp.transpose(state, (0, 3, 1, 2))
    seqs = jnp.concatenate([agent[:, None], neighbors], axis=1).reshape(
        B * (K + 1), T, D)

    h = jnp.zeros((seqs.shape[0], H), jnp.float32)
    c = jnp.zeros((seqs.shape[0], H), jnp.float32)
    for t in range(T):
        emb = seqs[:, t, :] @ params["w_emb"] + params["b_emb"]
        gates = emb @ params["w_ih"] + h @ params["w_hh"] + params["b_lstm"]
        i_g = jax.nn.sigmoid(gates[:, 0 * H:1 * H])
        f_g = jax.nn.sigmoid(gates[:, 1 * H:2 * H])
        g_g = jnp.tanh(gates[:, 2 * H:3 * H])
        o_g = jax.nn.sigmoid(gates[:, 3 * H:4 * H])
        c = f_g * c + i_g * g_g
        h = o_g * jnp.tanh(c)

    h = h.reshape(B, K + 1, H)
    c = c.reshape(B, K + 1, H)
    q, kv = h[:, 0, :], h[:, 1:, :]
    scores = jnp.einsum("bh,bkh->bk", q, kv) / jnp.sqrt(jnp.float32(H))
    alpha = jax.nn.softmax(scores, axis=-1)
    ctx = jnp.einsum("bk,bkh->bh", alpha, kv)
    out = ctx @ params["w_out"] + params["b_out"]
    return out, q, c[:, 0, :]


if __name__ == "__main__":
    # state: [batch, seq_len, input_dim, num_entities]
    B, T, D, K = 2, 8, 4, 4
    H, O = 32, 8                      # hidden_dim, output_dim

    key = jax.random.PRNGKey(0)
    ks = jax.random.split(key, 8)

    params = {
        "w_emb":  0.1 * jax.random.normal(ks[0], (D, H), jnp.float32),
        "b_emb":  0.1 * jax.random.normal(ks[1], (1, H), jnp.float32),
        "w_ih":   0.1 * jax.random.normal(ks[2], (H, 4 * H), jnp.float32),
        "w_hh":   0.1 * jax.random.normal(ks[3], (H, 4 * H), jnp.float32),
        "b_lstm": 0.1 * jax.random.normal(ks[4], (1, 4 * H), jnp.float32),
        "w_out":  0.1 * jax.random.normal(ks[5], (H, O), jnp.float32),
        "b_out":  0.1 * jax.random.normal(ks[6], (1, O), jnp.float32),
    }
    state = jax.random.normal(ks[7], (B, T, D, K), jnp.float32)

    ref_out, ref_h, ref_c = reference_forward(state, params)

    # Optimized path: bf16 MXU operands, f32 accumulation / gate math.
    out, agent_h, agent_c = lstm_attention_forward(state, params,
                                                   mxu_dtype=jnp.bfloat16)
    jax.block_until_ready((out, agent_h, agent_c))
    assert out.shape == (B, O)
    assert agent_h.shape == (B, H) and agent_c.shape == (B, H)
    assert jnp.allclose(out, ref_out, atol=5e-2, rtol=5e-2), "bf16 out mismatch"
    assert jnp.allclose(agent_h, ref_h, atol=5e-2, rtol=5e-2), "bf16 hidden mismatch"
    assert jnp.allclose(agent_c, ref_c, atol=5e-2, rtol=5e-2), "bf16 cell mismatch"

    # Full-precision path for a tight correctness check (exact divide, f32 MXU).
    out32, h32, c32 = lstm_attention_forward(state, params,
                                             mxu_dtype=jnp.float32)
    jax.block_until_ready((out32, h32, c32))
    assert jnp.allclose(out32, ref_out, atol=2e-3, rtol=2e-3), "f32 out mismatch"
    assert jnp.allclose(h32, ref_h, atol=2e-3, rtol=2e-3), "f32 hidden mismatch"
    assert jnp.allclose(c32, ref_c, atol=2e-3, rtol=2e-3), "f32 cell mismatch"

    print("KERNEL_OK")
</pallas_src>

<mosaic_0001>
module attributes {stable_mosaic.version = 11 : i64} {
  func.func @fused_lstm_attn_kernel(%arg0: i32, %arg1: memref<8x8x8xbf16, #tpu.memory_space<vmem>>, %arg2: memref<8x512xbf16, #tpu.memory_space<vmem>>, %arg3: memref<128x512xbf16, #tpu.memory_space<vmem>>, %arg4: memref<128x128xbf16, #tpu.memory_space<vmem>>, %arg5: memref<1x128xf32, #tpu.memory_space<vmem>>, %arg6: memref<2x8xf32, #tpu.memory_space<vmem>>, %arg7: memref<2x8xf32, #tpu.memory_space<vmem>>, %arg8: memref<8x2xf32, #tpu.memory_space<vmem>>, %arg9: memref<2x128xf32, #tpu.memory_space<vmem>>, %arg10: memref<2x128xf32, #tpu.memory_space<vmem>>, %arg11: memref<2x128xf32, #tpu.memory_space<vmem>>, %arg12: memref<8x128xf32, #tpu.memory_space<vmem>>, %arg13: memref<8x128xf32, #tpu.memory_space<vmem>>) attributes {dimension_semantics = [#tpu.dimension_semantics<parallel>], iteration_bounds = array<i64: 1>, scalar_prefetch = 0 : i64, scratch_operands = 2 : i64, tpu.core_type = #tpu.core_type<tc>, window_params = [{transform_indices = @transform_0, window_bounds = array<i64: 8, 8, 8>}, {pipeline_mode = #tpu.pipeline_mode<synchronous>, transform_indices = @transform_1, window_bounds = array<i64: 8, 512>}, {pipeline_mode = #tpu.pipeline_mode<synchronous>, transform_indices = @transform_2, window_bounds = array<i64: 128, 512>}, {pipeline_mode = #tpu.pipeline_mode<synchronous>, transform_indices = @transform_3, window_bounds = array<i64: 128, 128>}, {pipeline_mode = #tpu.pipeline_mode<synchronous>, transform_indices = @transform_4, window_bounds = array<i64: 1, 128>}, {pipeline_mode = #tpu.pipeline_mode<synchronous>, transform_indices = @transform_5, window_bounds = array<i64: 2, 8>}, {pipeline_mode = #tpu.pipeline_mode<synchronous>, transform_indices = @transform_6, window_bounds = array<i64: 2, 8>}, {pipeline_mode = #tpu.pipeline_mode<synchronous>, transform_indices = @transform_7, window_bounds = array<i64: 8, 2>}, {transform_indices = @transform_8, window_bounds = array<i64: 2, 128>}, {transform_indices = @transform_9, window_bounds = array<i64: 2, 128>}, {transform_indices = @transform_10, window_bounds = array<i64: 2, 128>}]} {
    %cst = arith.constant 0.000000e+00 : f32
    %0 = vector.broadcast %cst : f32 to vector<8x128xf32>
    %c0 = arith.constant 0 : index
    %c0_0 = arith.constant 0 : index
    %1 = vector.load %arg12[%c0, %c0_0] : memref<8x128xf32, #tpu.memory_space<vmem>>, vector<8x128xf32>
    tpu.vector_store %arg12[%c0, %c0_0], %0 {strides = array<i32>} : memref<8x128xf32, #tpu.memory_space<vmem>>, vector<8x128xf32>,
    %cst_1 = arith.constant 0.000000e+00 : f32
    %2 = vector.broadcast %cst_1 : f32 to vector<8x128xf32>
    %c0_2 = arith.constant 0 : index
    %c0_3 = arith.constant 0 : index
    %3 = vector.load %arg13[%c0_2, %c0_3] : memref<8x128xf32, #tpu.memory_space<vmem>>, vector<8x128xf32>
    tpu.vector_store %arg13[%c0_2, %c0_3], %2 {strides = array<i32>} : memref<8x128xf32, #tpu.memory_space<vmem>>, vector<8x128xf32>,
    %c0_i32 = arith.constant 0 : i32
    %4 = arith.index_cast %c0_i32 : i32 to index
    %c0_4 = arith.constant 0 : index
    %c0_5 = arith.constant 0 : index
    %5 = vector.load %arg1[%4, %c0_4, %c0_5] : memref<8x8x8xbf16, #tpu.memory_space<vmem>>, vector<1x8x8xbf16>
    %6 = vector.shape_cast %5 : vector<1x8x8xbf16> to vector<8x8xbf16>
    %c0_6 = arith.constant 0 : index
    %c0_7 = arith.constant 0 : index
    %7 = vector.load %arg2[%c0_6, %c0_7] : memref<8x512xbf16, #tpu.memory_space<vmem>>, vector<8x512xbf16>
    %cst_8 = arith.constant dense<0.000000e+00> : vector<8x512xf32>
    %8 = tpu.matmul %6, %7, %cst_8 {dimension_numbers = #tpu.dot_dimension_numbers<[1], [0], [0], [1], [0, 0, 1, 1], [], []>} : vector<8x8xbf16>, vector<8x512xbf16>, vector<8x512xf32> -> vector<8x512xf32>
    %c0_9 = arith.constant 0 : index
    %c0_10 = arith.constant 0 : index
    %9 = vector.load %arg12[%c0_9, %c0_10] : memref<8x128xf32, #tpu.memory_space<vmem>>, vector<8x128xf32>
    %10 = arith.truncf %9 : vector<8x128xf32> to vector<8x128xbf16>
    %c0_11 = arith.constant 0 : index
    %c0_12 = arith.constant 0 : index
    %11 = vector.load %arg3[%c0_11, %c0_12] : memref<128x512xbf16, #tpu.memory_space<vmem>>, vector<128x512xbf16>
    %cst_13 = arith.constant dense<0.000000e+00> : vector<8x512xf32>
    %12 = tpu.matmul %10, %11, %cst_13 {dimension_numbers = #tpu.dot_dimension_numbers<[1], [0], [0], [1], [0, 0, 1, 1], [], []>} : vector<8x128xbf16>, vector<128x512xbf16>, vector<8x512xf32> -> vector<8x512xf32>
    %13 = arith.addf %8, %12 : vector<8x512xf32>
    %14 = vector.extract_strided_slice %13 {offsets = [0, 0], sizes = [8, 128], strides = [1, 1]} : vector<8x512xf32> to vector<8x128xf32>
    %15 = arith.negf %14 : vector<8x128xf32>
    %16 = math.exp %15 : vector<8x128xf32>
    %cst_14 = arith.constant 1.000000e+00 : f32
    %17 = vector.broadcast %cst_14 : f32 to vector<8x128xf32>
    %18 = arith.addf %17, %16 : vector<8x128xf32>
    %19 = arith.divf %17, %18 : vector<8x128xf32>
    %20 = vector.extract_strided_slice %13 {offsets = [0, 128], sizes = [8, 128], strides = [1, 1]} : vector<8x512xf32> to vector<8x128xf32>
    %21 = arith.negf %20 : vector<8x128xf32>
    %22 = math.exp %21 : vector<8x128xf32>
    %cst_15 = arith.constant 1.000000e+00 : f32
    %23 = vector.broadcast %cst_15 : f32 to vector<8x128xf32>
    %24 = arith.addf %23, %22 : vector<8x128xf32>
    %25 = arith.divf %23, %24 : vector<8x128xf32>
    %26 = vector.extract_strided_slice %13 {offsets = [0, 256], sizes = [8, 128], strides = [1, 1]} : vector<8x512xf32> to vector<8x128xf32>
    %27 = math.tanh %26 : vector<8x128xf32>
    %28 = vector.extract_strided_slice %13 {offsets = [0, 384], sizes = [8, 128], strides = [1, 1]} : vector<8x512xf32> to vector<8x128xf32>
    %29 = arith.negf %28 : vector<8x128xf32>
    %30 = math.exp %29 : vector<8x128xf32>
    %cst_16 = arith.constant 1.000000e+00 : f32
    %31 = vector.broadcast %cst_16 : f32 to vector<8x128xf32>
    %32 = arith.addf %31, %30 : vector<8x128xf32>
    %33 = arith.divf %31, %32 : vector<8x128xf32>
    %c0_17 = arith.constant 0 : index
    %c0_18 = arith.constant 0 : index
    %34 = vector.load %arg13[%c0_17, %c0_18] : memref<8x128xf32, #tpu.memory_space<vmem>>, vector<8x128xf32>
    %35 = arith.mulf %25, %34 : vector<8x128xf32>
    %36 = arith.mulf %19, %27 : vector<8x128xf32>
    %37 = arith.addf %35, %36 : vector<8x128xf32>
    %38 = math.tanh %37 : vector<8x128xf32>
    %39 = arith.mulf %33, %38 : vector<8x128xf32>
    %c0_19 = arith.constant 0 : index
    %c0_20 = arith.constant 0 : index
    %40 = vector.load %arg12[%c0_19, %c0_20] : memref<8x128xf32, #tpu.memory_space<vmem>>, vector<8x128xf32>
    tpu.vector_store %arg12[%c0_19, %c0_20], %39 {strides = array<i32>} : memref<8x128xf32, #tpu.memory_space<vmem>>, vector<8x128xf32>,
    %c0_21 = arith.constant 0 : index
    %c0_22 = arith.constant 0 : index
    %41 = vector.load %arg13[%c0_21, %c0_22] : memref<8x128xf32, #tpu.memory_space<vmem>>, vector<8x128xf32>
    tpu.vector_store %arg13[%c0_21, %c0_22], %37 {strides = array<i32>} : memref<8x128xf32, #tpu.memory_space<vmem>>, vector<8x128xf32>,
    %c1_i32 = arith.constant 1 : i32
    %42 = arith.index_cast %c1_i32 : i32 to index
    %c0_23 = arith.constant 0 : index
    %c0_24 = arith.constant 0 : index
    %43 = vector.load %arg1[%42, %c0_23, %c0_24] : memref<8x8x8xbf16, #tpu.memory_space<vmem>>, vector<1x8x8xbf16>
    %44 = vector.shape_cast %43 : vector<1x8x8xbf16> to vector<8x8xbf16>
    %c0_25 = arith.constant 0 : index
    %c0_26 = arith.constant 0 : index
    %45 = vector.load %arg2[%c0_25, %c0_26] : memref<8x512xbf16, #tpu.memory_space<vmem>>, vector<8x512xbf16>
    %cst_27 = arith.constant dense<0.000000e+00> : vector<8x512xf32>
    %46 = tpu.matmul %44, %45, %cst_27 {dimension_numbers = #tpu.dot_dimension_numbers<[1], [0], [0], [1], [0, 0, 1, 1], [], []>} : vector<8x8xbf16>, vector<8x512xbf16>, vector<8x512xf32> -> vector<8x512xf32>
    %c0_28 = arith.constant 0 : index
    %c0_29 = arith.constant 0 : index
    %47 = vector.load %arg12[%c0_28, %c0_29] : memref<8x128xf32, #tpu.memory_space<vmem>>, vector<8x128xf32>
    %48 = arith.truncf %47 : vector<8x128xf32> to vector<8x128xbf16>
    %c0_30 = arith.constant 0 : index
    %c0_31 = arith.constant 0 : index
    %49 = vector.load %arg3[%c0_30, %c0_31] : memref<128x512xbf16, #tpu.memory_space<vmem>>, vector<128x512xbf16>
    %cst_32 = arith.constant dense<0.000000e+00> : vector<8x512xf32>
    %50 = tpu.matmul %48, %49, %cst_32 {dimension_numbers = #tpu.dot_dimension_numbers<[1], [0], [0], [1], [0, 0, 1, 1], [], []>} : vector<8x128xbf16>, vector<128x512xbf16>, vector<8x512xf32> -> vector<8x512xf32>
    %51 = arith.addf %46, %50 : vector<8x512xf32>
    %52 = vector.extract_strided_slice %51 {offsets = [0, 0], sizes = [8, 128], strides = [1, 1]} : vector<8x512xf32> to vector<8x128xf32>
    %53 = arith.negf %52 : vector<8x128xf32>
    %54 = math.exp %53 : vector<8x128xf32>
    %cst_33 = arith.constant 1.000000e+00 : f32
    %55 = vector.broadcast %cst_33 : f32 to vector<8x128xf32>
    %56 = arith.addf %55, %54 : vector<8x128xf32>
    %57 = arith.divf %55, %56 : vector<8x128xf32>
    %58 = vector.extract_strided_slice %51 {offsets = [0, 128], sizes = [8, 128], strides = [1, 1]} : vector<8x512xf32> to vector<8x128xf32>
    %59 = arith.negf %58 : vector<8x128xf32>
    %60 = math.exp %59 : vector<8x128xf32>
    %cst_34 = arith.constant 1.000000e+00 : f32
    %61 = vector.broadcast %cst_34 : f32 to vector<8x128xf32>
    %62 = arith.addf %61, %60 : vector<8x128xf32>
    %63 = arith.divf %61, %62 : vector<8x128xf32>
    %64 = vector.extract_strided_slice %51 {offsets = [0, 256], sizes = [8, 128], strides = [1, 1]} : vector<8x512xf32> to vector<8x128xf32>
    %65 = math.tanh %64 : vector<8x128xf32>
    %66 = vector.extract_strided_slice %51 {offsets = [0, 384], sizes = [8, 128], strides = [1, 1]} : vector<8x512xf32> to vector<8x128xf32>
    %67 = arith.negf %66 : vector<8x128xf32>
    %68 = math.exp %67 : vector<8x128xf32>
    %cst_35 = arith.constant 1.000000e+00 : f32
    %69 = vector.broadcast %cst_35 : f32 to vector<8x128xf32>
    %70 = arith.addf %69, %68 : vector<8x128xf32>
    %71 = arith.divf %69, %70 : vector<8x128xf32>
    %c0_36 = arith.constant 0 : index
    %c0_37 = arith.constant 0 : index
    %72 = vector.load %arg13[%c0_36, %c0_37] : memref<8x128xf32, #tpu.memory_space<vmem>>, vector<8x128xf32>
    %73 = arith.mulf %63, %72 : vector<8x128xf32>
    %74 = arith.mulf %57, %65 : vector<8x128xf32>
    %75 = arith.addf %73, %74 : vector<8x128xf32>
    %76 = math.tanh %75 : vector<8x128xf32>
    %77 = arith.mulf %71, %76 : vector<8x128xf32>
    %c0_38 = arith.constant 0 : index
    %c0_39 = arith.constant 0 : index
    %78 = vector.load %arg12[%c0_38, %c0_39] : memref<8x128xf32, #tpu.memory_space<vmem>>, vector<8x128xf32>
    tpu.vector_store %arg12[%c0_38, %c0_39], %77 {strides = array<i32>} : memref<8x128xf32, #tpu.memory_space<vmem>>, vector<8x128xf32>,
    %c0_40 = arith.constant 0 : index
    %c0_41 = arith.constant 0 : index
    %79 = vector.load %arg13[%c0_40, %c0_41] : memref<8x128xf32, #tpu.memory_space<vmem>>, vector<8x128xf32>
    tpu.vector_store %arg13[%c0_40, %c0_41], %75 {strides = array<i32>} : memref<8x128xf32, #tpu.memory_space<vmem>>, vector<8x128xf32>,
    %c2_i32 = arith.constant 2 : i32
    %80 = arith.index_cast %c2_i32 : i32 to index
    %c0_42 = arith.constant 0 : index
    %c0_43 = arith.constant 0 : index
    %81 = vector.load %arg1[%80, %c0_42, %c0_43] : memref<8x8x8xbf16, #tpu.memory_space<vmem>>, vector<1x8x8xbf16>
    %82 = vector.shape_cast %81 : vector<1x8x8xbf16> to vector<8x8xbf16>
    %c0_44 = arith.constant 0 : index
    %c0_45 = arith.constant 0 : index
    %83 = vector.load %arg2[%c0_44, %c0_45] : memref<8x512xbf16, #tpu.memory_space<vmem>>, vector<8x512xbf16>
    %cst_46 = arith.constant dense<0.000000e+00> : vector<8x512xf32>
    %84 = tpu.matmul %82, %83, %cst_46 {dimension_numbers = #tpu.dot_dimension_numbers<[1], [0], [0], [1], [0, 0, 1, 1], [], []>} : vector<8x8xbf16>, vector<8x512xbf16>, vector<8x512xf32> -> vector<8x512xf32>
    %c0_47 = arith.constant 0 : index
    %c0_48 = arith.constant 0 : index
    %85 = vector.load %arg12[%c0_47, %c0_48] : memref<8x128xf32, #tpu.memory_space<vmem>>, vector<8x128xf32>
    %86 = arith.truncf %85 : vector<8x128xf32> to vector<8x128xbf16>
    %c0_49 = arith.constant 0 : index
    %c0_50 = arith.constant 0 : index
    %87 = vector.load %arg3[%c0_49, %c0_50] : memref<128x512xbf16, #tpu.memory_space<vmem>>, vector<128x512xbf16>
    %cst_51 = arith.constant dense<0.000000e+00> : vector<8x512xf32>
    %88 = tpu.matmul %86, %87, %cst_51 {dimension_numbers = #tpu.dot_dimension_numbers<[1], [0], [0], [1], [0, 0, 1, 1], [], []>} : vector<8x128xbf16>, vector<128x512xbf16>, vector<8x512xf32> -> vector<8x512xf32>
    %89 = arith.addf %84, %88 : vector<8x512xf32>
    %90 = vector.extract_strided_slice %89 {offsets = [0, 0], sizes = [8, 128], strides = [1, 1]} : vector<8x512xf32> to vector<8x128xf32>
    %91 = arith.negf %90 : vector<8x128xf32>
    %92 = math.exp %91 : vector<8x128xf32>
    %cst_52 = arith.constant 1.000000e+00 : f32
    %93 = vector.broadcast %cst_52 : f32 to vector<8x128xf32>
    %94 = arith.addf %93, %92 : vector<8x128xf32>
    %95 = arith.divf %93, %94 : vector<8x128xf32>
    %96 = vector.extract_strided_slice %89 {offsets = [0, 128], sizes = [8, 128], strides = [1, 1]} : vector<8x512xf32> to vector<8x128xf32>
    %97 = arith.negf %96 : vector<8x128xf32>
    %98 = math.exp %97 : vector<8x128xf32>
    %cst_53 = arith.constant 1.000000e+00 : f32
    %99 = vector.broadcast %cst_53 : f32 to vector<8x128xf32>
    %100 = arith.addf %99, %98 : vector<8x128xf32>
    %101 = arith.divf %99, %100 : vector<8x128xf32>
    %102 = vector.extract_strided_slice %89 {offsets = [0, 256], sizes = [8, 128], strides = [1, 1]} : vector<8x512xf32> to vector<8x128xf32>
    %103 = math.tanh %102 : vector<8x128xf32>
    %104 = vector.extract_strided_slice %89 {offsets = [0, 384], sizes = [8, 128], strides = [1, 1]} : vector<8x512xf32> to vector<8x128xf32>
    %105 = arith.negf %104 : vector<8x128xf32>
    %106 = math.exp %105 : vector<8x128xf32>
    %cst_54 = arith.constant 1.000000e+00 : f32
    %107 = vector.broadcast %cst_54 : f32 to vector<8x128xf32>
    %108 = arith.addf %107, %106 : vector<8x128xf32>
    %109 = arith.divf %107, %108 : vector<8x128xf32>
    %c0_55 = arith.constant 0 : index
    %c0_56 = arith.constant 0 : index
    %110 = vector.load %arg13[%c0_55, %c0_56] : memref<8x128xf32, #tpu.memory_space<vmem>>, vector<8x128xf32>
    %111 = arith.mulf %101, %110 : vector<8x128xf32>
    %112 = arith.mulf %95, %103 : vector<8x128xf32>
    %113 = arith.addf %111, %112 : vector<8x128xf32>
    %114 = math.tanh %113 : vector<8x128xf32>
    %115 = arith.mulf %109, %114 : vector<8x128xf32>
    %c0_57 = arith.constant 0 : index
    %c0_58 = arith.constant 0 : index
    %116 = vector.load %arg12[%c0_57, %c0_58] : memref<8x128xf32, #tpu.memory_space<vmem>>, vector<8x128xf32>
    tpu.vector_store %arg12[%c0_57, %c0_58], %115 {strides = array<i32>} : memref<8x128xf32, #tpu.memory_space<vmem>>, vector<8x128xf32>,
    %c0_59 = arith.constant 0 : index
    %c0_60 = arith.constant 0 : index
    %117 = vector.load %arg13[%c0_59, %c0_60] : memref<8x128xf32, #tpu.memory_space<vmem>>, vector<8x128xf32>
    tpu.vector_store %arg13[%c0_59, %c0_60], %113 {strides = array<i32>} : memref<8x128xf32, #tpu.memory_space<vmem>>, vector<8x128xf32>,
    %c3_i32 = arith.constant 3 : i32
    %118 = arith.index_cast %c3_i32 : i32 to index
    %c0_61 = arith.constant 0 : index
    %c0_62 = arith.constant 0 : index
    %119 = vector.load %arg1[%118, %c0_61, %c0_62] : memref<8x8x8xbf16, #tpu.memory_space<vmem>>, vector<1x8x8xbf16>
    %120 = vector.shape_cast %119 : vector<1x8x8xbf16> to vector<8x8xbf16>
    %c0_63 = arith.constant 0 : index
    %c0_64 = arith.constant 0 : index
    %121 = vector.load %arg2[%c0_63, %c0_64] : memref<8x512xbf16, #tpu.memory_space<vmem>>, vector<8x512xbf16>
    %cst_65 = arith.constant dense<0.000000e+00> : vector<8x512xf32>
    %122 = tpu.matmul %120, %121, %cst_65 {dimension_numbers = #tpu.dot_dimension_numbers<[1], [0], [0], [1], [0, 0, 1, 1], [], []>} : vector<8x8xbf16>, vector<8x512xbf16>, vector<8x512xf32> -> vector<8x512xf32>
    %c0_66 = arith.constant 0 : index
    %c0_67 = arith.constant 0 : index
    %123 = vector.load %arg12[%c0_66, %c0_67] : memref<8x128xf32, #tpu.memory_space<vmem>>, vector<8x128xf32>
    %124 = arith.truncf %123 : vector<8x128xf32> to vector<8x128xbf16>
    %c0_68 = arith.constant 0 : index
    %c0_69 = arith.constant 0 : index
    %125 = vector.load %arg3[%c0_68, %c0_69] : memref<128x512xbf16, #tpu.memory_space<vmem>>, vector<128x512xbf16>
    %cst_70 = arith.constant dense<0.000000e+00> : vector<8x512xf32>
    %126 = tpu.matmul %124, %125, %cst_70 {dimension_numbers = #tpu.dot_dimension_numbers<[1], [0], [0], [1], [0, 0, 1, 1], [], []>} : vector<8x128xbf16>, vector<128x512xbf16>, vector<8x512xf32> -> vector<8x512xf32>
    %127 = arith.addf %122, %126 : vector<8x512xf32>
    %128 = vector.extract_strided_slice %127 {offsets = [0, 0], sizes = [8, 128], strides = [1, 1]} : vector<8x512xf32> to vector<8x128xf32>
    %129 = arith.negf %128 : vector<8x128xf32>
    %130 = math.exp %129 : vector<8x128xf32>
    %cst_71 = arith.constant 1.000000e+00 : f32
    %131 = vector.broadcast %cst_71 : f32 to vector<8x128xf32>
    %132 = arith.addf %131, %130 : vector<8x128xf32>
    %133 = arith.divf %131, %132 : vector<8x128xf32>
    %134 = vector.extract_strided_slice %127 {offsets = [0, 128], sizes = [8, 128], strides = [1, 1]} : vector<8x512xf32> to vector<8x128xf32>
    %135 = arith.negf %134 : vector<8x128xf32>
    %136 = math.exp %135 : vector<8x128xf32>
    %cst_72 = arith.constant 1.000000e+00 : f32
    %137 = vector.broadcast %cst_72 : f32 to vector<8x128xf32>
    %138 = arith.addf %137, %136 : vector<8x128xf32>
    %139 = arith.divf %137, %138 : vector<8x128xf32>
    %140 = vector.extract_strided_slice %127 {offsets = [0, 256], sizes = [8, 128], strides = [1, 1]} : vector<8x512xf32> to vector<8x128xf32>
    %141 = math.tanh %140 : vector<8x128xf32>
    %142 = vector.extract_strided_slice %127 {offsets = [0, 384], sizes = [8, 128], strides = [1, 1]} : vector<8x512xf32> to vector<8x128xf32>
    %143 = arith.negf %142 : vector<8x128xf32>
    %144 = math.exp %143 : vector<8x128xf32>
    %cst_73 = arith.constant 1.000000e+00 : f32
    %145 = vector.broadcast %cst_73 : f32 to vector<8x128xf32>
    %146 = arith.addf %145, %144 : vector<8x128xf32>
    %147 = arith.divf %145, %146 : vector<8x128xf32>
    %c0_74 = arith.constant 0 : index
    %c0_75 = arith.constant 0 : index
    %148 = vector.load %arg13[%c0_74, %c0_75] : memref<8x128xf32, #tpu.memory_space<vmem>>, vector<8x128xf32>
    %149 = arith.mulf %139, %148 : vector<8x128xf32>
    %150 = arith.mulf %133, %141 : vector<8x128xf32>
    %151 = arith.addf %149, %150 : vector<8x128xf32>
    %152 = math.tanh %151 : vector<8x128xf32>
    %153 = arith.mulf %147, %152 : vector<8x128xf32>
    %c0_76 = arith.constant 0 : index
    %c0_77 = arith.constant 0 : index
    %154 = vector.load %arg12[%c0_76, %c0_77] : memref<8x128xf32, #tpu.memory_space<vmem>>, vector<8x128xf32>
    tpu.vector_store %arg12[%c0_76, %c0_77], %153 {strides = array<i32>} : memref<8x128xf32, #tpu.memory_space<vmem>>, vector<8x128xf32>,
    %c0_78 = arith.constant 0 : index
    %c0_79 = arith.constant 0 : index
    %155 = vector.load %arg13[%c0_78, %c0_79] : memref<8x128xf32, #tpu.memory_space<vmem>>, vector<8x128xf32>
    tpu.vector_store %arg13[%c0_78, %c0_79], %151 {strides = array<i32>} : memref<8x128xf32, #tpu.memory_space<vmem>>, vector<8x128xf32>,
    %c4_i32 = arith.constant 4 : i32
    %156 = arith.index_cast %c4_i32 : i32 to index
    %c0_80 = arith.constant 0 : index
    %c0_81 = arith.constant 0 : index
    %157 = vector.load %arg1[%156, %c0_80, %c0_81] : memref<8x8x8xbf16, #tpu.memory_space<vmem>>, vector<1x8x8xbf16>
    %158 = vector.shape_cast %157 : vector<1x8x8xbf16> to vector<8x8xbf16>
    %c0_82 = arith.constant 0 : index
    %c0_83 = arith.constant 0 : index
    %159 = vector.load %arg2[%c0_82, %c0_83] : memref<8x512xbf16, #tpu.memory_space<vmem>>, vector<8x512xbf16>
    %cst_84 = arith.constant dense<0.000000e+00> : vector<8x512xf32>
    %160 = tpu.matmul %158, %159, %cst_84 {dimension_numbers = #tpu.dot_dimension_numbers<[1], [0], [0], [1], [0, 0, 1, 1], [], []>} : vector<8x8xbf16>, vector<8x512xbf16>, vector<8x512xf32> -> vector<8x512xf32>
    %c0_85 = arith.constant 0 : index
    %c0_86 = arith.constant 0 : index
    %161 = vector.load %arg12[%c0_85, %c0_86] : memref<8x128xf32, #tpu.memory_space<vmem>>, vector<8x128xf32>
    %162 = arith.truncf %161 : vector<8x128xf32> to vector<8x128xbf16>
    %c0_87 = arith.constant 0 : index
    %c0_88 = arith.constant 0 : index
    %163 = vector.load %arg3[%c0_87, %c0_88] : memref<128x512xbf16, #tpu.memory_space<vmem>>, vector<128x512xbf16>
    %cst_89 = arith.constant dense<0.000000e+00> : vector<8x512xf32>
    %164 = tpu.matmul %162, %163, %cst_89 {dimension_numbers = #tpu.dot_dimension_numbers<[1], [0], [0], [1], [0, 0, 1, 1], [], []>} : vector<8x128xbf16>, vector<128x512xbf16>, vector<8x512xf32> -> vector<8x512xf32>
    %165 = arith.addf %160, %164 : vector<8x512xf32>
    %166 = vector.extract_strided_slice %165 {offsets = [0, 0], sizes = [8, 128], strides = [1, 1]} : vector<8x512xf32> to vector<8x128xf32>
    %167 = arith.negf %166 : vector<8x128xf32>
    %168 = math.exp %167 : vector<8x128xf32>
    %cst_90 = arith.constant 1.000000e+00 : f32
    %169 = vector.broadcast %cst_90 : f32 to vector<8x128xf32>
    %170 = arith.addf %169, %168 : vector<8x128xf32>
    %171 = arith.divf %169, %170 : vector<8x128xf32>
    %172 = vector.extract_strided_slice %165 {offsets = [0, 128], sizes = [8, 128], strides = [1, 1]} : vector<8x512xf32> to vector<8x128xf32>
    %173 = arith.negf %172 : vector<8x128xf32>
    %174 = math.exp %173 : vector<8x128xf32>
    %cst_91 = arith.constant 1.000000e+00 : f32
    %175 = vector.broadcast %cst_91 : f32 to vector<8x128xf32>
    %176 = arith.addf %175, %174 : vector<8x128xf32>
    %177 = arith.divf %175, %176 : vector<8x128xf32>
    %178 = vector.extract_strided_slice %165 {offsets = [0, 256], sizes = [8, 128], strides = [1, 1]} : vector<8x512xf32> to vector<8x128xf32>
    %179 = math.tanh %178 : vector<8x128xf32>
    %180 = vector.extract_strided_slice %165 {offsets = [0, 384], sizes = [8, 128], strides = [1, 1]} : vector<8x512xf32> to vector<8x128xf32>
    %181 = arith.negf %180 : vector<8x128xf32>
    %182 = math.exp %181 : vector<8x128xf32>
    %cst_92 = arith.constant 1.000000e+00 : f32
    %183 = vector.broadcast %cst_92 : f32 to vector<8x128xf32>
    %184 = arith.addf %183, %182 : vector<8x128xf32>
    %185 = arith.divf %183, %184 : vector<8x128xf32>
    %c0_93 = arith.constant 0 : index
    %c0_94 = arith.constant 0 : index
    %186 = vector.load %arg13[%c0_93, %c0_94] : memref<8x128xf32, #tpu.memory_space<vmem>>, vector<8x128xf32>
    %187 = arith.mulf %177, %186 : vector<8x128xf32>
    %188 = arith.mulf %171, %179 : vector<8x128xf32>
    %189 = arith.addf %187, %188 : vector<8x128xf32>
    %190 = math.tanh %189 : vector<8x128xf32>
    %191 = arith.mulf %185, %190 : vector<8x128xf32>
    %c0_95 = arith.constant 0 : index
    %c0_96 = arith.constant 0 : index
    %192 = vector.load %arg12[%c0_95, %c0_96] : memref<8x128xf32, #tpu.memory_space<vmem>>, vector<8x128xf32>
    tpu.vector_store %arg12[%c0_95, %c0_96], %191 {strides = array<i32>} : memref<8x128xf32, #tpu.memory_space<vmem>>, vector<8x128xf32>,
    %c0_97 = arith.constant 0 : index
    %c0_98 = arith.constant 0 : index
    %193 = vector.load %arg13[%c0_97, %c0_98] : memref<8x128xf32, #tpu.memory_space<vmem>>, vector<8x128xf32>
    tpu.vector_store %arg13[%c0_97, %c0_98], %189 {strides = array<i32>} : memref<8x128xf32, #tpu.memory_space<vmem>>, vector<8x128xf32>,
    %c5_i32 = arith.constant 5 : i32
    %194 = arith.index_cast %c5_i32 : i32 to index
    %c0_99 = arith.constant 0 : index
    %c0_100 = arith.constant 0 : index
    %195 = vector.load %arg1[%194, %c0_99, %c0_100] : memref<8x8x8xbf16, #tpu.memory_space<vmem>>, vector<1x8x8xbf16>
    %196 = vector.shape_cast %195 : vector<1x8x8xbf16> to vector<8x8xbf16>
    %c0_101 = arith.constant 0 : index
    %c0_102 = arith.constant 0 : index
    %197 = vector.load %arg2[%c0_101, %c0_102] : memref<8x512xbf16, #tpu.memory_space<vmem>>, vector<8x512xbf16>
    %cst_103 = arith.constant dense<0.000000e+00> : vector<8x512xf32>
    %198 = tpu.matmul %196, %197, %cst_103 {dimension_numbers = #tpu.dot_dimension_numbers<[1], [0], [0], [1], [0, 0, 1, 1], [], []>} : vector<8x8xbf16>, vector<8x512xbf16>, vector<8x512xf32> -> vector<8x512xf32>
    %c0_104 = arith.constant 0 : index
    %c0_105 = arith.constant 0 : index
    %199 = vector.load %arg12[%c0_104, %c0_105] : memref<8x128xf32, #tpu.memory_space<vmem>>, vector<8x128xf32>
    %200 = arith.truncf %199 : vector<8x128xf32> to vector<8x128xbf16>
    %c0_106 = arith.constant 0 : index
    %c0_107 = arith.constant 0 : index
    %201 = vector.load %arg3[%c0_106, %c0_107] : memref<128x512xbf16, #tpu.memory_space<vmem>>, vector<128x512xbf16>
    %cst_108 = arith.constant dense<0.000000e+00> : vector<8x512xf32>
    %202 = tpu.matmul %200, %201, %cst_108 {dimension_numbers = #tpu.dot_dimension_numbers<[1], [0], [0], [1], [0, 0, 1, 1], [], []>} : vector<8x128xbf16>, vector<128x512xbf16>, vector<8x512xf32> -> vector<8x512xf32>
    %203 = arith.addf %198, %202 : vector<8x512xf32>
    %204 = vector.extract_strided_slice %203 {offsets = [0, 0], sizes = [8, 128], strides = [1, 1]} : vector<8x512xf32> to vector<8x128xf32>
    %205 = arith.negf %204 : vector<8x128xf32>
    %206 = math.exp %205 : vector<8x128xf32>
    %cst_109 = arith.constant 1.000000e+00 : f32
    %207 = vector.broadcast %cst_109 : f32 to vector<8x128xf32>
    %208 = arith.addf %207, %206 : vector<8x128xf32>
    %209 = arith.divf %207, %208 : vector<8x128xf32>
    %210 = vector.extract_strided_slice %203 {offsets = [0, 128], sizes = [8, 128], strides = [1, 1]} : vector<8x512xf32> to vector<8x128xf32>
    %211 = arith.negf %210 : vector<8x128xf32>
    %212 = math.exp %211 : vector<8x128xf32>
    %cst_110 = arith.constant 1.000000e+00 : f32
    %213 = vector.broadcast %cst_110 : f32 to vector<8x128xf32>
    %214 = arith.addf %213, %212 : vector<8x128xf32>
    %215 = arith.divf %213, %214 : vector<8x128xf32>
    %216 = vector.extract_strided_slice %203 {offsets = [0, 256], sizes = [8, 128], strides = [1, 1]} : vector<8x512xf32> to vector<8x128xf32>
    %217 = math.tanh %216 : vector<8x128xf32>
    %218 = vector.extract_strided_slice %203 {offsets = [0, 384], sizes = [8, 128], strides = [1, 1]} : vector<8x512xf32> to vector<8x128xf32>
    %219 = arith.negf %218 : vector<8x128xf32>
    %220 = math.exp %219 : vector<8x128xf32>
    %cst_111 = arith.constant 1.000000e+00 : f32
    %221 = vector.broadcast %cst_111 : f32 to vector<8x128xf32>
    %222 = arith.addf %221, %220 : vector<8x128xf32>
    %223 = arith.divf %221, %222 : vector<8x128xf32>
    %c0_112 = arith.constant 0 : index
    %c0_113 = arith.constant 0 : index
    %224 = vector.load %arg13[%c0_112, %c0_113] : memref<8x128xf32, #tpu.memory_space<vmem>>, vector<8x128xf32>
    %225 = arith.mulf %215, %224 : vector<8x128xf32>
    %226 = arith.mulf %209, %217 : vector<8x128xf32>
    %227 = arith.addf %225, %226 : vector<8x128xf32>
    %228 = math.tanh %227 : vector<8x128xf32>
    %229 = arith.mulf %223, %228 : vector<8x128xf32>
    %c0_114 = arith.constant 0 : index
    %c0_115 = arith.constant 0 : index
    %230 = vector.load %arg12[%c0_114, %c0_115] : memref<8x128xf32, #tpu.memory_space<vmem>>, vector<8x128xf32>
    tpu.vector_store %arg12[%c0_114, %c0_115], %229 {strides = array<i32>} : memref<8x128xf32, #tpu.memory_space<vmem>>, vector<8x128xf32>,
    %c0_116 = arith.constant 0 : index
    %c0_117 = arith.constant 0 : index
    %231 = vector.load %arg13[%c0_116, %c0_117] : memref<8x128xf32, #tpu.memory_space<vmem>>, vector<8x128xf32>
    tpu.vector_store %arg13[%c0_116, %c0_117], %227 {strides = array<i32>} : memref<8x128xf32, #tpu.memory_space<vmem>>, vector<8x128xf32>,
    %c6_i32 = arith.constant 6 : i32
    %232 = arith.index_cast %c6_i32 : i32 to index
    %c0_118 = arith.constant 0 : index
    %c0_119 = arith.constant 0 : index
    %233 = vector.load %arg1[%232, %c0_118, %c0_119] : memref<8x8x8xbf16, #tpu.memory_space<vmem>>, vector<1x8x8xbf16>
    %234 = vector.shape_cast %233 : vector<1x8x8xbf16> to vector<8x8xbf16>
    %c0_120 = arith.constant 0 : index
    %c0_121 = arith.constant 0 : index
    %235 = vector.load %arg2[%c0_120, %c0_121] : memref<8x512xbf16, #tpu.memory_space<vmem>>, vector<8x512xbf16>
    %cst_122 = arith.constant dense<0.000000e+00> : vector<8x512xf32>
    %236 = tpu.matmul %234, %235, %cst_122 {dimension_numbers = #tpu.dot_dimension_numbers<[1], [0], [0], [1], [0, 0, 1, 1], [], []>} : vector<8x8xbf16>, vector<8x512xbf16>, vector<8x512xf32> -> vector<8x512xf32>
    %c0_123 = arith.constant 0 : index
    %c0_124 = arith.constant 0 : index
    %237 = vector.load %arg12[%c0_123, %c0_124] : memref<8x128xf32, #tpu.memory_space<vmem>>, vector<8x128xf32>
    %238 = arith.truncf %237 : vector<8x128xf32> to vector<8x128xbf16>
    %c0_125 = arith.constant 0 : index
    %c0_126 = arith.constant 0 : index
    %239 = vector.load %arg3[%c0_125, %c0_126] : memref<128x512xbf16, #tpu.memory_space<vmem>>, vector<128x512xbf16>
    %cst_127 = arith.constant dense<0.000000e+00> : vector<8x512xf32>
    %240 = tpu.matmul %238, %239, %cst_127 {dimension_numbers = #tpu.dot_dimension_numbers<[1], [0], [0], [1], [0, 0, 1, 1], [], []>} : vector<8x128xbf16>, vector<128x512xbf16>, vector<8x512xf32> -> vector<8x512xf32>
    %241 = arith.addf %236, %240 : vector<8x512xf32>
    %242 = vector.extract_strided_slice %241 {offsets = [0, 0], sizes = [8, 128], strides = [1, 1]} : vector<8x512xf32> to vector<8x128xf32>
    %243 = arith.negf %242 : vector<8x128xf32>
    %244 = math.exp %243 : vector<8x128xf32>
    %cst_128 = arith.constant 1.000000e+00 : f32
    %245 = vector.broadcast %cst_128 : f32 to vector<8x128xf32>
    %246 = arith.addf %245, %244 : vector<8x128xf32>
    %247 = arith.divf %245, %246 : vector<8x128xf32>
    %248 = vector.extract_strided_slice %241 {offsets = [0, 128], sizes = [8, 128], strides = [1, 1]} : vector<8x512xf32> to vector<8x128xf32>
    %249 = arith.negf %248 : vector<8x128xf32>
    %250 = math.exp %249 : vector<8x128xf32>
    %cst_129 = arith.constant 1.000000e+00 : f32
    %251 = vector.broadcast %cst_129 : f32 to vector<8x128xf32>
    %252 = arith.addf %251, %250 : vector<8x128xf32>
    %253 = arith.divf %251, %252 : vector<8x128xf32>
    %254 = vector.extract_strided_slice %241 {offsets = [0, 256], sizes = [8, 128], strides = [1, 1]} : vector<8x512xf32> to vector<8x128xf32>
    %255 = math.tanh %254 : vector<8x128xf32>
    %256 = vector.extract_strided_slice %241 {offsets = [0, 384], sizes = [8, 128], strides = [1, 1]} : vector<8x512xf32> to vector<8x128xf32>
    %257 = arith.negf %256 : vector<8x128xf32>
    %258 = math.exp %257 : vector<8x128xf32>
    %cst_130 = arith.constant 1.000000e+00 : f32
    %259 = vector.broadcast %cst_130 : f32 to vector<8x128xf32>
    %260 = arith.addf %259, %258 : vector<8x128xf32>
    %261 = arith.divf %259, %260 : vector<8x128xf32>
    %c0_131 = arith.constant 0 : index
    %c0_132 = arith.constant 0 : index
    %262 = vector.load %arg13[%c0_131, %c0_132] : memref<8x128xf32, #tpu.memory_space<vmem>>, vector<8x128xf32>
    %263 = arith.mulf %253, %262 : vector<8x128xf32>
    %264 = arith.mulf %247, %255 : vector<8x128xf32>
    %265 = arith.addf %263, %264 : vector<8x128xf32>
    %266 = math.tanh %265 : vector<8x128xf32>
    %267 = arith.mulf %261, %266 : vector<8x128xf32>
    %c0_133 = arith.constant 0 : index
    %c0_134 = arith.constant 0 : index
    %268 = vector.load %arg12[%c0_133, %c0_134] : memref<8x128xf32, #tpu.memory_space<vmem>>, vector<8x128xf32>
    tpu.vector_store %arg12[%c0_133, %c0_134], %267 {strides = array<i32>} : memref<8x128xf32, #tpu.memory_space<vmem>>, vector<8x128xf32>,
    %c0_135 = arith.constant 0 : index
    %c0_136 = arith.constant 0 : index
    %269 = vector.load %arg13[%c0_135, %c0_136] : memref<8x128xf32, #tpu.memory_space<vmem>>, vector<8x128xf32>
    tpu.vector_store %arg13[%c0_135, %c0_136], %265 {strides = array<i32>} : memref<8x128xf32, #tpu.memory_space<vmem>>, vector<8x128xf32>,
    %c7_i32 = arith.constant 7 : i32
    %270 = arith.index_cast %c7_i32 : i32 to index
    %c0_137 = arith.constant 0 : index
    %c0_138 = arith.constant 0 : index
    %271 = vector.load %arg1[%270, %c0_137, %c0_138] : memref<8x8x8xbf16, #tpu.memory_space<vmem>>, vector<1x8x8xbf16>
    %272 = vector.shape_cast %271 : vector<1x8x8xbf16> to vector<8x8xbf16>
    %c0_139 = arith.constant 0 : index
    %c0_140 = arith.constant 0 : index
    %273 = vector.load %arg2[%c0_139, %c0_140] : memref<8x512xbf16, #tpu.memory_space<vmem>>, vector<8x512xbf16>
    %cst_141 = arith.constant dense<0.000000e+00> : vector<8x512xf32>
    %274 = tpu.matmul %272, %273, %cst_141 {dimension_numbers = #tpu.dot_dimension_numbers<[1], [0], [0], [1], [0, 0, 1, 1], [], []>} : vector<8x8xbf16>, vector<8x512xbf16>, vector<8x512xf32> -> vector<8x512xf32>
    %c0_142 = arith.constant 0 : index
    %c0_143 = arith.constant 0 : index
    %275 = vector.load %arg12[%c0_142, %c0_143] : memref<8x128xf32, #tpu.memory_space<vmem>>, vector<8x128xf32>
    %276 = arith.truncf %275 : vector<8x128xf32> to vector<8x128xbf16>
    %c0_144 = arith.constant 0 : index
    %c0_145 = arith.constant 0 : index
    %277 = vector.load %arg3[%c0_144, %c0_145] : memref<128x512xbf16, #tpu.memory_space<vmem>>, vector<128x512xbf16>
    %cst_146 = arith.constant dense<0.000000e+00> : vector<8x512xf32>
    %278 = tpu.matmul %276, %277, %cst_146 {dimension_numbers = #tpu.dot_dimension_numbers<[1], [0], [0], [1], [0, 0, 1, 1], [], []>} : vector<8x128xbf16>, vector<128x512xbf16>, vector<8x512xf32> -> vector<8x512xf32>
    %279 = arith.addf %274, %278 : vector<8x512xf32>
    %280 = vector.extract_strided_slice %279 {offsets = [0, 0], sizes = [8, 128], strides = [1, 1]} : vector<8x512xf32> to vector<8x128xf32>
    %281 = arith.negf %280 : vector<8x128xf32>
    %282 = math.exp %281 : vector<8x128xf32>
    %cst_147 = arith.constant 1.000000e+00 : f32
    %283 = vector.broadcast %cst_147 : f32 to vector<8x128xf32>
    %284 = arith.addf %283, %282 : vector<8x128xf32>
    %285 = arith.divf %283, %284 : vector<8x128xf32>
    %286 = vector.extract_strided_slice %279 {offsets = [0, 128], sizes = [8, 128], strides = [1, 1]} : vector<8x512xf32> to vector<8x128xf32>
    %287 = arith.negf %286 : vector<8x128xf32>
    %288 = math.exp %287 : vector<8x128xf32>
    %cst_148 = arith.constant 1.000000e+00 : f32
    %289 = vector.broadcast %cst_148 : f32 to vector<8x128xf32>
    %290 = arith.addf %289, %288 : vector<8x128xf32>
    %291 = arith.divf %289, %290 : vector<8x128xf32>
    %292 = vector.extract_strided_slice %279 {offsets = [0, 256], sizes = [8, 128], strides = [1, 1]} : vector<8x512xf32> to vector<8x128xf32>
    %293 = math.tanh %292 : vector<8x128xf32>
    %294 = vector.extract_strided_slice %279 {offsets = [0, 384], sizes = [8, 128], strides = [1, 1]} : vector<8x512xf32> to vector<8x128xf32>
    %295 = arith.negf %294 : vector<8x128xf32>
    %296 = math.exp %295 : vector<8x128xf32>
    %cst_149 = arith.constant 1.000000e+00 : f32
    %297 = vector.broadcast %cst_149 : f32 to vector<8x128xf32>
    %298 = arith.addf %297, %296 : vector<8x128xf32>
    %299 = arith.divf %297, %298 : vector<8x128xf32>
    %c0_150 = arith.constant 0 : index
    %c0_151 = arith.constant 0 : index
    %300 = vector.load %arg13[%c0_150, %c0_151] : memref<8x128xf32, #tpu.memory_space<vmem>>, vector<8x128xf32>
    %301 = arith.mulf %291, %300 : vector<8x128xf32>
    %302 = arith.mulf %285, %293 : vector<8x128xf32>
    %303 = arith.addf %301, %302 : vector<8x128xf32>
    %304 = math.tanh %303 : vector<8x128xf32>
    %305 = arith.mulf %299, %304 : vector<8x128xf32>
    %c0_152 = arith.constant 0 : index
    %c0_153 = arith.constant 0 : index
    %306 = vector.load %arg12[%c0_152, %c0_153] : memref<8x128xf32, #tpu.memory_space<vmem>>, vector<8x128xf32>
    tpu.vector_store %arg12[%c0_152, %c0_153], %305 {strides = array<i32>} : memref<8x128xf32, #tpu.memory_space<vmem>>, vector<8x128xf32>,
    %c0_154 = arith.constant 0 : index
    %c0_155 = arith.constant 0 : index
    %307 = vector.load %arg13[%c0_154, %c0_155] : memref<8x128xf32, #tpu.memory_space<vmem>>, vector<8x128xf32>
    tpu.vector_store %arg13[%c0_154, %c0_155], %303 {strides = array<i32>} : memref<8x128xf32, #tpu.memory_space<vmem>>, vector<8x128xf32>,
    %c8_i32 = arith.constant 8 : i32
    %c0_156 = arith.constant 0 : index
    %c0_157 = arith.constant 0 : index
    %308 = vector.load %arg12[%c0_156, %c0_157] : memref<8x128xf32, #tpu.memory_space<vmem>>, vector<8x128xf32>
    %c0_158 = arith.constant 0 : index
    %c0_159 = arith.constant 0 : index
    %309 = vector.load %arg6[%c0_158, %c0_159] : memref<2x8xf32, #tpu.memory_space<vmem>>, vector<2x8xf32>
    %cst_160 = arith.constant dense<0.000000e+00> : vector<2x128xf32>
    %310 = tpu.matmul %309, %308, %cst_160 {dimension_numbers = #tpu.dot_dimension_numbers<[1], [0], [0], [1], [0, 0, 1, 1], [], []>} : vector<2x8xf32>, vector<8x128xf32>, vector<2x128xf32> -> vector<2x128xf32>
    %c0_161 = arith.constant 0 : index
    %c0_162 = arith.constant 0 : index
    %311 = vector.load %arg8[%c0_161, %c0_162] : memref<8x2xf32, #tpu.memory_space<vmem>>, vector<8x2xf32>
    %cst_163 = arith.constant dense<0.000000e+00> : vector<8x128xf32>
    %312 = tpu.matmul %311, %310, %cst_163 {dimension_numbers = #tpu.dot_dimension_numbers<[1], [0], [0], [1], [0, 0, 1, 1], [], []>} : vector<8x2xf32>, vector<2x128xf32>, vector<8x128xf32> -> vector<8x128xf32>
    %313 = arith.mulf %312, %308 : vector<8x128xf32>
    %cst_164 = arith.constant dense<0.000000e+00> : vector<8xf32>
    %314 = vector.multi_reduction <add>, %313, %cst_164 [1] : vector<8x128xf32> to vector<8xf32>
    %315 = vector.shape_cast %314 : vector<8xf32> to vector<8x1xf32>
    %cst_165 = arith.constant 0.176776692 : f32
    %316 = vector.broadcast %cst_165 : f32 to vector<8x1xf32>
    %317 = arith.mulf %315, %316 : vector<8x1xf32>
    %cst_166 = arith.constant dense<0xFF800000> : vector<1xf32>
    %318 = vector.multi_reduction <maximumf>, %317, %cst_166 [0] : vector<8x1xf32> to vector<1xf32>
    %319 = vector.shape_cast %318 : vector<1xf32> to vector<1x1xf32>
    %320 = vector.broadcast %319 : vector<1x1xf32> to vector<8x1xf32>
    %321 = arith.subf %317, %320 : vector<8x1xf32>
    %322 = math.exp %321 : vector<8x1xf32>
    %c0_167 = arith.constant 0 : index
    %c0_168 = arith.constant 0 : index
    %323 = vector.load %arg7[%c0_167, %c0_168] : memref<2x8xf32, #tpu.memory_space<vmem>>, vector<2x8xf32>
    %cst_169 = arith.constant dense<0.000000e+00> : vector<2x1xf32>
    %324 = tpu.matmul %323, %322, %cst_169 {dimension_numbers = #tpu.dot_dimension_numbers<[1], [0], [0], [1], [0, 0, 1, 1], [], []>} : vector<2x8xf32>, vector<8x1xf32>, vector<2x1xf32> -> vector<2x1xf32>
    %c0_170 = arith.constant 0 : index
    %c0_171 = arith.constant 0 : index
    %325 = vector.load %arg8[%c0_170, %c0_171] : memref<8x2xf32, #tpu.memory_space<vmem>>, vector<8x2xf32>
    %cst_172 = arith.constant dense<0.000000e+00> : vector<8x1xf32>
    %326 = tpu.matmul %325, %324, %cst_172 {dimension_numbers = #tpu.dot_dimension_numbers<[1], [0], [0], [1], [0, 0, 1, 1], [], []>} : vector<8x2xf32>, vector<2x1xf32>, vector<8x1xf32> -> vector<8x1xf32>
    %327 = tpu.reciprocal %326 {approx = true} : vector<8x1xf32> -> vector<8x1xf32>
    %328 = arith.mulf %322, %327 : vector<8x1xf32>
    %c0_173 = arith.constant 0 : index
    %c0_174 = arith.constant 0 : index
    %329 = vector.load %arg7[%c0_173, %c0_174] : memref<2x8xf32, #tpu.memory_space<vmem>>, vector<2x8xf32>
    %330 = vector.broadcast %328 : vector<8x1xf32> to vector<8x128xf32>
    %331 = arith.mulf %330, %308 : vector<8x128xf32>
    %cst_175 = arith.constant dense<0.000000e+00> : vector<2x128xf32>
    %332 = tpu.matmul %329, %331, %cst_175 {dimension_numbers = #tpu.dot_dimension_numbers<[1], [0], [0], [1], [0, 0, 1, 1], [], []>} : vector<2x8xf32>, vector<8x128xf32>, vector<2x128xf32> -> vector<2x128xf32>
    %333 = arith.truncf %332 : vector<2x128xf32> to vector<2x128xbf16>
    %c0_176 = arith.constant 0 : index
    %c0_177 = arith.constant 0 : index
    %334 = vector.load %arg4[%c0_176, %c0_177] : memref<128x128xbf16, #tpu.memory_space<vmem>>, vector<128x128xbf16>
    %cst_178 = arith.constant dense<0.000000e+00> : vector<2x128xf32>
    %335 = tpu.matmul %333, %334, %cst_178 {dimension_numbers = #tpu.dot_dimension_numbers<[1], [0], [0], [1], [0, 0, 1, 1], [], []>} : vector<2x128xbf16>, vector<128x128xbf16>, vector<2x128xf32> -> vector<2x128xf32>
    %c0_179 = arith.constant 0 : index
    %c0_180 = arith.constant 0 : index
    %336 = vector.load %arg5[%c0_179, %c0_180] : memref<1x128xf32, #tpu.memory_space<vmem>>, vector<1x128xf32>
    %337 = vector.broadcast %336 : vector<1x128xf32> to vector<2x128xf32>
    %338 = arith.addf %335, %337 : vector<2x128xf32>
    %c0_181 = arith.constant 0 : index
    %c0_182 = arith.constant 0 : index
    %339 = vector.load %arg9[%c0_181, %c0_182] : memref<2x128xf32, #tpu.memory_space<vmem>>, vector<2x128xf32>
    tpu.vector_store %arg9[%c0_181, %c0_182], %338 {strides = array<i32>} : memref<2x128xf32, #tpu.memory_space<vmem>>, vector<2x128xf32>,
    %c0_183 = arith.constant 0 : index
    %c0_184 = arith.constant 0 : index
    %340 = vector.load %arg10[%c0_183, %c0_184] : memref<2x128xf32, #tpu.memory_space<vmem>>, vector<2x128xf32>
    tpu.vector_store %arg10[%c0_183, %c0_184], %310 {strides = array<i32>} : memref<2x128xf32, #tpu.memory_space<vmem>>, vector<2x128xf32>,
    %c0_185 = arith.constant 0 : index
    %c0_186 = arith.constant 0 : index
    %341 = vector.load %arg6[%c0_185, %c0_186] : memref<2x8xf32, #tpu.memory_space<vmem>>, vector<2x8xf32>
    %c0_187 = arith.constant 0 : index
    %c0_188 = arith.constant 0 : index
    %342 = vector.load %arg13[%c0_187, %c0_188] : memref<8x128xf32, #tpu.memory_space<vmem>>, vector<8x128xf32>
    %cst_189 = arith.constant dense<0.000000e+00> : vector<2x128xf32>
    %343 = tpu.matmul %341, %342, %cst_189 {dimension_numbers = #tpu.dot_dimension_numbers<[1], [0], [0], [1], [0, 0, 1, 1], [], []>} : vector<2x8xf32>, vector<8x128xf32>, vector<2x128xf32> -> vector<2x128xf32>
    %c0_190 = arith.constant 0 : index
    %c0_191 = arith.constant 0 : index
    %344 = vector.load %arg11[%c0_190, %c0_191] : memref<2x128xf32, #tpu.memory_space<vmem>>, vector<2x128xf32>
    tpu.vector_store %arg11[%c0_190, %c0_191], %343 {strides = array<i32>} : memref<2x128xf32, #tpu.memory_space<vmem>>, vector<2x128xf32>,
    return
  }
  func.func @transform_0(%arg0: i32) -> (i32, i32, i32) {
    %c0_i32 = arith.constant 0 : i32
    %c0_i32_0 = arith.constant 0 : i32
    %c0_i32_1 = arith.constant 0 : i32
    return %c0_i32, %arg0, %c0_i32_0 : i32, i32, i32
  }
  func.func @transform_1(%arg0: i32) -> (i32, i32) {
    %c0_i32 = arith.constant 0 : i32
    %c0_i32_0 = arith.constant 0 : i32
    %c0_i32_1 = arith.constant 0 : i32
    return %c0_i32, %c0_i32_0 : i32, i32
  }
  func.func @transform_2(%arg0: i32) -> (i32, i32) {
    %c0_i32 = arith.constant 0 : i32
    %c0_i32_0 = arith.constant 0 : i32
    %c0_i32_1 = arith.constant 0 : i32
    return %c0_i32, %c0_i32_0 : i32, i32
  }
  func.func @transform_3(%arg0: i32) -> (i32, i32) {
    %c0_i32 = arith.constant 0 : i32
    %c0_i32_0 = arith.constant 0 : i32
    %c0_i32_1 = arith.constant 0 : i32
    return %c0_i32, %c0_i32_0 : i32, i32
  }
  func.func @transform_4(%arg0: i32) -> (i32, i32) {
    %c0_i32 = arith.constant 0 : i32
    %c0_i32_0 = arith.constant 0 : i32
    %c0_i32_1 = arith.constant 0 : i32
    return %c0_i32, %c0_i32_0 : i32, i32
  }
  func.func @transform_5(%arg0: i32) -> (i32, i32) {
    %c0_i32 = arith.constant 0 : i32
    %c0_i32_0 = arith.constant 0 : i32
    %c0_i32_1 = arith.constant 0 : i32
    return %c0_i32, %c0_i32_0 : i32, i32
  }
  func.func @transform_6(%arg0: i32) -> (i32, i32) {
    %c0_i32 = arith.constant 0 : i32
    %c0_i32_0 = arith.constant 0 : i32
    %c0_i32_1 = arith.constant 0 : i32
    return %c0_i32, %c0_i32_0 : i32, i32
  }
  func.func @transform_7(%arg0: i32) -> (i32, i32) {
    %c0_i32 = arith.constant 0 : i32
    %c0_i32_0 = arith.constant 0 : i32
    %c0_i32_1 = arith.constant 0 : i32
    return %c0_i32, %c0_i32_0 : i32, i32
  }
  func.func @transform_8(%arg0: i32) -> (i32, i32) {
    %c0_i32 = arith.constant 0 : i32
    %c0_i32_0 = arith.constant 0 : i32
    return %arg0, %c0_i32 : i32, i32
  }
  func.func @transform_9(%arg0: i32) -> (i32, i32) {
    %c0_i32 = arith.constant 0 : i32
    %c0_i32_0 = arith.constant 0 : i32
    return %arg0, %c0_i32 : i32, i32
  }
  func.func @transform_10(%arg0: i32) -> (i32, i32) {
    %c0_i32 = arith.constant 0 : i32
    %c0_i32_0 = arith.constant 0 : i32
    return %arg0, %c0_i32 : i32, i32
  }
}

</mosaic_0001>

<llo_original>
// kernel: lstm_attention_forward.1
$region0: #{lstm_attention_forward.1}
  #allocation0 [shape = 'u32[]', space=smem, size = 0x4, offset = 0x4, fixed_abs, tag = 'smem constant byte address 0x4 - core index']
  #allocation1 [shape = 'u32[72,128]{1,0:T(1,128)}', space=vmem, size = 0x9000, scoped, tag = 'internal scratch']
  #allocation2 [shape = 'f32[8,128]{1,0:T(8,128)}', space=vmem, size = 0x1000, scoped, tag = 'scratch operand']
  #allocation3 [shape = 'f32[8,128]{1,0:T(8,128)}', space=vmem, size = 0x1000, scoped, tag = 'scratch operand']
  %s0 = inlined_call_operand.vmem [shape: bf16[8,8,8], index: 0, kind: input, shape index: {}]
  %s1 = inlined_call_operand.vmem [shape: bf16[8,512], index: 1, kind: input, shape index: {}]
  %s2 = inlined_call_operand.vmem [shape: bf16[128,512], index: 2, kind: input, shape index: {}]
  %s3 = inlined_call_operand.vmem [shape: bf16[128,128], index: 3, kind: input, shape index: {}]
  %s4 = inlined_call_operand.vmem [shape: f32[1,128], index: 4, kind: input, shape index: {}]
  %s5 = inlined_call_operand.vmem [shape: f32[2,8], index: 5, kind: input, shape index: {}]
  %s6 = inlined_call_operand.vmem [shape: f32[2,8], index: 6, kind: input, shape index: {}]
  %s7 = inlined_call_operand.vmem [shape: f32[8,2], index: 7, kind: input, shape index: {}]
  %s8 = inlined_call_operand.hbm [shape: f32[2,128], index: 8, kind: output, shape index: {0}]
  %s9 = inlined_call_operand.hbm [shape: f32[2,128], index: 9, kind: output, shape index: {1}]
  %s10 = inlined_call_operand.hbm [shape: f32[2,128], index: 10, kind: output, shape index: {2}]
  %11 = xla_tuple %s8, %s9, %s10
  %s12 = sld [smem:[#allocation0]]
  $region58: #{lstm_attention_forward.1} parent=0
    _
  %s14 = ssub.s32 1, %s12
  %s15 = scalar_select 0, %s14, %s12
  $region1: #{lstm_attention_forward.1} parent=0
    #allocation4 [shape = 'u8[1024]{0}', space=vmem, size = 0x400, scoped, tag = 'output window, operand 0, single buffered']
    #allocation5 [shape = 's32[1]{0}', space=sflag, size = 0x4, scoped, tag = 'scoped memory for lstm_attention_forward.1']
    #allocation6 [shape = 'u8[1024]{0}', space=vmem, size = 0x400, scoped, tag = 'output window, operand 1, single buffered']
    #allocation7 [shape = 's32[1]{0}', space=sflag, size = 0x4, scoped, tag = 'scoped memory for lstm_attention_forward.1']
    #allocation8 [shape = 'u8[1024]{0}', space=vmem, size = 0x400, scoped, tag = 'output window, operand 2, single buffered']
    %16 = vsyncpa [#allocation5], 0
    %17 = vsyncpa [#allocation7], 0
    // Predicated region
    $region2: #{lstm_attention_forward.1} parent=1 // pred_check
      _
    $region3: #{lstm_attention_forward.1} parent=1 // pred_check_branch
      %19 = sbr.rel (0) target = $region5
    $region4: #{lstm_attention_forward.1} parent=1 // pred_region
      _
    $region5: #{lstm_attention_forward.1} parent=1 // pred_fallthru
      _
    // Predicated region
    $region6: #{lstm_attention_forward.1} parent=1 // pred_check
      _
    $region7: #{lstm_attention_forward.1} parent=1 // pred_check_branch
      %21 = sbr.rel (0) target = $region9
    $region8: #{lstm_attention_forward.1} parent=1 // pred_region
      _
    $region9: #{lstm_attention_forward.1} parent=1 // pred_fallthru
      _
    // Predicated region
    $region10: #{lstm_attention_forward.1} parent=1 // pred_check
      _
    $region11: #{lstm_attention_forward.1} parent=1 // pred_check_branch
      %23 = sbr.rel (0) target = $region13
    $region12: #{lstm_attention_forward.1} parent=1 // pred_region
      _
    $region13: #{lstm_attention_forward.1} parent=1 // pred_fallthru
      _
    // Predicated region
    $region14: #{lstm_attention_forward.1} parent=1 // pred_check
      _
    $region15: #{lstm_attention_forward.1} parent=1 // pred_check_branch
      %25 = sbr.rel (0) target = $region17
    $region16: #{lstm_attention_forward.1} parent=1 // pred_region
      _
    $region17: #{lstm_attention_forward.1} parent=1 // pred_fallthru
      _
    // Predicated region
    $region18: #{lstm_attention_forward.1} parent=1 // pred_check
      _
    $region19: #{lstm_attention_forward.1} parent=1 // pred_check_branch
      %27 = sbr.rel (0) target = $region21
    $region20: #{lstm_attention_forward.1} parent=1 // pred_region
      _
    $region21: #{lstm_attention_forward.1} parent=1 // pred_fallthru
      _
    // Predicated region
    $region22: #{lstm_attention_forward.1} parent=1 // pred_check
      _
    $region23: #{lstm_attention_forward.1} parent=1 // pred_check_branch
      %29 = sbr.rel (0) target = $region25
    $region24: #{lstm_attention_forward.1} parent=1 // pred_region
      _
    $region25: #{lstm_attention_forward.1} parent=1 // pred_fallthru
      _
    // Predicated region
    $region26: #{lstm_attention_forward.1} parent=1 // pred_check
      _
    $region27: #{lstm_attention_forward.1} parent=1 // pred_check_branch
      %31 = sbr.rel (0) target = $region29
    $region28: #{lstm_attention_forward.1} parent=1 // pred_region
      _
    $region29: #{lstm_attention_forward.1} parent=1 // pred_fallthru
      _
    // Predicated region
    $region30: #{lstm_attention_forward.1} parent=1 // pred_check
      _
    $region31: #{lstm_attention_forward.1} parent=1 // pred_check_branch
      %33 = sbr.rel (0) target = $region33
    $region32: #{lstm_attention_forward.1} parent=1 // pred_region
      _
    $region33: #{lstm_attention_forward.1} parent=1 // pred_fallthru
      _
    %35 = vst [vmem:[#allocation2] sm:$0xff] 0.0
    %36 = vst [vmem:[#allocation3] sm:$0xff] 0.0
    %v37 = vld [vmem:[%s0] sm:$0xf]
    %v38 = vld [vmem:[%s1] sm:$0xff]
    %v39 = vld [vmem:[%s1 + $0x8] sm:$0xff]
    %v40 = vld [vmem:[#allocation2] sm:$0xff]
    %v41 = vpack.c.bf16 %v40, %v40
    %v42 = vld [vmem:[%s2] sm:$0xff]
    %v43 = vld [vmem:[%s2 + $0x8] sm:$0xff]
    %v44 = vld [vmem:[%s2 + $0x10] sm:$0xff]
    %v45 = vld [vmem:[%s2 + $0x18] sm:$0xff]
    %v46 = vld [vmem:[%s2 + $0x20] sm:$0xff]
    %v47 = vld [vmem:[%s2 + $0x28] sm:$0xff]
    %v48 = vld [vmem:[%s2 + $0x30] sm:$0xff]
    %v49 = vld [vmem:[%s2 + $0x38] sm:$0xff]
    %v50 = vld [vmem:[%s2 + $0x40] sm:$0xff]
    %v51 = vld [vmem:[%s2 + $0x48] sm:$0xff]
    %v52 = vld [vmem:[%s2 + $0x50] sm:$0xff]
    %v53 = vld [vmem:[%s2 + $0x58] sm:$0xff]
    %v54 = vld [vmem:[%s2 + $0x60] sm:$0xff]
    %v55 = vld [vmem:[%s2 + $0x68] sm:$0xff]
    %v56 = vld [vmem:[%s2 + $0x70] sm:$0xff]
    %v57 = vld [vmem:[%s2 + $0x78] sm:$0xff]
    %v58 = vld [vmem:[%s2 + $0x80] sm:$0xff]
    %v59 = vld [vmem:[%s2 + $0x88] sm:$0xff]
    %v60 = vld [vmem:[%s2 + $0x90] sm:$0xff]
    %v61 = vld [vmem:[%s2 + $0x98] sm:$0xff]
    %v62 = vld [vmem:[%s2 + $0xa0] sm:$0xff]
    %v63 = vld [vmem:[%s2 + $0xa8] sm:$0xff]
    %v64 = vld [vmem:[%s2 + $0xb0] sm:$0xff]
    %v65 = vld [vmem:[%s2 + $0xb8] sm:$0xff]
    %v66 = vld [vmem:[%s2 + $0xc0] sm:$0xff]
    %v67 = vld [vmem:[%s2 + $0xc8] sm:$0xff]
    %v68 = vld [vmem:[%s2 + $0xd0] sm:$0xff]
    %v69 = vld [vmem:[%s2 + $0xd8] sm:$0xff]
    %v70 = vld [vmem:[%s2 + $0xe0] sm:$0xff]
    %v71 = vld [vmem:[%s2 + $0xe8] sm:$0xff]
    %v72 = vld [vmem:[%s2 + $0xf0] sm:$0xff]
    %v73 = vld [vmem:[%s2 + $0xf8] sm:$0xff]
    %v106 = vunpack.c.l.b16 %v42
    %v107 = vunpack.c.h.b16 %v42
    %v108 = vunpack.c.l.b16 %v43
    %v109 = vunpack.c.h.b16 %v43
    %v110 = vunpack.c.l.b16 %v44
    %v111 = vunpack.c.h.b16 %v44
    %v112 = vunpack.c.l.b16 %v45
    %v113 = vunpack.c.h.b16 %v45
    %v114 = vunpack.c.l.b16 %v46
    %v115 = vunpack.c.h.b16 %v46
    %v116 = vunpack.c.l.b16 %v47
    %v117 = vunpack.c.h.b16 %v47
    %v118 = vunpack.c.l.b16 %v48
    %v119 = vunpack.c.h.b16 %v48
    %v120 = vunpack.c.l.b16 %v49
    %v121 = vunpack.c.h.b16 %v49
    %v122 = vunpack.c.l.b16 %v50
    %v123 = vunpack.c.h.b16 %v50
    %v124 = vunpack.c.l.b16 %v51
    %v125 = vunpack.c.h.b16 %v51
    %v126 = vunpack.c.l.b16 %v52
    %v127 = vunpack.c.h.b16 %v52
    %v128 = vunpack.c.l.b16 %v53
    %v129 = vunpack.c.h.b16 %v53
    %v130 = vunpack.c.l.b16 %v54
    %v131 = vunpack.c.h.b16 %v54
    %v132 = vunpack.c.l.b16 %v55
    %v133 = vunpack.c.h.b16 %v55
    %v134 = vunpack.c.l.b16 %v56
    %v135 = vunpack.c.h.b16 %v56
    %v136 = vunpack.c.l.b16 %v57
    %v137 = vunpack.c.h.b16 %v57
    %v138 = vunpack.c.l.b16 %v58
    %v139 = vunpack.c.h.b16 %v58
    %v140 = vunpack.c.l.b16 %v59
    %v141 = vunpack.c.h.b16 %v59
    %v142 = vunpack.c.l.b16 %v60
    %v143 = vunpack.c.h.b16 %v60
    %v144 = vunpack.c.l.b16 %v61
    %v145 = vunpack.c.h.b16 %v61
    %v146 = vunpack.c.l.b16 %v62
    %v147 = vunpack.c.h.b16 %v62
    %v148 = vunpack.c.l.b16 %v63
    %v149 = vunpack.c.h.b16 %v63
    %v150 = vunpack.c.l.b16 %v64
    %v151 = vunpack.c.h.b16 %v64
    %v152 = vunpack.c.l.b16 %v65
    %v153 = vunpack.c.h.b16 %v65
    %v154 = vunpack.c.l.b16 %v66
    %v155 = vunpack.c.h.b16 %v66
    %v156 = vunpack.c.l.b16 %v67
    %v157 = vunpack.c.h.b16 %v67
    %v158 = vunpack.c.l.b16 %v68
    %v159 = vunpack.c.h.b16 %v68
    %v160 = vunpack.c.l.b16 %v69
    %v161 = vunpack.c.h.b16 %v69
    %v162 = vunpack.c.l.b16 %v70
    %v163 = vunpack.c.h.b16 %v70
    %v164 = vunpack.c.l.b16 %v71
    %v165 = vunpack.c.h.b16 %v71
    %v166 = vunpack.c.l.b16 %v72
    %v167 = vunpack.c.h.b16 %v72
    %v168 = vunpack.c.l.b16 %v73
    %v169 = vunpack.c.h.b16 %v73
    %v170 = vpack.c.b16 %v110, %v106
    %v171 = vpack.c.b16 %v111, %v107
    %v172 = vpack.c.b16 %v112, %v108
    %v173 = vpack.c.b16 %v113, %v109
    %v174 = vpack.c.b16 %v118, %v114
    %v175 = vpack.c.b16 %v119, %v115
    %v176 = vpack.c.b16 %v120, %v116
    %v177 = vpack.c.b16 %v121, %v117
    %v178 = vpack.c.b16 %v126, %v122
    %v179 = vpack.c.b16 %v127, %v123
    %v180 = vpack.c.b16 %v128, %v124
    %v181 = vpack.c.b16 %v129, %v125
    %v182 = vpack.c.b16 %v134, %v130
    %v183 = vpack.c.b16 %v135, %v131
    %v184 = vpack.c.b16 %v136, %v132
    %v185 = vpack.c.b16 %v137, %v133
    %v186 = vpack.c.b16 %v142, %v138
    %v187 = vpack.c.b16 %v143, %v139
    %v188 = vpack.c.b16 %v144, %v140
    %v189 = vpack.c.b16 %v145, %v141
    %v190 = vpack.c.b16 %v150, %v146
    %v191 = vpack.c.b16 %v151, %v147
    %v192 = vpack.c.b16 %v152, %v148
    %v193 = vpack.c.b16 %v153, %v149
    %v194 = vpack.c.b16 %v158, %v154
    %v195 = vpack.c.b16 %v159, %v155
    %v196 = vpack.c.b16 %v160, %v156
    %v197 = vpack.c.b16 %v161, %v157
    %v198 = vpack.c.b16 %v166, %v162
    %v199 = vpack.c.b16 %v167, %v163
    %v200 = vpack.c.b16 %v168, %v164
    %v201 = vpack.c.b16 %v169, %v165
    %234 = vmatpush.bf16.msra.mxu0 %v198
    %235 = vmatpush.bf16.msra.mxu0 %v194
    %236 = vmatpush.bf16.msra.mxu0 %v190
    %237 = vmatpush.bf16.msra.mxu0 %v186
    %238 = vmatpush.bf16.msra.mxu0 %v182
    %239 = vmatpush.bf16.msra.mxu0 %v178
    %240 = vmatpush.bf16.msra.mxu0 %v174
    %241 = vmatpush.bf16.msra.mxu0 %v170
    %242 = vmatmul.bf16.gmra.mxu0 %v41
    %v243 = vpop.f32.mrf.mxu0
    %v244 = vadd.f32 0.0, %v243
    %v245 = vpop.f32.mrf.mxu0
    %246 = vdwg.mxu0
    %247 = vmatpush.bf16.msra.mxu0 %v199
    %248 = vmatpush.bf16.msra.mxu0 %v195
    %249 = vmatpush.bf16.msra.mxu0 %v191
    %250 = vmatpush.bf16.msra.mxu0 %v187
    %251 = vmatpush.bf16.msra.mxu0 %v183
    %252 = vmatpush.bf16.msra.mxu0 %v179
    %253 = vmatpush.bf16.msra.mxu0 %v175
    %254 = vmatpush.bf16.msra.mxu0 %v171
    %255 = vmatmul.bf16.gmra.mxu0 %v41
    %v256 = vpop.f32.mrf.mxu0
    %v257 = vadd.f32 0.0, %v256
    %v258 = vpop.f32.mrf.mxu0
    %259 = vdwg.mxu0
    %260 = vmatpush.bf16.msra.mxu0 %v200
    %261 = vmatpush.bf16.msra.mxu0 %v196
    %262 = vmatpush.bf16.msra.mxu0 %v192
    %263 = vmatpush.bf16.msra.mxu0 %v188
    %264 = vmatpush.bf16.msra.mxu0 %v184
    %265 = vmatpush.bf16.msra.mxu0 %v180
    %266 = vmatpush.bf16.msra.mxu0 %v176
    %267 = vmatpush.bf16.msra.mxu0 %v172
    %268 = vmatmul.bf16.gmra.mxu0 %v41
    %v269 = vpop.f32.mrf.mxu0
    %v270 = vadd.f32 0.0, %v269
    %v271 = vpop.f32.mrf.mxu0
    %272 = vdwg.mxu0
    %273 = vmatpush.bf16.msra.mxu0 %v201
    %274 = vmatpush.bf16.msra.mxu0 %v197
    %275 = vmatpush.bf16.msra.mxu0 %v193
    %276 = vmatpush.bf16.msra.mxu0 %v189
    %277 = vmatpush.bf16.msra.mxu0 %v185
    %278 = vmatpush.bf16.msra.mxu0 %v181
    %279 = vmatpush.bf16.msra.mxu0 %v177
    %280 = vmatpush.bf16.msra.mxu0 %v173
    %281 = vmatmul.bf16.gmra.mxu0 %v41
    %v282 = vpop.f32.mrf.mxu0
    %v283 = vadd.f32 0.0, %v282
    %v284 = vpop.f32.mrf.mxu0
    %285 = vdwg.mxu0
    %v288 = vunpack.c.l.b16 %v38
    %v289 = vunpack.c.h.b16 %v38
    %v290 = vunpack.c.l.b16 %v39
    %v291 = vunpack.c.h.b16 %v39
    %v292 = vpack.c.b16 %v288, %v288
    %v293 = vpack.c.b16 %v289, %v289
    %v294 = vpack.c.b16 %v290, %v290
    %v295 = vpack.c.b16 %v291, %v291
    %vm296 = vcmask 64512
    %v298 = vsel %vm296, %v37, 0
    %vm300 = vcmask 1043456
    %v302 = vsel %vm300, %v292, 0
    %v305 = vsel %vm300, %v293, 0
    %v308 = vsel %vm300, %v294, 0
    %v311 = vsel %vm300, %v295, 0
    %313 = vmatpush.bf16.msra.mxu0 0
    %314 = vmatpush.bf16.msra.mxu0 0
    %315 = vmatpush.bf16.msra.mxu0 0
    %316 = vmatpush.bf16.msra.mxu0 0
    %317 = vmatpush.bf16.msra.mxu0 0
    %318 = vmatpush.bf16.msra.mxu0 0
    %319 = vmatpush.bf16.msra.mxu0 0
    %320 = vmatpush.bf16.msra.mxu0 %v302
    %321 = vmatmul.bf16.gmra.mxu0 %v298
    %v322 = vpop.f32.mrf.mxu0
    %v323 = vadd.f32 %v244, %v322
    %v324 = vpop.f32.mrf.mxu0
    %325 = vdwg.mxu0
    %326 = vmatpush.bf16.msra.mxu0 0
    %327 = vmatpush.bf16.msra.mxu0 0
    %328 = vmatpush.bf16.msra.mxu0 0
    %329 = vmatpush.bf16.msra.mxu0 0
    %330 = vmatpush.bf16.msra.mxu0 0
    %331 = vmatpush.bf16.msra.mxu0 0
    %332 = vmatpush.bf16.msra.mxu0 0
    %333 = vmatpush.bf16.msra.mxu0 %v305
    %334 = vmatmul.bf16.gmra.mxu0 %v298
    %v335 = vpop.f32.mrf.mxu0
    %v336 = vadd.f32 %v257, %v335
    %v337 = vpop.f32.mrf.mxu0
    %338 = vdwg.mxu0
    %339 = vmatpush.bf16.msra.mxu0 0
    %340 = vmatpush.bf16.msra.mxu0 0
    %341 = vmatpush.bf16.msra.mxu0 0
    %342 = vmatpush.bf16.msra.mxu0 0
    %343 = vmatpush.bf16.msra.mxu0 0
    %344 = vmatpush.bf16.msra.mxu0 0
    %345 = vmatpush.bf16.msra.mxu0 0
    %346 = vmatpush.bf16.msra.mxu0 %v308
    %347 = vmatmul.bf16.gmra.mxu0 %v298
    %v348 = vpop.f32.mrf.mxu0
    %v349 = vadd.f32 %v270, %v348
    %v350 = vpop.f32.mrf.mxu0
    %351 = vdwg.mxu0
    %352 = vmatpush.bf16.msra.mxu0 0
    %353 = vmatpush.bf16.msra.mxu0 0
    %354 = vmatpush.bf16.msra.mxu0 0
    %355 = vmatpush.bf16.msra.mxu0 0
    %356 = vmatpush.bf16.msra.mxu0 0
    %357 = vmatpush.bf16.msra.mxu0 0
    %358 = vmatpush.bf16.msra.mxu0 0
    %359 = vmatpush.bf16.msra.mxu0 %v311
    %360 = vmatmul.bf16.gmra.mxu0 %v298
    %v361 = vpop.f32.mrf.mxu0
    %v362 = vadd.f32 %v283, %v361
    %v363 = vpop.f32.mrf.mxu0
    %364 = vdwg.mxu0
    %v365 = vxor.u32 %v323, 2147483648
    %v366 = vmul.f32 %v365, 1.442695
    %v367 = vpow.pop %v366
    %v368 = vadd.f32 %v367, 1.0
    %v369 = vrcp.pop %v368
    %v370 = vmul.f32 %v368, %v369
    %v371 = vsub.f32 1.0, %v370
    %v372 = vmul.f32 %v369, %v371
    %v373 = vadd.f32 %v369, %v372
    %vm374 = vweird.f32 %v368
    %vm375 = vweird.f32 %v369
    %vm376 = vmor %vm374, %vm375
    %v377 = vsel %vm376, %v369, %v373
    %v378 = vand.u32 2147483647, %v368
    %vm379 = vcmp.eq.f32.partialorder %v378, 8.507059e+37
    %v380 = vand.u32 %v368, 2147483648
    %v381 = vor.u32 1.1754944e-38, %v380
    %v382 = vsel %vm379, %v381, %v377
    %v383 = vmul.f32 1.0, %v382
    %v384 = vxor.u32 %v336, 2147483648
    %v385 = vmul.f32 %v384, 1.442695
    %v386 = vpow.pop %v385
    %v387 = vadd.f32 %v386, 1.0
    %v388 = vrcp.pop %v387
    %v389 = vmul.f32 %v387, %v388
    %v390 = vsub.f32 1.0, %v389
    %v391 = vmul.f32 %v388, %v390
    %v392 = vadd.f32 %v388, %v391
    %vm393 = vweird.f32 %v387
    %vm394 = vweird.f32 %v388
    %vm395 = vmor %vm393, %vm394
    %v396 = vsel %vm395, %v388, %v392
    %v397 = vand.u32 2147483647, %v387
    %vm398 = vcmp.eq.f32.partialorder %v397, 8.507059e+37
    %v399 = vand.u32 %v387, 2147483648
    %v400 = vor.u32 1.1754944e-38, %v399
    %v401 = vsel %vm398, %v400, %v396
    %v402 = vmul.f32 1.0, %v401
    %v403 = vtanh.pop %v349
    %v404 = vxor.u32 %v362, 2147483648
    %v405 = vmul.f32 %v404, 1.442695
    %v406 = vpow.pop %v405
    %v407 = vadd.f32 %v406, 1.0
    %v408 = vrcp.pop %v407
    %v409 = vmul.f32 %v407, %v408
    %v410 = vsub.f32 1.0, %v409
    %v411 = vmul.f32 %v408, %v410
    %v412 = vadd.f32 %v408, %v411
    %vm413 = vweird.f32 %v407
    %vm414 = vweird.f32 %v408
    %vm415 = vmor %vm413, %vm414
    %v416 = vsel %vm415, %v408, %v412
    %v417 = vand.u32 2147483647, %v407
    %vm418 = vcmp.eq.f32.partialorder %v417, 8.507059e+37
    %v419 = vand.u32 %v407, 2147483648
    %v420 = vor.u32 1.1754944e-38, %v419
    %v421 = vsel %vm418, %v420, %v416
    %v422 = vmul.f32 1.0, %v421
    %v423 = vld [vmem:[#allocation3] sm:$0xff]
    %v424 = vmul.f32 %v402, %v423
    %v425 = vmul.f32 %v383, %v403
    %v426 = vadd.f32 %v424, %v425
    %v427 = vtanh.pop %v426
    %v428 = vmul.f32 %v422, %v427
    %429 = vst [vmem:[#allocation2] sm:$0xff] %v428
    %430 = vst [vmem:[#allocation3] sm:$0xff] %v426
    %s431 = scalar_lea.vmem %s0, 4
    %v432 = vld [vmem:[%s431] sm:$0xf]
    %v433 = vld [vmem:[%s1] sm:$0xff]
    %v434 = vld [vmem:[%s1 + $0x8] sm:$0xff]
    %v435 = vld [vmem:[#allocation2] sm:$0xff]
    %v436 = vpack.c.bf16 %v435, %v435
    %v437 = vld [vmem:[%s2] sm:$0xff]
    %v438 = vld [vmem:[%s2 + $0x8] sm:$0xff]
    %v439 = vld [vmem:[%s2 + $0x10] sm:$0xff]
    %v440 = vld [vmem:[%s2 + $0x18] sm:$0xff]
    %v441 = vld [vmem:[%s2 + $0x20] sm:$0xff]
    %v442 = vld [vmem:[%s2 + $0x28] sm:$0xff]
    %v443 = vld [vmem:[%s2 + $0x30] sm:$0xff]
    %v444 = vld [vmem:[%s2 + $0x38] sm:$0xff]
    %v445 = vld [vmem:[%s2 + $0x40] sm:$0xff]
    %v446 = vld [vmem:[%s2 + $0x48] sm:$0xff]
    %v447 = vld [vmem:[%s2 + $0x50] sm:$0xff]
    %v448 = vld [vmem:[%s2 + $0x58] sm:$0xff]
    %v449 = vld [vmem:[%s2 + $0x60] sm:$0xff]
    %v450 = vld [vmem:[%s2 + $0x68] sm:$0xff]
    %v451 = vld [vmem:[%s2 + $0x70] sm:$0xff]
    %v452 = vld [vmem:[%s2 + $0x78] sm:$0xff]
    %v453 = vld [vmem:[%s2 + $0x80] sm:$0xff]
    %v454 = vld [vmem:[%s2 + $0x88] sm:$0xff]
    %v455 = vld [vmem:[%s2 + $0x90] sm:$0xff]
    %v456 = vld [vmem:[%s2 + $0x98] sm:$0xff]
    %v457 = vld [vmem:[%s2 + $0xa0] sm:$0xff]
    %v458 = vld [vmem:[%s2 + $0xa8] sm:$0xff]
    %v459 = vld [vmem:[%s2 + $0xb0] sm:$0xff]
    %v460 = vld [vmem:[%s2 + $0xb8] sm:$0xff]
    %v461 = vld [vmem:[%s2 + $0xc0] sm:$0xff]
    %v462 = vld [vmem:[%s2 + $0xc8] sm:$0xff]
    %v463 = vld [vmem:[%s2 + $0xd0] sm:$0xff]
    %v464 = vld [vmem:[%s2 + $0xd8] sm:$0xff]
    %v465 = vld [vmem:[%s2 + $0xe0] sm:$0xff]
    %v466 = vld [vmem:[%s2 + $0xe8] sm:$0xff]
    %v467 = vld [vmem:[%s2 + $0xf0] sm:$0xff]
    %v468 = vld [vmem:[%s2 + $0xf8] sm:$0xff]
    %v501 = vunpack.c.l.b16 %v437
    %v502 = vunpack.c.h.b16 %v437
    %v503 = vunpack.c.l.b16 %v438
    %v504 = vunpack.c.h.b16 %v438
    %v505 = vunpack.c.l.b16 %v439
    %v506 = vunpack.c.h.b16 %v439
    %v507 = vunpack.c.l.b16 %v440
    %v508 = vunpack.c.h.b16 %v440
    %v509 = vunpack.c.l.b16 %v441
    %v510 = vunpack.c.h.b16 %v441
    %v511 = vunpack.c.l.b16 %v442
    %v512 = vunpack.c.h.b16 %v442
    %v513 = vunpack.c.l.b16 %v443
    %v514 = vunpack.c.h.b16 %v443
    %v515 = vunpack.c.l.b16 %v444
    %v516 = vunpack.c.h.b16 %v444
    %v517 = vunpack.c.l.b16 %v445
    %v518 = vunpack.c.h.b16 %v445
    %v519 = vunpack.c.l.b16 %v446
    %v520 = vunpack.c.h.b16 %v446
    %v521 = vunpack.c.l.b16 %v447
    %v522 = vunpack.c.h.b16 %v447
    %v523 = vunpack.c.l.b16 %v448
    %v524 = vunpack.c.h.b16 %v448
    %v525 = vunpack.c.l.b16 %v449
    %v526 = vunpack.c.h.b16 %v449
    %v527 = vunpack.c.l.b16 %v450
    %v528 = vunpack.c.h.b16 %v450
    %v529 = vunpack.c.l.b16 %v451
    %v530 = vunpack.c.h.b16 %v451
    %v531 = vunpack.c.l.b16 %v452
    %v532 = vunpack.c.h.b16 %v452
    %v533 = vunpack.c.l.b16 %v453
    %v534 = vunpack.c.h.b16 %v453
    %v535 = vunpack.c.l.b16 %v454
    %v536 = vunpack.c.h.b16 %v454
    %v537 = vunpack.c.l.b16 %v455
    %v538 = vunpack.c.h.b16 %v455
    %v539 = vunpack.c.l.b16 %v456
    %v540 = vunpack.c.h.b16 %v456
    %v541 = vunpack.c.l.b16 %v457
    %v542 = vunpack.c.h.b16 %v457
    %v543 = vunpack.c.l.b16 %v458
    %v544 = vunpack.c.h.b16 %v458
    %v545 = vunpack.c.l.b16 %v459
    %v546 = vunpack.c.h.b16 %v459
    %v547 = vunpack.c.l.b16 %v460
    %v548 = vunpack.c.h.b16 %v460
    %v549 = vunpack.c.l.b16 %v461
    %v550 = vunpack.c.h.b16 %v461
    %v551 = vunpack.c.l.b16 %v462
    %v552 = vunpack.c.h.b16 %v462
    %v553 = vunpack.c.l.b16 %v463
    %v554 = vunpack.c.h.b16 %v463
    %v555 = vunpack.c.l.b16 %v464
    %v556 = vunpack.c.h.b16 %v464
    %v557 = vunpack.c.l.b16 %v465
    %v558 = vunpack.c.h.b16 %v465
    %v559 = vunpack.c.l.b16 %v466
    %v560 = vunpack.c.h.b16 %v466
    %v561 = vunpack.c.l.b16 %v467
    %v562 = vunpack.c.h.b16 %v467
    %v563 = vunpack.c.l.b16 %v468
    %v564 = vunpack.c.h.b16 %v468
    %v565 = vpack.c.b16 %v505, %v501
    %v566 = vpack.c.b16 %v506, %v502
    %v567 = vpack.c.b16 %v507, %v503
    %v568 = vpack.c.b16 %v508, %v504
    %v569 = vpack.c.b16 %v513, %v509
    %v570 = vpack.c.b16 %v514, %v510
    %v571 = vpack.c.b16 %v515, %v511
    %v572 = vpack.c.b16 %v516, %v512
    %v573 = vpack.c.b16 %v521, %v517
    %v574 = vpack.c.b16 %v522, %v518
    %v575 = vpack.c.b16 %v523, %v519
    %v576 = vpack.c.b16 %v524, %v520
    %v577 = vpack.c.b16 %v529, %v525
    %v578 = vpack.c.b16 %v530, %v526
    %v579 = vpack.c.b16 %v531, %v527
    %v580 = vpack.c.b16 %v532, %v528
    %v581 = vpack.c.b16 %v537, %v533
    %v582 = vpack.c.b16 %v538, %v534
    %v583 = vpack.c.b16 %v539, %v535
    %v584 = vpack.c.b16 %v540, %v536
    %v585 = vpack.c.b16 %v545, %v541
    %v586 = vpack.c.b16 %v546, %v542
    %v587 = vpack.c.b16 %v547, %v543
    %v588 = vpack.c.b16 %v548, %v544
    %v589 = vpack.c.b16 %v553, %v549
    %v590 = vpack.c.b16 %v554, %v550
    %v591 = vpack.c.b16 %v555, %v551
    %v592 = vpack.c.b16 %v556, %v552
    %v593 = vpack.c.b16 %v561, %v557
    %v594 = vpack.c.b16 %v562, %v558
    %v595 = vpack.c.b16 %v563, %v559
    %v596 = vpack.c.b16 %v564, %v560
    %629 = vmatpush.bf16.msra.mxu0 %v593
    %630 = vmatpush.bf16.msra.mxu0 %v589
    %631 = vmatpush.bf16.msra.mxu0 %v585
    %632 = vmatpush.bf16.msra.mxu0 %v581
    %633 = vmatpush.bf16.msra.mxu0 %v577
    %634 = vmatpush.bf16.msra.mxu0 %v573
    %635 = vmatpush.bf16.msra.mxu0 %v569
    %636 = vmatpush.bf16.msra.mxu0 %v565
    %637 = vmatmul.bf16.gmra.mxu0 %v436
    %v638 = vpop.f32.mrf.mxu0
    %v639 = vadd.f32 0.0, %v638
    %v640 = vpop.f32.mrf.mxu0
    %641 = vdwg.mxu0
    %642 = vmatpush.bf16.msra.mxu0 %v594
    %643 = vmatpush.bf16.msra.mxu0 %v590
    %644 = vmatpush.bf16.msra.mxu0 %v586
    %645 = vmatpush.bf16.msra.mxu0 %v582
    %646 = vmatpush.bf16.msra.mxu0 %v578
    %647 = vmatpush.bf16.msra.mxu0 %v574
    %648 = vmatpush.bf16.msra.mxu0 %v570
    %649 = vmatpush.bf16.msra.mxu0 %v566
    %650 = vmatmul.bf16.gmra.mxu0 %v436
    %v651 = vpop.f32.mrf.mxu0
    %v652 = vadd.f32 0.0, %v651
    %v653 = vpop.f32.mrf.mxu0
    %654 = vdwg.mxu0
    %655 = vmatpush.bf16.msra.mxu0 %v595
    %656 = vmatpush.bf16.msra.mxu0 %v591
    %657 = vmatpush.bf16.msra.mxu0 %v587
    %658 = vmatpush.bf16.msra.mxu0 %v583
    %659 = vmatpush.bf16.msra.mxu0 %v579
    %660 = vmatpush.bf16.msra.mxu0 %v575
    %661 = vmatpush.bf16.msra.mxu0 %v571
    %662 = vmatpush.bf16.msra.mxu0 %v567
    %663 = vmatmul.bf16.gmra.mxu0 %v436
    %v664 = vpop.f32.mrf.mxu0
    %v665 = vadd.f32 0.0, %v664
    %v666 = vpop.f32.mrf.mxu0
    %667 = vdwg.mxu0
    %668 = vmatpush.bf16.msra.mxu0 %v596
    %669 = vmatpush.bf16.msra.mxu0 %v592
    %670 = vmatpush.bf16.msra.mxu0 %v588
    %671 = vmatpush.bf16.msra.mxu0 %v584
    %672 = vmatpush.bf16.msra.mxu0 %v580
    %673 = vmatpush.bf16.msra.mxu0 %v576
    %674 = vmatpush.bf16.msra.mxu0 %v572
    %675 = vmatpush.bf16.msra.mxu0 %v568
    %676 = vmatmul.bf16.gmra.mxu0 %v436
    %v677 = vpop.f32.mrf.mxu0
    %v678 = vadd.f32 0.0, %v677
    %v679 = vpop.f32.mrf.mxu0
    %680 = vdwg.mxu0
    %v683 = vunpack.c.l.b16 %v433
    %v684 = vunpack.c.h.b16 %v433
    %v685 = vunpack.c.l.b16 %v434
    %v686 = vunpack.c.h.b16 %v434
    %v687 = vpack.c.b16 %v683, %v683
    %v688 = vpack.c.b16 %v684, %v684
    %v689 = vpack.c.b16 %v685, %v685
    %v690 = vpack.c.b16 %v686, %v686
    %v692 = vsel %vm296, %v432, 0
    %v695 = vsel %vm300, %v687, 0
    %v698 = vsel %vm300, %v688, 0
    %v701 = vsel %vm300, %v689, 0
    %v704 = vsel %vm300, %v690, 0
    %706 = vmatpush.bf16.msra.mxu0 0
    %707 = vmatpush.bf16.msra.mxu0 0
    %708 = vmatpush.bf16.msra.mxu0 0
    %709 = vmatpush.bf16.msra.mxu0 0
    %710 = vmatpush.bf16.msra.mxu0 0
    %711 = vmatpush.bf16.msra.mxu0 0
    %712 = vmatpush.bf16.msra.mxu0 0
    %713 = vmatpush.bf16.msra.mxu0 %v695
    %714 = vmatmul.bf16.gmra.mxu0 %v692
    %v715 = vpop.f32.mrf.mxu0
    %v716 = vadd.f32 %v639, %v715
    %v717 = vpop.f32.mrf.mxu0
    %718 = vdwg.mxu0
    %719 = vmatpush.bf16.msra.mxu0 0
    %720 = vmatpush.bf16.msra.mxu0 0
    %721 = vmatpush.bf16.msra.mxu0 0
    %722 = vmatpush.bf16.msra.mxu0 0
    %723 = vmatpush.bf16.msra.mxu0 0
    %724 = vmatpush.bf16.msra.mxu0 0
    %725 = vmatpush.bf16.msra.mxu0 0
    %726 = vmatpush.bf16.msra.mxu0 %v698
    %727 = vmatmul.bf16.gmra.mxu0 %v692
    %v728 = vpop.f32.mrf.mxu0
    %v729 = vadd.f32 %v652, %v728
    %v730 = vpop.f32.mrf.mxu0
    %731 = vdwg.mxu0
    %732 = vmatpush.bf16.msra.mxu0 0
    %733 = vmatpush.bf16.msra.mxu0 0
    %734 = vmatpush.bf16.msra.mxu0 0
    %735 = vmatpush.bf16.msra.mxu0 0
    %736 = vmatpush.bf16.msra.mxu0 0
    %737 = vmatpush.bf16.msra.mxu0 0
    %738 = vmatpush.bf16.msra.mxu0 0
    %739 = vmatpush.bf16.msra.mxu0 %v701
    %740 = vmatmul.bf16.gmra.mxu0 %v692
    %v741 = vpop.f32.mrf.mxu0
    %v742 = vadd.f32 %v665, %v741
    %v743 = vpop.f32.mrf.mxu0
    %744 = vdwg.mxu0
    %745 = vmatpush.bf16.msra.mxu0 0
    %746 = vmatpush.bf16.msra.mxu0 0
    %747 = vmatpush.bf16.msra.mxu0 0
    %748 = vmatpush.bf16.msra.mxu0 0
    %749 = vmatpush.bf16.msra.mxu0 0
    %750 = vmatpush.bf16.msra.mxu0 0
    %751 = vmatpush.bf16.msra.mxu0 0
    %752 = vmatpush.bf16.msra.mxu0 %v704
    %753 = vmatmul.bf16.gmra.mxu0 %v692
    %v754 = vpop.f32.mrf.mxu0
    %v755 = vadd.f32 %v678, %v754
    %v756 = vpop.f32.mrf.mxu0
    %757 = vdwg.mxu0
    %v758 = vxor.u32 %v716, 2147483648
    %v759 = vmul.f32 %v758, 1.442695
    %v760 = vpow.pop %v759
    %v761 = vadd.f32 %v760, 1.0
    %v762 = vrcp.pop %v761
    %v763 = vmul.f32 %v761, %v762
    %v764 = vsub.f32 1.0, %v763
    %v765 = vmul.f32 %v762, %v764
    %v766 = vadd.f32 %v762, %v765
    %vm767 = vweird.f32 %v761
    %vm768 = vweird.f32 %v762
    %vm769 = vmor %vm767, %vm768
    %v770 = vsel %vm769, %v762, %v766
    %v771 = vand.u32 2147483647, %v761
    %vm772 = vcmp.eq.f32.partialorder %v771, 8.507059e+37
    %v773 = vand.u32 %v761, 2147483648
    %v774 = vor.u32 1.1754944e-38, %v773
    %v775 = vsel %vm772, %v774, %v770
    %v776 = vmul.f32 1.0, %v775
    %v777 = vxor.u32 %v729, 2147483648
    %v778 = vmul.f32 %v777, 1.442695
    %v779 = vpow.pop %v778
    %v780 = vadd.f32 %v779, 1.0
    %v781 = vrcp.pop %v780
    %v782 = vmul.f32 %v780, %v781
    %v783 = vsub.f32 1.0, %v782
    %v784 = vmul.f32 %v781, %v783
    %v785 = vadd.f32 %v781, %v784
    %vm786 = vweird.f32 %v780
    %vm787 = vweird.f32 %v781
    %vm788 = vmor %vm786, %vm787
    %v789 = vsel %vm788, %v781, %v785
    %v790 = vand.u32 2147483647, %v780
    %vm791 = vcmp.eq.f32.partialorder %v790, 8.507059e+37
    %v792 = vand.u32 %v780, 2147483648
    %v793 = vor.u32 1.1754944e-38, %v792
    %v794 = vsel %vm791, %v793, %v789
    %v795 = vmul.f32 1.0, %v794
    %v796 = vtanh.pop %v742
    %v797 = vxor.u32 %v755, 2147483648
    %v798 = vmul.f32 %v797, 1.442695
    %v799 = vpow.pop %v798
    %v800 = vadd.f32 %v799, 1.0
    %v801 = vrcp.pop %v800
    %v802 = vmul.f32 %v800, %v801
    %v803 = vsub.f32 1.0, %v802
    %v804 = vmul.f32 %v801, %v803
    %v805 = vadd.f32 %v801, %v804
    %vm806 = vweird.f32 %v800
    %vm807 = vweird.f32 %v801
    %vm808 = vmor %vm806, %vm807
    %v809 = vsel %vm808, %v801, %v805
    %v810 = vand.u32 2147483647, %v800
    %vm811 = vcmp.eq.f32.partialorder %v810, 8.507059e+37
    %v812 = vand.u32 %v800, 2147483648
    %v813 = vor.u32 1.1754944e-38, %v812
    %v814 = vsel %vm811, %v813, %v809
    %v815 = vmul.f32 1.0, %v814
    %v816 = vld [vmem:[#allocation3] sm:$0xff]
    %v817 = vmul.f32 %v795, %v816
    %v818 = vmul.f32 %v776, %v796
    %v819 = vadd.f32 %v817, %v818
    %v820 = vtanh.pop %v819
    %v821 = vmul.f32 %v815, %v820
    %822 = vst [vmem:[#allocation2] sm:$0xff] %v821
    %823 = vst [vmem:[#allocation3] sm:$0xff] %v819
    %s824 = scalar_lea.vmem %s0, 8
    %v825 = vld [vmem:[%s824] sm:$0xf]
    %v826 = vld [vmem:[%s1] sm:$0xff]
    %v827 = vld [vmem:[%s1 + $0x8] sm:$0xff]
    %v828 = vld [vmem:[#allocation2] sm:$0xff]
    %v829 = vpack.c.bf16 %v828, %v828
    %v830 = vld [vmem:[%s2] sm:$0xff]
    %v831 = vld [vmem:[%s2 + $0x8] sm:$0xff]
    %v832 = vld [vmem:[%s2 + $0x10] sm:$0xff]
    %v833 = vld [vmem:[%s2 + $0x18] sm:$0xff]
    %v834 = vld [vmem:[%s2 + $0x20] sm:$0xff]
    %v835 = vld [vmem:[%s2 + $0x28] sm:$0xff]
    %v836 = vld [vmem:[%s2 + $0x30] sm:$0xff]
    %v837 = vld [vmem:[%s2 + $0x38] sm:$0xff]
    %v838 = vld [vmem:[%s2 + $0x40] sm:$0xff]
    %v839 = vld [vmem:[%s2 + $0x48] sm:$0xff]
    %v840 = vld [vmem:[%s2 + $0x50] sm:$0xff]
    %v841 = vld [vmem:[%s2 + $0x58] sm:$0xff]
    %v842 = vld [vmem:[%s2 + $0x60] sm:$0xff]
    %v843 = vld [vmem:[%s2 + $0x68] sm:$0xff]
    %v844 = vld [vmem:[%s2 + $0x70] sm:$0xff]
    %v845 = vld [vmem:[%s2 + $0x78] sm:$0xff]
    %v846 = vld [vmem:[%s2 + $0x80] sm:$0xff]
    %v847 = vld [vmem:[%s2 + $0x88] sm:$0xff]
    %v848 = vld [vmem:[%s2 + $0x90] sm:$0xff]
    %v849 = vld [vmem:[%s2 + $0x98] sm:$0xff]
    %v850 = vld [vmem:[%s2 + $0xa0] sm:$0xff]
    %v851 = vld [vmem:[%s2 + $0xa8] sm:$0xff]
    %v852 = vld [vmem:[%s2 + $0xb0] sm:$0xff]
    %v853 = vld [vmem:[%s2 + $0xb8] sm:$0xff]
    %v854 = vld [vmem:[%s2 + $0xc0] sm:$0xff]
    %v855 = vld [vmem:[%s2 + $0xc8] sm:$0xff]
    %v856 = vld [vmem:[%s2 + $0xd0] sm:$0xff]
    %v857 = vld [vmem:[%s2 + $0xd8] sm:$0xff]
    %v858 = vld [vmem:[%s2 + $0xe0] sm:$0xff]
    %v859 = vld [vmem:[%s2 + $0xe8] sm:$0xff]
    %v860 = vld [vmem:[%s2 + $0xf0] sm:$0xff]
    %v861 = vld [vmem:[%s2 + $0xf8] sm:$0xff]
    %v894 = vunpack.c.l.b16 %v830
    %v895 = vunpack.c.h.b16 %v830
    %v896 = vunpack.c.l.b16 %v831
    %v897 = vunpack.c.h.b16 %v831
    %v898 = vunpack.c.l.b16 %v832
    %v899 = vunpack.c.h.b16 %v832
    %v900 = vunpack.c.l.b16 %v833
    %v901 = vunpack.c.h.b16 %v833
    %v902 = vunpack.c.l.b16 %v834
    %v903 = vunpack.c.h.b16 %v834
    %v904 = vunpack.c.l.b16 %v835
    %v905 = vunpack.c.h.b16 %v835
    %v906 = vunpack.c.l.b16 %v836
    %v907 = vunpack.c.h.b16 %v836
    %v908 = vunpack.c.l.b16 %v837
    %v909 = vunpack.c.h.b16 %v837
    %v910 = vunpack.c.l.b16 %v838
    %v911 = vunpack.c.h.b16 %v838
    %v912 = vunpack.c.l.b16 %v839
    %v913 = vunpack.c.h.b16 %v839
    %v914 = vunpack.c.l.b16 %v840
    %v915 = vunpack.c.h.b16 %v840
    %v916 = vunpack.c.l.b16 %v841
    %v917 = vunpack.c.h.b16 %v841
    %v918 = vunpack.c.l.b16 %v842
    %v919 = vunpack.c.h.b16 %v842
    %v920 = vunpack.c.l.b16 %v843
    %v921 = vunpack.c.h.b16 %v843
    %v922 = vunpack.c.l.b16 %v844
    %v923 = vunpack.c.h.b16 %v844
    %v924 = vunpack.c.l.b16 %v845
    %v925 = vunpack.c.h.b16 %v845
    %v926 = vunpack.c.l.b16 %v846
    %v927 = vunpack.c.h.b16 %v846
    %v928 = vunpack.c.l.b16 %v847
    %v929 = vunpack.c.h.b16 %v847
    %v930 = vunpack.c.l.b16 %v848
    %v931 = vunpack.c.h.b16 %v848
    %v932 = vunpack.c.l.b16 %v849
    %v933 = vunpack.c.h.b16 %v849
    %v934 = vunpack.c.l.b16 %v850
    %v935 = vunpack.c.h.b16 %v850
    %v936 = vunpack.c.l.b16 %v851
    %v937 = vunpack.c.h.b16 %v851
    %v938 = vunpack.c.l.b16 %v852
    %v939 = vunpack.c.h.b16 %v852
    %v940 = vunpack.c.l.b16 %v853
    %v941 = vunpack.c.h.b16 %v853
    %v942 = vunpack.c.l.b16 %v854
    %v943 = vunpack.c.h.b16 %v854
    %v944 = vunpack.c.l.b16 %v855
    %v945 = vunpack.c.h.b16 %v855
    %v946 = vunpack.c.l.b16 %v856
    %v947 = vunpack.c.h.b16 %v856
    %v948 = vunpack.c.l.b16 %v857
    %v949 = vunpack.c.h.b16 %v857
    %v950 = vunpack.c.l.b16 %v858
    %v951 = vunpack.c.h.b16 %v858
    %v952 = vunpack.c.l.b16 %v859
    %v953 = vunpack.c.h.b16 %v859
    %v954 = vunpack.c.l.b16 %v860
    %v955 = vunpack.c.h.b16 %v860
    %v956 = vunpack.c.l.b16 %v861
    %v957 = vunpack.c.h.b16 %v861
    %v958 = vpack.c.b16 %v898, %v894
    %v959 = vpack.c.b16 %v899, %v895
    %v960 = vpack.c.b16 %v900, %v896
    %v961 = vpack.c.b16 %v901, %v897
    %v962 = vpack.c.b16 %v906, %v902
    %v963 = vpack.c.b16 %v907, %v903
    %v964 = vpack.c.b16 %v908, %v904
    %v965 = vpack.c.b16 %v909, %v905
    %v966 = vpack.c.b16 %v914, %v910
    %v967 = vpack.c.b16 %v915, %v911
    %v968 = vpack.c.b16 %v916, %v912
    %v969 = vpack.c.b16 %v917, %v913
    %v970 = vpack.c.b16 %v922, %v918
    %v971 = vpack.c.b16 %v923, %v919
    %v972 = vpack.c.b16 %v924, %v920
    %v973 = vpack.c.b16 %v925, %v921
    %v974 = vpack.c.b16 %v930, %v926
    %v975 = vpack.c.b16 %v931, %v927
    %v976 = vpack.c.b16 %v932, %v928
    %v977 = vpack.c.b16 %v933, %v929
    %v978 = vpack.c.b16 %v938, %v934
    %v979 = vpack.c.b16 %v939, %v935
    %v980 = vpack.c.b16 %v940, %v936
    %v981 = vpack.c.b16 %v941, %v937
    %v982 = vpack.c.b16 %v946, %v942
    %v983 = vpack.c.b16 %v947, %v943
    %v984 = vpack.c.b16 %v948, %v944
    %v985 = vpack.c.b16 %v949, %v945
    %v986 = vpack.c.b16 %v954, %v950
    %v987 = vpack.c.b16 %v955, %v951
    %v988 = vpack.c.b16 %v956, %v952
    %v989 = vpack.c.b16 %v957, %v953
    %1022 = vmatpush.bf16.msra.mxu0 %v986
    %1023 = vmatpush.bf16.msra.mxu0 %v982
    %1024 = vmatpush.bf16.msra.mxu0 %v978
    %1025 = vmatpush.bf16.msra.mxu0 %v974
    %1026 = vmatpush.bf16.msra.mxu0 %v970
    %1027 = vmatpush.bf16.msra.mxu0 %v966
    %1028 = vmatpush.bf16.msra.mxu0 %v962
    %1029 = vmatpush.bf16.msra.mxu0 %v958
    %1030 = vmatmul.bf16.gmra.mxu0 %v829
    %v1031 = vpop.f32.mrf.mxu0
    %v1032 = vadd.f32 0.0, %v1031
    %v1033 = vpop.f32.mrf.mxu0
    %1034 = vdwg.mxu0
    %1035 = vmatpush.bf16.msra.mxu0 %v987
    %1036 = vmatpush.bf16.msra.mxu0 %v983
    %1037 = vmatpush.bf16.msra.mxu0 %v979
    %1038 = vmatpush.bf16.msra.mxu0 %v975
    %1039 = vmatpush.bf16.msra.mxu0 %v971
    %1040 = vmatpush.bf16.msra.mxu0 %v967
    %1041 = vmatpush.bf16.msra.mxu0 %v963
    %1042 = vmatpush.bf16.msra.mxu0 %v959
    %1043 = vmatmul.bf16.gmra.mxu0 %v829
    %v1044 = vpop.f32.mrf.mxu0
    %v1045 = vadd.f32 0.0, %v1044
    %v1046 = vpop.f32.mrf.mxu0
    %1047 = vdwg.mxu0
    %1048 = vmatpush.bf16.msra.mxu0 %v988
    %1049 = vmatpush.bf16.msra.mxu0 %v984
    %1050 = vmatpush.bf16.msra.mxu0 %v980
    %1051 = vmatpush.bf16.msra.mxu0 %v976
    %1052 = vmatpush.bf16.msra.mxu0 %v972
    %1053 = vmatpush.bf16.msra.mxu0 %v968
    %1054 = vmatpush.bf16.msra.mxu0 %v964
    %1055 = vmatpush.bf16.msra.mxu0 %v960
    %1056 = vmatmul.bf16.gmra.mxu0 %v829
    %v1057 = vpop.f32.mrf.mxu0
    %v1058 = vadd.f32 0.0, %v1057
    %v1059 = vpop.f32.mrf.mxu0
    %1060 = vdwg.mxu0
    %1061 = vmatpush.bf16.msra.mxu0 %v989
    %1062 = vmatpush.bf16.msra.mxu0 %v985
    %1063 = vmatpush.bf16.msra.mxu0 %v981
    %1064 = vmatpush.bf16.msra.mxu0 %v977
    %1065 = vmatpush.bf16.msra.mxu0 %v973
    %1066 = vmatpush.bf16.msra.mxu0 %v969
    %1067 = vmatpush.bf16.msra.mxu0 %v965
    %1068 = vmatpush.bf16.msra.mxu0 %v961
    %1069 = vmatmul.bf16.gmra.mxu0 %v829
    %v1070 = vpop.f32.mrf.mxu0
    %v1071 = vadd.f32 0.0, %v1070
    %v1072 = vpop.f32.mrf.mxu0
    %1073 = vdwg.mxu0
    %v1076 = vunpack.c.l.b16 %v826
    %v1077 = vunpack.c.h.b16 %v826
    %v1078 = vunpack.c.l.b16 %v827
    %v1079 = vunpack.c.h.b16 %v827
    %v1080 = vpack.c.b16 %v1076, %v1076
    %v1081 = vpack.c.b16 %v1077, %v1077
    %v1082 = vpack.c.b16 %v1078, %v1078
    %v1083 = vpack.c.b16 %v1079, %v1079
    %v1085 = vsel %vm296, %v825, 0
    %v1088 = vsel %vm300, %v1080, 0
    %v1091 = vsel %vm300, %v1081, 0
    %v1094 = vsel %vm300, %v1082, 0
    %v1097 = vsel %vm300, %v1083, 0
    %1099 = vmatpush.bf16.msra.mxu0 0
    %1100 = vmatpush.bf16.msra.mxu0 0
    %1101 = vmatpush.bf16.msra.mxu0 0
    %1102 = vmatpush.bf16.msra.mxu0 0
    %1103 = vmatpush.bf16.msra.mxu0 0
    %1104 = vmatpush.bf16.msra.mxu0 0
    %1105 = vmatpush.bf16.msra.mxu0 0
    %1106 = vmatpush.bf16.msra.mxu0 %v1088
    %1107 = vmatmul.bf16.gmra.mxu0 %v1085
    %v1108 = vpop.f32.mrf.mxu0
    %v1109 = vadd.f32 %v1032, %v1108
    %v1110 = vpop.f32.mrf.mxu0
    %1111 = vdwg.mxu0
    %1112 = vmatpush.bf16.msra.mxu0 0
    %1113 = vmatpush.bf16.msra.mxu0 0
    %1114 = vmatpush.bf16.msra.mxu0 0
    %1115 = vmatpush.bf16.msra.mxu0 0
    %1116 = vmatpush.bf16.msra.mxu0 0
    %1117 = vmatpush.bf16.msra.mxu0 0
    %1118 = vmatpush.bf16.msra.mxu0 0
    %1119 = vmatpush.bf16.msra.mxu0 %v1091
    %1120 = vmatmul.bf16.gmra.mxu0 %v1085
    %v1121 = vpop.f32.mrf.mxu0
    %v1122 = vadd.f32 %v1045, %v1121
    %v1123 = vpop.f32.mrf.mxu0
    %1124 = vdwg.mxu0
    %1125 = vmatpush.bf16.msra.mxu0 0
    %1126 = vmatpush.bf16.msra.mxu0 0
    %1127 = vmatpush.bf16.msra.mxu0 0
    %1128 = vmatpush.bf16.msra.mxu0 0
    %1129 = vmatpush.bf16.msra.mxu0 0
    %1130 = vmatpush.bf16.msra.mxu0 0
    %1131 = vmatpush.bf16.msra.mxu0 0
    %1132 = vmatpush.bf16.msra.mxu0 %v1094
    %1133 = vmatmul.bf16.gmra.mxu0 %v1085
    %v1134 = vpop.f32.mrf.mxu0
    %v1135 = vadd.f32 %v1058, %v1134
    %v1136 = vpop.f32.mrf.mxu0
    %1137 = vdwg.mxu0
    %1138 = vmatpush.bf16.msra.mxu0 0
    %1139 = vmatpush.bf16.msra.mxu0 0
    %1140 = vmatpush.bf16.msra.mxu0 0
    %1141 = vmatpush.bf16.msra.mxu0 0
    %1142 = vmatpush.bf16.msra.mxu0 0
    %1143 = vmatpush.bf16.msra.mxu0 0
    %1144 = vmatpush.bf16.msra.mxu0 0
    %1145 = vmatpush.bf16.msra.mxu0 %v1097
    %1146 = vmatmul.bf16.gmra.mxu0 %v1085
    %v1147 = vpop.f32.mrf.mxu0
    %v1148 = vadd.f32 %v1071, %v1147
    %v1149 = vpop.f32.mrf.mxu0
    %1150 = vdwg.mxu0
    %v1151 = vxor.u32 %v1109, 2147483648
    %v1152 = vmul.f32 %v1151, 1.442695
    %v1153 = vpow.pop %v1152
    %v1154 = vadd.f32 %v1153, 1.0
    %v1155 = vrcp.pop %v1154
    %v1156 = vmul.f32 %v1154, %v1155
    %v1157 = vsub.f32 1.0, %v1156
    %v1158 = vmul.f32 %v1155, %v1157
    %v1159 = vadd.f32 %v1155, %v1158
    %vm1160 = vweird.f32 %v1154
    %vm1161 = vweird.f32 %v1155
    %vm1162 = vmor %vm1160, %vm1161
    %v1163 = vsel %vm1162, %v1155, %v1159
    %v1164 = vand.u32 2147483647, %v1154
    %vm1165 = vcmp.eq.f32.partialorder %v1164, 8.507059e+37
    %v1166 = vand.u32 %v1154, 2147483648
    %v1167 = vor.u32 1.1754944e-38, %v1166
    %v1168 = vsel %vm1165, %v1167, %v1163
    %v1169 = vmul.f32 1.0, %v1168
    %v1170 = vxor.u32 %v1122, 2147483648
    %v1171 = vmul.f32 %v1170, 1.442695
    %v1172 = vpow.pop %v1171
    %v1173 = vadd.f32 %v1172, 1.0
    %v1174 = vrcp.pop %v1173
    %v1175 = vmul.f32 %v1173, %v1174
    %v1176 = vsub.f32 1.0, %v1175
    %v1177 = vmul.f32 %v1174, %v1176
    %v1178 = vadd.f32 %v1174, %v1177
    %vm1179 = vweird.f32 %v1173
    %vm1180 = vweird.f32 %v1174
    %vm1181 = vmor %vm1179, %vm1180
    %v1182 = vsel %vm1181, %v1174, %v1178
    %v1183 = vand.u32 2147483647, %v1173
    %vm1184 = vcmp.eq.f32.partialorder %v1183, 8.507059e+37
    %v1185 = vand.u32 %v1173, 2147483648
    %v1186 = vor.u32 1.1754944e-38, %v1185
    %v1187 = vsel %vm1184, %v1186, %v1182
    %v1188 = vmul.f32 1.0, %v1187
    %v1189 = vtanh.pop %v1135
    %v1190 = vxor.u32 %v1148, 2147483648
    %v1191 = vmul.f32 %v1190, 1.442695
    %v1192 = vpow.pop %v1191
    %v1193 = vadd.f32 %v1192, 1.0
    %v1194 = vrcp.pop %v1193
    %v1195 = vmul.f32 %v1193, %v1194
    %v1196 = vsub.f32 1.0, %v1195
    %v1197 = vmul.f32 %v1194, %v1196
    %v1198 = vadd.f32 %v1194, %v1197
    %vm1199 = vweird.f32 %v1193
    %vm1200 = vweird.f32 %v1194
    %vm1201 = vmor %vm1199, %vm1200
    %v1202 = vsel %vm1201, %v1194, %v1198
    %v1203 = vand.u32 2147483647, %v1193
    %vm1204 = vcmp.eq.f32.partialorder %v1203, 8.507059e+37
    %v1205 = vand.u32 %v1193, 2147483648
    %v1206 = vor.u32 1.1754944e-38, %v1205
    %v1207 = vsel %vm1204, %v1206, %v1202
    %v1208 = vmul.f32 1.0, %v1207
    %v1209 = vld [vmem:[#allocation3] sm:$0xff]
    %v1210 = vmul.f32 %v1188, %v1209
    %v1211 = vmul.f32 %v1169, %v1189
    %v1212 = vadd.f32 %v1210, %v1211
    %v1213 = vtanh.pop %v1212
    %v1214 = vmul.f32 %v1208, %v1213
    %1215 = vst [vmem:[#allocation2] sm:$0xff] %v1214
    %1216 = vst [vmem:[#allocation3] sm:$0xff] %v1212
    %s1217 = scalar_lea.vmem %s0, 12
    %v1218 = vld [vmem:[%s1217] sm:$0xf]
    %v1219 = vld [vmem:[%s1] sm:$0xff]
    %v1220 = vld [vmem:[%s1 + $0x8] sm:$0xff]
    %v1221 = vld [vmem:[#allocation2] sm:$0xff]
    %v1222 = vpack.c.bf16 %v1221, %v1221
    %v1223 = vld [vmem:[%s2] sm:$0xff]
    %v1224 = vld [vmem:[%s2 + $0x8] sm:$0xff]
    %v1225 = vld [vmem:[%s2 + $0x10] sm:$0xff]
    %v1226 = vld [vmem:[%s2 + $0x18] sm:$0xff]
    %v1227 = vld [vmem:[%s2 + $0x20] sm:$0xff]
    %v1228 = vld [vmem:[%s2 + $0x28] sm:$0xff]
    %v1229 = vld [vmem:[%s2 + $0x30] sm:$0xff]
    %v1230 = vld [vmem:[%s2 + $0x38] sm:$0xff]
    %v1231 = vld [vmem:[%s2 + $0x40] sm:$0xff]
    %v1232 = vld [vmem:[%s2 + $0x48] sm:$0xff]
    %v1233 = vld [vmem:[%s2 + $0x50] sm:$0xff]
    %v1234 = vld [vmem:[%s2 + $0x58] sm:$0xff]
    %v1235 = vld [vmem:[%s2 + $0x60] sm:$0xff]
    %v1236 = vld [vmem:[%s2 + $0x68] sm:$0xff]
    %v1237 = vld [vmem:[%s2 + $0x70] sm:$0xff]
    %v1238 = vld [vmem:[%s2 + $0x78] sm:$0xff]
    %v1239 = vld [vmem:[%s2 + $0x80] sm:$0xff]
    %v1240 = vld [vmem:[%s2 + $0x88] sm:$0xff]
    %v1241 = vld [vmem:[%s2 + $0x90] sm:$0xff]
    %v1242 = vld [vmem:[%s2 + $0x98] sm:$0xff]
    %v1243 = vld [vmem:[%s2 + $0xa0] sm:$0xff]
    %v1244 = vld [vmem:[%s2 + $0xa8] sm:$0xff]
    %v1245 = vld [vmem:[%s2 + $0xb0] sm:$0xff]
    %v1246 = vld [vmem:[%s2 + $0xb8] sm:$0xff]
    %v1247 = vld [vmem:[%s2 + $0xc0] sm:$0xff]
    %v1248 = vld [vmem:[%s2 + $0xc8] sm:$0xff]
    %v1249 = vld [vmem:[%s2 + $0xd0] sm:$0xff]
    %v1250 = vld [vmem:[%s2 + $0xd8] sm:$0xff]
    %v1251 = vld [vmem:[%s2 + $0xe0] sm:$0xff]
    %v1252 = vld [vmem:[%s2 + $0xe8] sm:$0xff]
    %v1253 = vld [vmem:[%s2 + $0xf0] sm:$0xff]
    %v1254 = vld [vmem:[%s2 + $0xf8] sm:$0xff]
    %v1287 = vunpack.c.l.b16 %v1223
    %v1288 = vunpack.c.h.b16 %v1223
    %v1289 = vunpack.c.l.b16 %v1224
    %v1290 = vunpack.c.h.b16 %v1224
    %v1291 = vunpack.c.l.b16 %v1225
    %v1292 = vunpack.c.h.b16 %v1225
    %v1293 = vunpack.c.l.b16 %v1226
    %v1294 = vunpack.c.h.b16 %v1226
    %v1295 = vunpack.c.l.b16 %v1227
    %v1296 = vunpack.c.h.b16 %v1227
    %v1297 = vunpack.c.l.b16 %v1228
    %v1298 = vunpack.c.h.b16 %v1228
    %v1299 = vunpack.c.l.b16 %v1229
    %v1300 = vunpack.c.h.b16 %v1229
    %v1301 = vunpack.c.l.b16 %v1230
    %v1302 = vunpack.c.h.b16 %v1230
    %v1303 = vunpack.c.l.b16 %v1231
    %v1304 = vunpack.c.h.b16 %v1231
    %v1305 = vunpack.c.l.b16 %v1232
    %v1306 = vunpack.c.h.b16 %v1232
    %v1307 = vunpack.c.l.b16 %v1233
    %v1308 = vunpack.c.h.b16 %v1233
    %v1309 = vunpack.c.l.b16 %v1234
    %v1310 = vunpack.c.h.b16 %v1234
    %v1311 = vunpack.c.l.b16 %v1235
    %v1312 = vunpack.c.h.b16 %v1235
    %v1313 = vunpack.c.l.b16 %v1236
    %v1314 = vunpack.c.h.b16 %v1236
    %v1315 = vunpack.c.l.b16 %v1237
    %v1316 = vunpack.c.h.b16 %v1237
    %v1317 = vunpack.c.l.b16 %v1238
    %v1318 = vunpack.c.h.b16 %v1238
    %v1319 = vunpack.c.l.b16 %v1239
    %v1320 = vunpack.c.h.b16 %v1239
    %v1321 = vunpack.c.l.b16 %v1240
    %v1322 = vunpack.c.h.b16 %v1240
    %v1323 = vunpack.c.l.b16 %v1241
    %v1324 = vunpack.c.h.b16 %v1241
    %v1325 = vunpack.c.l.b16 %v1242
    %v1326 = vunpack.c.h.b16 %v1242
    %v1327 = vunpack.c.l.b16 %v1243
    %v1328 = vunpack.c.h.b16 %v1243
    %v1329 = vunpack.c.l.b16 %v1244
    %v1330 = vunpack.c.h.b16 %v1244
    %v1331 = vunpack.c.l.b16 %v1245
    %v1332 = vunpack.c.h.b16 %v1245
    %v1333 = vunpack.c.l.b16 %v1246
    %v1334 = vunpack.c.h.b16 %v1246
    %v1335 = vunpack.c.l.b16 %v1247
    %v1336 = vunpack.c.h.b16 %v1247
    %v1337 = vunpack.c.l.b16 %v1248
    %v1338 = vunpack.c.h.b16 %v1248
    %v1339 = vunpack.c.l.b16 %v1249
    %v1340 = vunpack.c.h.b16 %v1249
    %v1341 = vunpack.c.l.b16 %v1250
    %v1342 = vunpack.c.h.b16 %v1250
    %v1343 = vunpack.c.l.b16 %v1251
    %v1344 = vunpack.c.h.b16 %v1251
    %v1345 = vunpack.c.l.b16 %v1252
    %v1346 = vunpack.c.h.b16 %v1252
    %v1347 = vunpack.c.l.b16 %v1253
    %v1348 = vunpack.c.h.b16 %v1253
    %v1349 = vunpack.c.l.b16 %v1254
    %v1350 = vunpack.c.h.b16 %v1254
    %v1351 = vpack.c.b16 %v1291, %v1287
    %v1352 = vpack.c.b16 %v1292, %v1288
    %v1353 = vpack.c.b16 %v1293, %v1289
    %v1354 = vpack.c.b16 %v1294, %v1290
    %v1355 = vpack.c.b16 %v1299, %v1295
    %v1356 = vpack.c.b16 %v1300, %v1296
    %v1357 = vpack.c.b16 %v1301, %v1297
    %v1358 = vpack.c.b16 %v1302, %v1298
    %v1359 = vpack.c.b16 %v1307, %v1303
    %v1360 = vpack.c.b16 %v1308, %v1304
    %v1361 = vpack.c.b16 %v1309, %v1305
    %v1362 = vpack.c.b16 %v1310, %v1306
    %v1363 = vpack.c.b16 %v1315, %v1311
    %v1364 = vpack.c.b16 %v1316, %v1312
    %v1365 = vpack.c.b16 %v1317, %v1313
    %v1366 = vpack.c.b16 %v1318, %v1314
    %v1367 = vpack.c.b16 %v1323, %v1319
    %v1368 = vpack.c.b16 %v1324, %v1320
    %v1369 = vpack.c.b16 %v1325, %v1321
    %v1370 = vpack.c.b16 %v1326, %v1322
    %v1371 = vpack.c.b16 %v1331, %v1327
    %v1372 = vpack.c.b16 %v1332, %v1328
    %v1373 = vpack.c.b16 %v1333, %v1329
    %v1374 = vpack.c.b16 %v1334, %v1330
    %v1375 = vpack.c.b16 %v1339, %v1335
    %v1376 = vpack.c.b16 %v1340, %v1336
    %v1377 = vpack.c.b16 %v1341, %v1337
    %v1378 = vpack.c.b16 %v1342, %v1338
    %v1379 = vpack.c.b16 %v1347, %v1343
    %v1380 = vpack.c.b16 %v1348, %v1344
    %v1381 = vpack.c.b16 %v1349, %v1345
    %v1382 = vpack.c.b16 %v1350, %v1346
    %1415 = vmatpush.bf16.msra.mxu0 %v1379
    %1416 = vmatpush.bf16.msra.mxu0 %v1375
    %1417 = vmatpush.bf16.msra.mxu0 %v1371
    %1418 = vmatpush.bf16.msra.mxu0 %v1367
    %1419 = vmatpush.bf16.msra.mxu0 %v1363
    %1420 = vmatpush.bf16.msra.mxu0 %v1359
    %1421 = vmatpush.bf16.msra.mxu0 %v1355
    %1422 = vmatpush.bf16.msra.mxu0 %v1351
    %1423 = vmatmul.bf16.gmra.mxu0 %v1222
    %v1424 = vpop.f32.mrf.mxu0
    %v1425 = vadd.f32 0.0, %v1424
    %v1426 = vpop.f32.mrf.mxu0
    %1427 = vdwg.mxu0
    %1428 = vmatpush.bf16.msra.mxu0 %v1380
    %1429 = vmatpush.bf16.msra.mxu0 %v1376
    %1430 = vmatpush.bf16.msra.mxu0 %v1372
    %1431 = vmatpush.bf16.msra.mxu0 %v1368
    %1432 = vmatpush.bf16.msra.mxu0 %v1364
    %1433 = vmatpush.bf16.msra.mxu0 %v1360
    %1434 = vmatpush.bf16.msra.mxu0 %v1356
    %1435 = vmatpush.bf16.msra.mxu0 %v1352
    %1436 = vmatmul.bf16.gmra.mxu0 %v1222
    %v1437 = vpop.f32.mrf.mxu0
    %v1438 = vadd.f32 0.0, %v1437
    %v1439 = vpop.f32.mrf.mxu0
    %1440 = vdwg.mxu0
    %1441 = vmatpush.bf16.msra.mxu0 %v1381
    %1442 = vmatpush.bf16.msra.mxu0 %v1377
    %1443 = vmatpush.bf16.msra.mxu0 %v1373
    %1444 = vmatpush.bf16.msra.mxu0 %v1369
    %1445 = vmatpush.bf16.msra.mxu0 %v1365
    %1446 = vmatpush.bf16.msra.mxu0 %v1361
    %1447 = vmatpush.bf16.msra.mxu0 %v1357
    %1448 = vmatpush.bf16.msra.mxu0 %v1353
    %1449 = vmatmul.bf16.gmra.mxu0 %v1222
    %v1450 = vpop.f32.mrf.mxu0
    %v1451 = vadd.f32 0.0, %v1450
    %v1452 = vpop.f32.mrf.mxu0
    %1453 = vdwg.mxu0
    %1454 = vmatpush.bf16.msra.mxu0 %v1382
    %1455 = vmatpush.bf16.msra.mxu0 %v1378
    %1456 = vmatpush.bf16.msra.mxu0 %v1374
    %1457 = vmatpush.bf16.msra.mxu0 %v1370
    %1458 = vmatpush.bf16.msra.mxu0 %v1366
    %1459 = vmatpush.bf16.msra.mxu0 %v1362
    %1460 = vmatpush.bf16.msra.mxu0 %v1358
    %1461 = vmatpush.bf16.msra.mxu0 %v1354
    %1462 = vmatmul.bf16.gmra.mxu0 %v1222
    %v1463 = vpop.f32.mrf.mxu0
    %v1464 = vadd.f32 0.0, %v1463
    %v1465 = vpop.f32.mrf.mxu0
    %1466 = vdwg.mxu0
    %v1469 = vunpack.c.l.b16 %v1219
    %v1470 = vunpack.c.h.b16 %v1219
    %v1471 = vunpack.c.l.b16 %v1220
    %v1472 = vunpack.c.h.b16 %v1220
    %v1473 = vpack.c.b16 %v1469, %v1469
    %v1474 = vpack.c.b16 %v1470, %v1470
    %v1475 = vpack.c.b16 %v1471, %v1471
    %v1476 = vpack.c.b16 %v1472, %v1472
    %v1478 = vsel %vm296, %v1218, 0
    %v1481 = vsel %vm300, %v1473, 0
    %v1484 = vsel %vm300, %v1474, 0
    %v1487 = vsel %vm300, %v1475, 0
    %v1490 = vsel %vm300, %v1476, 0
    %1492 = vmatpush.bf16.msra.mxu0 0
    %1493 = vmatpush.bf16.msra.mxu0 0
    %1494 = vmatpush.bf16.msra.mxu0 0
    %1495 = vmatpush.bf16.msra.mxu0 0
    %1496 = vmatpush.bf16.msra.mxu0 0
    %1497 = vmatpush.bf16.msra.mxu0 0
    %1498 = vmatpush.bf16.msra.mxu0 0
    %1499 = vmatpush.bf16.msra.mxu0 %v1481
    %1500 = vmatmul.bf16.gmra.mxu0 %v1478
    %v1501 = vpop.f32.mrf.mxu0
    %v1502 = vadd.f32 %v1425, %v1501
    %v1503 = vpop.f32.mrf.mxu0
    %1504 = vdwg.mxu0
    %1505 = vmatpush.bf16.msra.mxu0 0
    %1506 = vmatpush.bf16.msra.mxu0 0
    %1507 = vmatpush.bf16.msra.mxu0 0
    %1508 = vmatpush.bf16.msra.mxu0 0
    %1509 = vmatpush.bf16.msra.mxu0 0
    %1510 = vmatpush.bf16.msra.mxu0 0
    %1511 = vmatpush.bf16.msra.mxu0 0
    %1512 = vmatpush.bf16.msra.mxu0 %v1484
    %1513 = vmatmul.bf16.gmra.mxu0 %v1478
    %v1514 = vpop.f32.mrf.mxu0
    %v1515 = vadd.f32 %v1438, %v1514
    %v1516 = vpop.f32.mrf.mxu0
    %1517 = vdwg.mxu0
    %1518 = vmatpush.bf16.msra.mxu0 0
    %1519 = vmatpush.bf16.msra.mxu0 0
    %1520 = vmatpush.bf16.msra.mxu0 0
    %1521 = vmatpush.bf16.msra.mxu0 0
    %1522 = vmatpush.bf16.msra.mxu0 0
    %1523 = vmatpush.bf16.msra.mxu0 0
    %1524 = vmatpush.bf16.msra.mxu0 0
    %1525 = vmatpush.bf16.msra.mxu0 %v1487
    %1526 = vmatmul.bf16.gmra.mxu0 %v1478
    %v1527 = vpop.f32.mrf.mxu0
    %v1528 = vadd.f32 %v1451, %v1527
    %v1529 = vpop.f32.mrf.mxu0
    %1530 = vdwg.mxu0
    %1531 = vmatpush.bf16.msra.mxu0 0
    %1532 = vmatpush.bf16.msra.mxu0 0
    %1533 = vmatpush.bf16.msra.mxu0 0
    %1534 = vmatpush.bf16.msra.mxu0 0
    %1535 = vmatpush.bf16.msra.mxu0 0
    %1536 = vmatpush.bf16.msra.mxu0 0
    %1537 = vmatpush.bf16.msra.mxu0 0
    %1538 = vmatpush.bf16.msra.mxu0 %v1490
    %1539 = vmatmul.bf16.gmra.mxu0 %v1478
    %v1540 = vpop.f32.mrf.mxu0
    %v1541 = vadd.f32 %v1464, %v1540
    %v1542 = vpop.f32.mrf.mxu0
    %1543 = vdwg.mxu0
    %v1544 = vxor.u32 %v1502, 2147483648
    %v1545 = vmul.f32 %v1544, 1.442695
    %v1546 = vpow.pop %v1545
    %v1547 = vadd.f32 %v1546, 1.0
    %v1548 = vrcp.pop %v1547
    %v1549 = vmul.f32 %v1547, %v1548
    %v1550 = vsub.f32 1.0, %v1549
    %v1551 = vmul.f32 %v1548, %v1550
    %v1552 = vadd.f32 %v1548, %v1551
    %vm1553 = vweird.f32 %v1547
    %vm1554 = vweird.f32 %v1548
    %vm1555 = vmor %vm1553, %vm1554
    %v1556 = vsel %vm1555, %v1548, %v1552
    %v1557 = vand.u32 2147483647, %v1547
    %vm1558 = vcmp.eq.f32.partialorder %v1557, 8.507059e+37
    %v1559 = vand.u32 %v1547, 2147483648
    %v1560 = vor.u32 1.1754944e-38, %v1559
    %v1561 = vsel %vm1558, %v1560, %v1556
    %v1562 = vmul.f32 1.0, %v1561
    %v1563 = vxor.u32 %v1515, 2147483648
    %v1564 = vmul.f32 %v1563, 1.442695
    %v1565 = vpow.pop %v1564
    %v1566 = vadd.f32 %v1565, 1.0
    %v1567 = vrcp.pop %v1566
    %v1568 = vmul.f32 %v1566, %v1567
    %v1569 = vsub.f32 1.0, %v1568
    %v1570 = vmul.f32 %v1567, %v1569
    %v1571 = vadd.f32 %v1567, %v1570
    %vm1572 = vweird.f32 %v1566
    %vm1573 = vweird.f32 %v1567
    %vm1574 = vmor %vm1572, %vm1573
    %v1575 = vsel %vm1574, %v1567, %v1571
    %v1576 = vand.u32 2147483647, %v1566
    %vm1577 = vcmp.eq.f32.partialorder %v1576, 8.507059e+37
    %v1578 = vand.u32 %v1566, 2147483648
    %v1579 = vor.u32 1.1754944e-38, %v1578
    %v1580 = vsel %vm1577, %v1579, %v1575
    %v1581 = vmul.f32 1.0, %v1580
    %v1582 = vtanh.pop %v1528
    %v1583 = vxor.u32 %v1541, 2147483648
    %v1584 = vmul.f32 %v1583, 1.442695
    %v1585 = vpow.pop %v1584
    %v1586 = vadd.f32 %v1585, 1.0
    %v1587 = vrcp.pop %v1586
    %v1588 = vmul.f32 %v1586, %v1587
    %v1589 = vsub.f32 1.0, %v1588
    %v1590 = vmul.f32 %v1587, %v1589
    %v1591 = vadd.f32 %v1587, %v1590
    %vm1592 = vweird.f32 %v1586
    %vm1593 = vweird.f32 %v1587
    %vm1594 = vmor %vm1592, %vm1593
    %v1595 = vsel %vm1594, %v1587, %v1591
    %v1596 = vand.u32 2147483647, %v1586
    %vm1597 = vcmp.eq.f32.partialorder %v1596, 8.507059e+37
    %v1598 = vand.u32 %v1586, 2147483648
    %v1599 = vor.u32 1.1754944e-38, %v1598
    %v1600 = vsel %vm1597, %v1599, %v1595
    %v1601 = vmul.f32 1.0, %v1600
    %v1602 = vld [vmem:[#allocation3] sm:$0xff]
    %v1603 = vmul.f32 %v1581, %v1602
    %v1604 = vmul.f32 %v1562, %v1582
    %v1605 = vadd.f32 %v1603, %v1604
    %v1606 = vtanh.pop %v1605
    %v1607 = vmul.f32 %v1601, %v1606
    %1608 = vst [vmem:[#allocation2] sm:$0xff] %v1607
    %1609 = vst [vmem:[#allocation3] sm:$0xff] %v1605
    %s1610 = scalar_lea.vmem %s0, 16
    %v1611 = vld [vmem:[%s1610] sm:$0xf]
    %v1612 = vld [vmem:[%s1] sm:$0xff]
    %v1613 = vld [vmem:[%s1 + $0x8] sm:$0xff]
    %v1614 = vld [vmem:[#allocation2] sm:$0xff]
    %v1615 = vpack.c.bf16 %v1614, %v1614
    %v1616 = vld [vmem:[%s2] sm:$0xff]
    %v1617 = vld [vmem:[%s2 + $0x8] sm:$0xff]
    %v1618 = vld [vmem:[%s2 + $0x10] sm:$0xff]
    %v1619 = vld [vmem:[%s2 + $0x18] sm:$0xff]
    %v1620 = vld [vmem:[%s2 + $0x20] sm:$0xff]
    %v1621 = vld [vmem:[%s2 + $0x28] sm:$0xff]
    %v1622 = vld [vmem:[%s2 + $0x30] sm:$0xff]
    %v1623 = vld [vmem:[%s2 + $0x38] sm:$0xff]
    %v1624 = vld [vmem:[%s2 + $0x40] sm:$0xff]
    %v1625 = vld [vmem:[%s2 + $0x48] sm:$0xff]
    %v1626 = vld [vmem:[%s2 + $0x50] sm:$0xff]
    %v1627 = vld [vmem:[%s2 + $0x58] sm:$0xff]
    %v1628 = vld [vmem:[%s2 + $0x60] sm:$0xff]
    %v1629 = vld [vmem:[%s2 + $0x68] sm:$0xff]
    %v1630 = vld [vmem:[%s2 + $0x70] sm:$0xff]
    %v1631 = vld [vmem:[%s2 + $0x78] sm:$0xff]
    %v1632 = vld [vmem:[%s2 + $0x80] sm:$0xff]
    %v1633 = vld [vmem:[%s2 + $0x88] sm:$0xff]
    %v1634 = vld [vmem:[%s2 + $0x90] sm:$0xff]
    %v1635 = vld [vmem:[%s2 + $0x98] sm:$0xff]
    %v1636 = vld [vmem:[%s2 + $0xa0] sm:$0xff]
    %v1637 = vld [vmem:[%s2 + $0xa8] sm:$0xff]
    %v1638 = vld [vmem:[%s2 + $0xb0] sm:$0xff]
    %v1639 = vld [vmem:[%s2 + $0xb8] sm:$0xff]
    %v1640 = vld [vmem:[%s2 + $0xc0] sm:$0xff]
    %v1641 = vld [vmem:[%s2 + $0xc8] sm:$0xff]
    %v1642 = vld [vmem:[%s2 + $0xd0] sm:$0xff]
    %v1643 = vld [vmem:[%s2 + $0xd8] sm:$0xff]
    %v1644 = vld [vmem:[%s2 + $0xe0] sm:$0xff]
    %v1645 = vld [vmem:[%s2 + $0xe8] sm:$0xff]
    %v1646 = vld [vmem:[%s2 + $0xf0] sm:$0xff]
    %v1647 = vld [vmem:[%s2 + $0xf8] sm:$0xff]
    %v1680 = vunpack.c.l.b16 %v1616
    %v1681 = vunpack.c.h.b16 %v1616
    %v1682 = vunpack.c.l.b16 %v1617
    %v1683 = vunpack.c.h.b16 %v1617
    %v1684 = vunpack.c.l.b16 %v1618
    %v1685 = vunpack.c.h.b16 %v1618
    %v1686 = vunpack.c.l.b16 %v1619
    %v1687 = vunpack.c.h.b16 %v1619
    %v1688 = vunpack.c.l.b16 %v1620
    %v1689 = vunpack.c.h.b16 %v1620
    %v1690 = vunpack.c.l.b16 %v1621
    %v1691 = vunpack.c.h.b16 %v1621
    %v1692 = vunpack.c.l.b16 %v1622
    %v1693 = vunpack.c.h.b16 %v1622
    %v1694 = vunpack.c.l.b16 %v1623
    %v1695 = vunpack.c.h.b16 %v1623
    %v1696 = vunpack.c.l.b16 %v1624
    %v1697 = vunpack.c.h.b16 %v1624
    %v1698 = vunpack.c.l.b16 %v1625
    %v1699 = vunpack.c.h.b16 %v1625
    %v1700 = vunpack.c.l.b16 %v1626
    %v1701 = vunpack.c.h.b16 %v1626
    %v1702 = vunpack.c.l.b16 %v1627
    %v1703 = vunpack.c.h.b16 %v1627
    %v1704 = vunpack.c.l.b16 %v1628
    %v1705 = vunpack.c.h.b16 %v1628
    %v1706 = vunpack.c.l.b16 %v1629
    %v1707 = vunpack.c.h.b16 %v1629
    %v1708 = vunpack.c.l.b16 %v1630
    %v1709 = vunpack.c.h.b16 %v1630
    %v1710 = vunpack.c.l.b16 %v1631
    %v1711 = vunpack.c.h.b16 %v1631
    %v1712 = vunpack.c.l.b16 %v1632
    %v1713 = vunpack.c.h.b16 %v1632
    %v1714 = vunpack.c.l.b16 %v1633
    %v1715 = vunpack.c.h.b16 %v1633
    %v1716 = vunpack.c.l.b16 %v1634
    %v1717 = vunpack.c.h.b16 %v1634
    %v1718 = vunpack.c.l.b16 %v1635
    %v1719 = vunpack.c.h.b16 %v1635
    %v1720 = vunpack.c.l.b16 %v1636
    %v1721 = vunpack.c.h.b16 %v1636
    %v1722 = vunpack.c.l.b16 %v1637
    %v1723 = vunpack.c.h.b16 %v1637
    %v1724 = vunpack.c.l.b16 %v1638
    %v1725 = vunpack.c.h.b16 %v1638
    %v1726 = vunpack.c.l.b16 %v1639
    %v1727 = vunpack.c.h.b16 %v1639
    %v1728 = vunpack.c.l.b16 %v1640
    %v1729 = vunpack.c.h.b16 %v1640
    %v1730 = vunpack.c.l.b16 %v1641
    %v1731 = vunpack.c.h.b16 %v1641
    %v1732 = vunpack.c.l.b16 %v1642
    %v1733 = vunpack.c.h.b16 %v1642
    %v1734 = vunpack.c.l.b16 %v1643
    %v1735 = vunpack.c.h.b16 %v1643
    %v1736 = vunpack.c.l.b16 %v1644
    %v1737 = vunpack.c.h.b16 %v1644
    %v1738 = vunpack.c.l.b16 %v1645
    %v1739 = vunpack.c.h.b16 %v1645
    %v1740 = vunpack.c.l.b16 %v1646
    %v1741 = vunpack.c.h.b16 %v1646
    %v1742 = vunpack.c.l.b16 %v1647
    %v1743 = vunpack.c.h.b16 %v1647
    %v1744 = vpack.c.b16 %v1684, %v1680
    %v1745 = vpack.c.b16 %v1685, %v1681
    %v1746 = vpack.c.b16 %v1686, %v1682
    %v1747 = vpack.c.b16 %v1687, %v1683
    %v1748 = vpack.c.b16 %v1692, %v1688
    %v1749 = vpack.c.b16 %v1693, %v1689
    %v1750 = vpack.c.b16 %v1694, %v1690
    %v1751 = vpack.c.b16 %v1695, %v1691
    %v1752 = vpack.c.b16 %v1700, %v1696
    %v1753 = vpack.c.b16 %v1701, %v1697
    %v1754 = vpack.c.b16 %v1702, %v1698
    %v1755 = vpack.c.b16 %v1703, %v1699
    %v1756 = vpack.c.b16 %v1708, %v1704
    %v1757 = vpack.c.b16 %v1709, %v1705
    %v1758 = vpack.c.b16 %v1710, %v1706
    %v1759 = vpack.c.b16 %v1711, %v1707
    %v1760 = vpack.c.b16 %v1716, %v1712
    %v1761 = vpack.c.b16 %v1717, %v1713
    %v1762 = vpack.c.b16 %v1718, %v1714
    %v1763 = vpack.c.b16 %v1719, %v1715
    %v1764 = vpack.c.b16 %v1724, %v1720
    %v1765 = vpack.c.b16 %v1725, %v1721
    %v1766 = vpack.c.b16 %v1726, %v1722
    %v1767 = vpack.c.b16 %v1727, %v1723
    %v1768 = vpack.c.b16 %v1732, %v1728
    %v1769 = vpack.c.b16 %v1733, %v1729
    %v1770 = vpack.c.b16 %v1734, %v1730
    %v1771 = vpack.c.b16 %v1735, %v1731
    %v1772 = vpack.c.b16 %v1740, %v1736
    %v1773 = vpack.c.b16 %v1741, %v1737
    %v1774 = vpack.c.b16 %v1742, %v1738
    %v1775 = vpack.c.b16 %v1743, %v1739
    %1808 = vmatpush.bf16.msra.mxu0 %v1772
    %1809 = vmatpush.bf16.msra.mxu0 %v1768
    %1810 = vmatpush.bf16.msra.mxu0 %v1764
    %1811 = vmatpush.bf16.msra.mxu0 %v1760
    %1812 = vmatpush.bf16.msra.mxu0 %v1756
    %1813 = vmatpush.bf16.msra.mxu0 %v1752
    %1814 = vmatpush.bf16.msra.mxu0 %v1748
    %1815 = vmatpush.bf16.msra.mxu0 %v1744
    %1816 = vmatmul.bf16.gmra.mxu0 %v1615
    %v1817 = vpop.f32.mrf.mxu0
    %v1818 = vadd.f32 0.0, %v1817
    %v1819 = vpop.f32.mrf.mxu0
    %1820 = vdwg.mxu0
    %1821 = vmatpush.bf16.msra.mxu0 %v1773
    %1822 = vmatpush.bf16.msra.mxu0 %v1769
    %1823 = vmatpush.bf16.msra.mxu0 %v1765
    %1824 = vmatpush.bf16.msra.mxu0 %v1761
    %1825 = vmatpush.bf16.msra.mxu0 %v1757
    %1826 = vmatpush.bf16.msra.mxu0 %v1753
    %1827 = vmatpush.bf16.msra.mxu0 %v1749
    %1828 = vmatpush.bf16.msra.mxu0 %v1745
    %1829 = vmatmul.bf16.gmra.mxu0 %v1615
    %v1830 = vpop.f32.mrf.mxu0
    %v1831 = vadd.f32 0.0, %v1830
    %v1832 = vpop.f32.mrf.mxu0
    %1833 = vdwg.mxu0
    %1834 = vmatpush.bf16.msra.mxu0 %v1774
    %1835 = vmatpush.bf16.msra.mxu0 %v1770
    %1836 = vmatpush.bf16.msra.mxu0 %v1766
    %1837 = vmatpush.bf16.msra.mxu0 %v1762
    %1838 = vmatpush.bf16.msra.mxu0 %v1758
    %1839 = vmatpush.bf16.msra.mxu0 %v1754
    %1840 = vmatpush.bf16.msra.mxu0 %v1750
    %1841 = vmatpush.bf16.msra.mxu0 %v1746
    %1842 = vmatmul.bf16.gmra.mxu0 %v1615
    %v1843 = vpop.f32.mrf.mxu0
    %v1844 = vadd.f32 0.0, %v1843
    %v1845 = vpop.f32.mrf.mxu0
    %1846 = vdwg.mxu0
    %1847 = vmatpush.bf16.msra.mxu0 %v1775
    %1848 = vmatpush.bf16.msra.mxu0 %v1771
    %1849 = vmatpush.bf16.msra.mxu0 %v1767
    %1850 = vmatpush.bf16.msra.mxu0 %v1763
    %1851 = vmatpush.bf16.msra.mxu0 %v1759
    %1852 = vmatpush.bf16.msra.mxu0 %v1755
    %1853 = vmatpush.bf16.msra.mxu0 %v1751
    %1854 = vmatpush.bf16.msra.mxu0 %v1747
    %1855 = vmatmul.bf16.gmra.mxu0 %v1615
    %v1856 = vpop.f32.mrf.mxu0
    %v1857 = vadd.f32 0.0, %v1856
    %v1858 = vpop.f32.mrf.mxu0
    %1859 = vdwg.mxu0
    %v1862 = vunpack.c.l.b16 %v1612
    %v1863 = vunpack.c.h.b16 %v1612
    %v1864 = vunpack.c.l.b16 %v1613
    %v1865 = vunpack.c.h.b16 %v1613
    %v1866 = vpack.c.b16 %v1862, %v1862
    %v1867 = vpack.c.b16 %v1863, %v1863
    %v1868 = vpack.c.b16 %v1864, %v1864
    %v1869 = vpack.c.b16 %v1865, %v1865
    %v1871 = vsel %vm296, %v1611, 0
    %v1874 = vsel %vm300, %v1866, 0
    %v1877 = vsel %vm300, %v1867, 0
    %v1880 = vsel %vm300, %v1868, 0
    %v1883 = vsel %vm300, %v1869, 0
    %1885 = vmatpush.bf16.msra.mxu0 0
    %1886 = vmatpush.bf16.msra.mxu0 0
    %1887 = vmatpush.bf16.msra.mxu0 0
    %1888 = vmatpush.bf16.msra.mxu0 0
    %1889 = vmatpush.bf16.msra.mxu0 0
    %1890 = vmatpush.bf16.msra.mxu0 0
    %1891 = vmatpush.bf16.msra.mxu0 0
    %1892 = vmatpush.bf16.msra.mxu0 %v1874
    %1893 = vmatmul.bf16.gmra.mxu0 %v1871
    %v1894 = vpop.f32.mrf.mxu0
    %v1895 = vadd.f32 %v1818, %v1894
    %v1896 = vpop.f32.mrf.mxu0
    %1897 = vdwg.mxu0
    %1898 = vmatpush.bf16.msra.mxu0 0
    %1899 = vmatpush.bf16.msra.mxu0 0
    %1900 = vmatpush.bf16.msra.mxu0 0
    %1901 = vmatpush.bf16.msra.mxu0 0
    %1902 = vmatpush.bf16.msra.mxu0 0
    %1903 = vmatpush.bf16.msra.mxu0 0
    %1904 = vmatpush.bf16.msra.mxu0 0
    %1905 = vmatpush.bf16.msra.mxu0 %v1877
    %1906 = vmatmul.bf16.gmra.mxu0 %v1871
    %v1907 = vpop.f32.mrf.mxu0
    %v1908 = vadd.f32 %v1831, %v1907
    %v1909 = vpop.f32.mrf.mxu0
    %1910 = vdwg.mxu0
    %1911 = vmatpush.bf16.msra.mxu0 0
    %1912 = vmatpush.bf16.msra.mxu0 0
    %1913 = vmatpush.bf16.msra.mxu0 0
    %1914 = vmatpush.bf16.msra.mxu0 0
    %1915 = vmatpush.bf16.msra.mxu0 0
    %1916 = vmatpush.bf16.msra.mxu0 0
    %1917 = vmatpush.bf16.msra.mxu0 0
    %1918 = vmatpush.bf16.msra.mxu0 %v1880
    %1919 = vmatmul.bf16.gmra.mxu0 %v1871
    %v1920 = vpop.f32.mrf.mxu0
    %v1921 = vadd.f32 %v1844, %v1920
    %v1922 = vpop.f32.mrf.mxu0
    %1923 = vdwg.mxu0
    %1924 = vmatpush.bf16.msra.mxu0 0
    %1925 = vmatpush.bf16.msra.mxu0 0
    %1926 = vmatpush.bf16.msra.mxu0 0
    %1927 = vmatpush.bf16.msra.mxu0 0
    %1928 = vmatpush.bf16.msra.mxu0 0
    %1929 = vmatpush.bf16.msra.mxu0 0
    %1930 = vmatpush.bf16.msra.mxu0 0
    %1931 = vmatpush.bf16.msra.mxu0 %v1883
    %1932 = vmatmul.bf16.gmra.mxu0 %v1871
    %v1933 = vpop.f32.mrf.mxu0
    %v1934 = vadd.f32 %v1857, %v1933
    %v1935 = vpop.f32.mrf.mxu0
    %1936 = vdwg.mxu0
    %v1937 = vxor.u32 %v1895, 2147483648
    %v1938 = vmul.f32 %v1937, 1.442695
    %v1939 = vpow.pop %v1938
    %v1940 = vadd.f32 %v1939, 1.0
    %v1941 = vrcp.pop %v1940
    %v1942 = vmul.f32 %v1940, %v1941
    %v1943 = vsub.f32 1.0, %v1942
    %v1944 = vmul.f32 %v1941, %v1943
    %v1945 = vadd.f32 %v1941, %v1944
    %vm1946 = vweird.f32 %v1940
    %vm1947 = vweird.f32 %v1941
    %vm1948 = vmor %vm1946, %vm1947
    %v1949 = vsel %vm1948, %v1941, %v1945
    %v1950 = vand.u32 2147483647, %v1940
    %vm1951 = vcmp.eq.f32.partialorder %v1950, 8.507059e+37
    %v1952 = vand.u32 %v1940, 2147483648
    %v1953 = vor.u32 1.1754944e-38, %v1952
    %v1954 = vsel %vm1951, %v1953, %v1949
    %v1955 = vmul.f32 1.0, %v1954
    %v1956 = vxor.u32 %v1908, 2147483648
    %v1957 = vmul.f32 %v1956, 1.442695
    %v1958 = vpow.pop %v1957
    %v1959 = vadd.f32 %v1958, 1.0
    %v1960 = vrcp.pop %v1959
    %v1961 = vmul.f32 %v1959, %v1960
    %v1962 = vsub.f32 1.0, %v1961
    %v1963 = vmul.f32 %v1960, %v1962
    %v1964 = vadd.f32 %v1960, %v1963
    %vm1965 = vweird.f32 %v1959
    %vm1966 = vweird.f32 %v1960
    %vm1967 = vmor %vm1965, %vm1966
    %v1968 = vsel %vm1967, %v1960, %v1964
    %v1969 = vand.u32 2147483647, %v1959
    %vm1970 = vcmp.eq.f32.partialorder %v1969, 8.507059e+37
    %v1971 = vand.u32 %v1959, 2147483648
    %v1972 = vor.u32 1.1754944e-38, %v1971
    %v1973 = vsel %vm1970, %v1972, %v1968
    %v1974 = vmul.f32 1.0, %v1973
    %v1975 = vtanh.pop %v1921
    %v1976 = vxor.u32 %v1934, 2147483648
    %v1977 = vmul.f32 %v1976, 1.442695
    %v1978 = vpow.pop %v1977
    %v1979 = vadd.f32 %v1978, 1.0
    %v1980 = vrcp.pop %v1979
    %v1981 = vmul.f32 %v1979, %v1980
    %v1982 = vsub.f32 1.0, %v1981
    %v1983 = vmul.f32 %v1980, %v1982
    %v1984 = vadd.f32 %v1980, %v1983
    %vm1985 = vweird.f32 %v1979
    %vm1986 = vweird.f32 %v1980
    %vm1987 = vmor %vm1985, %vm1986
    %v1988 = vsel %vm1987, %v1980, %v1984
    %v1989 = vand.u32 2147483647, %v1979
    %vm1990 = vcmp.eq.f32.partialorder %v1989, 8.507059e+37
    %v1991 = vand.u32 %v1979, 2147483648
    %v1992 = vor.u32 1.1754944e-38, %v1991
    %v1993 = vsel %vm1990, %v1992, %v1988
    %v1994 = vmul.f32 1.0, %v1993
    %v1995 = vld [vmem:[#allocation3] sm:$0xff]
    %v1996 = vmul.f32 %v1974, %v1995
    %v1997 = vmul.f32 %v1955, %v1975
    %v1998 = vadd.f32 %v1996, %v1997
    %v1999 = vtanh.pop %v1998
    %v2000 = vmul.f32 %v1994, %v1999
    %2001 = vst [vmem:[#allocation2] sm:$0xff] %v2000
    %2002 = vst [vmem:[#allocation3] sm:$0xff] %v1998
    %s2003 = scalar_lea.vmem %s0, 20
    %v2004 = vld [vmem:[%s2003] sm:$0xf]
    %v2005 = vld [vmem:[%s1] sm:$0xff]
    %v2006 = vld [vmem:[%s1 + $0x8] sm:$0xff]
    %v2007 = vld [vmem:[#allocation2] sm:$0xff]
    %v2008 = vpack.c.bf16 %v2007, %v2007
    %v2009 = vld [vmem:[%s2] sm:$0xff]
    %v2010 = vld [vmem:[%s2 + $0x8] sm:$0xff]
    %v2011 = vld [vmem:[%s2 + $0x10] sm:$0xff]
    %v2012 = vld [vmem:[%s2 + $0x18] sm:$0xff]
    %v2013 = vld [vmem:[%s2 + $0x20] sm:$0xff]
    %v2014 = vld [vmem:[%s2 + $0x28] sm:$0xff]
    %v2015 = vld [vmem:[%s2 + $0x30] sm:$0xff]
    %v2016 = vld [vmem:[%s2 + $0x38] sm:$0xff]
    %v2017 = vld [vmem:[%s2 + $0x40] sm:$0xff]
    %v2018 = vld [vmem:[%s2 + $0x48] sm:$0xff]
    %v2019 = vld [vmem:[%s2 + $0x50] sm:$0xff]
    %v2020 = vld [vmem:[%s2 + $0x58] sm:$0xff]
    %v2021 = vld [vmem:[%s2 + $0x60] sm:$0xff]
    %v2022 = vld [vmem:[%s2 + $0x68] sm:$0xff]
    %v2023 = vld [vmem:[%s2 + $0x70] sm:$0xff]
    %v2024 = vld [vmem:[%s2 + $0x78] sm:$0xff]
    %v2025 = vld [vmem:[%s2 + $0x80] sm:$0xff]
    %v2026 = vld [vmem:[%s2 + $0x88] sm:$0xff]
    %v2027 = vld [vmem:[%s2 + $0x90] sm:$0xff]
    %v2028 = vld [vmem:[%s2 + $0x98] sm:$0xff]
    %v2029 = vld [vmem:[%s2 + $0xa0] sm:$0xff]
    %v2030 = vld [vmem:[%s2 + $0xa8] sm:$0xff]
    %v2031 = vld [vmem:[%s2 + $0xb0] sm:$0xff]
    %v2032 = vld [vmem:[%s2 + $0xb8] sm:$0xff]
    %v2033 = vld [vmem:[%s2 + $0xc0] sm:$0xff]
    %v2034 = vld [vmem:[%s2 + $0xc8] sm:$0xff]
    %v2035 = vld [vmem:[%s2 + $0xd0] sm:$0xff]
    %v2036 = vld [vmem:[%s2 + $0xd8] sm:$0xff]
    %v2037 = vld [vmem:[%s2 + $0xe0] sm:$0xff]
    %v2038 = vld [vmem:[%s2 + $0xe8] sm:$0xff]
    %v2039 = vld [vmem:[%s2 + $0xf0] sm:$0xff]
    %v2040 = vld [vmem:[%s2 + $0xf8] sm:$0xff]
    %v2073 = vunpack.c.l.b16 %v2009
    %v2074 = vunpack.c.h.b16 %v2009
    %v2075 = vunpack.c.l.b16 %v2010
    %v2076 = vunpack.c.h.b16 %v2010
    %v2077 = vunpack.c.l.b16 %v2011
    %v2078 = vunpack.c.h.b16 %v2011
    %v2079 = vunpack.c.l.b16 %v2012
    %v2080 = vunpack.c.h.b16 %v2012
    %v2081 = vunpack.c.l.b16 %v2013
    %v2082 = vunpack.c.h.b16 %v2013
    %v2083 = vunpack.c.l.b16 %v2014
    %v2084 = vunpack.c.h.b16 %v2014
    %v2085 = vunpack.c.l.b16 %v2015
    %v2086 = vunpack.c.h.b16 %v2015
    %v2087 = vunpack.c.l.b16 %v2016
    %v2088 = vunpack.c.h.b16 %v2016
    %v2089 = vunpack.c.l.b16 %v2017
    %v2090 = vunpack.c.h.b16 %v2017
    %v2091 = vunpack.c.l.b16 %v2018
    %v2092 = vunpack.c.h.b16 %v2018
    %v2093 = vunpack.c.l.b16 %v2019
    %v2094 = vunpack.c.h.b16 %v2019
    %v2095 = vunpack.c.l.b16 %v2020
    %v2096 = vunpack.c.h.b16 %v2020
    %v2097 = vunpack.c.l.b16 %v2021
    %v2098 = vunpack.c.h.b16 %v2021
    %v2099 = vunpack.c.l.b16 %v2022
    %v2100 = vunpack.c.h.b16 %v2022
    %v2101 = vunpack.c.l.b16 %v2023
    %v2102 = vunpack.c.h.b16 %v2023
    %v2103 = vunpack.c.l.b16 %v2024
    %v2104 = vunpack.c.h.b16 %v2024
    %v2105 = vunpack.c.l.b16 %v2025
    %v2106 = vunpack.c.h.b16 %v2025
    %v2107 = vunpack.c.l.b16 %v2026
    %v2108 = vunpack.c.h.b16 %v2026
    %v2109 = vunpack.c.l.b16 %v2027
    %v2110 = vunpack.c.h.b16 %v2027
    %v2111 = vunpack.c.l.b16 %v2028
    %v2112 = vunpack.c.h.b16 %v2028
    %v2113 = vunpack.c.l.b16 %v2029
    %v2114 = vunpack.c.h.b16 %v2029
    %v2115 = vunpack.c.l.b16 %v2030
    %v2116 = vunpack.c.h.b16 %v2030
    %v2117 = vunpack.c.l.b16 %v2031
    %v2118 = vunpack.c.h.b16 %v2031
    %v2119 = vunpack.c.l.b16 %v2032
    %v2120 = vunpack.c.h.b16 %v2032
    %v2121 = vunpack.c.l.b16 %v2033
    %v2122 = vunpack.c.h.b16 %v2033
    %v2123 = vunpack.c.l.b16 %v2034
    %v2124 = vunpack.c.h.b16 %v2034
    %v2125 = vunpack.c.l.b16 %v2035
    %v2126 = vunpack.c.h.b16 %v2035
    %v2127 = vunpack.c.l.b16 %v2036
    %v2128 = vunpack.c.h.b16 %v2036
    %v2129 = vunpack.c.l.b16 %v2037
    %v2130 = vunpack.c.h.b16 %v2037
    %v2131 = vunpack.c.l.b16 %v2038
    %v2132 = vunpack.c.h.b16 %v2038
    %v2133 = vunpack.c.l.b16 %v2039
    %v2134 = vunpack.c.h.b16 %v2039
    %v2135 = vunpack.c.l.b16 %v2040
    %v2136 = vunpack.c.h.b16 %v2040
    %v2137 = vpack.c.b16 %v2077, %v2073
    %v2138 = vpack.c.b16 %v2078, %v2074
    %v2139 = vpack.c.b16 %v2079, %v2075
    %v2140 = vpack.c.b16 %v2080, %v2076
    %v2141 = vpack.c.b16 %v2085, %v2081
    %v2142 = vpack.c.b16 %v2086, %v2082
    %v2143 = vpack.c.b16 %v2087, %v2083
    %v2144 = vpack.c.b16 %v2088, %v2084
    %v2145 = vpack.c.b16 %v2093, %v2089
    %v2146 = vpack.c.b16 %v2094, %v2090
    %v2147 = vpack.c.b16 %v2095, %v2091
    %v2148 = vpack.c.b16 %v2096, %v2092
    %v2149 = vpack.c.b16 %v2101, %v2097
    %v2150 = vpack.c.b16 %v2102, %v2098
    %v2151 = vpack.c.b16 %v2103, %v2099
    %v2152 = vpack.c.b16 %v2104, %v2100
    %v2153 = vpack.c.b16 %v2109, %v2105
    %v2154 = vpack.c.b16 %v2110, %v2106
    %v2155 = vpack.c.b16 %v2111, %v2107
    %v2156 = vpack.c.b16 %v2112, %v2108
    %v2157 = vpack.c.b16 %v2117, %v2113
    %v2158 = vpack.c.b16 %v2118, %v2114
    %v2159 = vpack.c.b16 %v2119, %v2115
    %v2160 = vpack.c.b16 %v2120, %v2116
    %v2161 = vpack.c.b16 %v2125, %v2121
    %v2162 = vpack.c.b16 %v2126, %v2122
    %v2163 = vpack.c.b16 %v2127, %v2123
    %v2164 = vpack.c.b16 %v2128, %v2124
    %v2165 = vpack.c.b16 %v2133, %v2129
    %v2166 = vpack.c.b16 %v2134, %v2130
    %v2167 = vpack.c.b16 %v2135, %v2131
    %v2168 = vpack.c.b16 %v2136, %v2132
    %2201 = vmatpush.bf16.msra.mxu0 %v2165
    %2202 = vmatpush.bf16.msra.mxu0 %v2161
    %2203 = vmatpush.bf16.msra.mxu0 %v2157
    %2204 = vmatpush.bf16.msra.mxu0 %v2153
    %2205 = vmatpush.bf16.msra.mxu0 %v2149
    %2206 = vmatpush.bf16.msra.mxu0 %v2145
    %2207 = vmatpush.bf16.msra.mxu0 %v2141
    %2208 = vmatpush.bf16.msra.mxu0 %v2137
    %2209 = vmatmul.bf16.gmra.mxu0 %v2008
    %v2210 = vpop.f32.mrf.mxu0
    %v2211 = vadd.f32 0.0, %v2210
    %v2212 = vpop.f32.mrf.mxu0
    %2213 = vdwg.mxu0
    %2214 = vmatpush.bf16.msra.mxu0 %v2166
    %2215 = vmatpush.bf16.msra.mxu0 %v2162
    %2216 = vmatpush.bf16.msra.mxu0 %v2158
    %2217 = vmatpush.bf16.msra.mxu0 %v2154
    %2218 = vmatpush.bf16.msra.mxu0 %v2150
    %2219 = vmatpush.bf16.msra.mxu0 %v2146
    %2220 = vmatpush.bf16.msra.mxu0 %v2142
    %2221 = vmatpush.bf16.msra.mxu0 %v2138
    %2222 = vmatmul.bf16.gmra.mxu0 %v2008
    %v2223 = vpop.f32.mrf.mxu0
    %v2224 = vadd.f32 0.0, %v2223
    %v2225 = vpop.f32.mrf.mxu0
    %2226 = vdwg.mxu0
    %2227 = vmatpush.bf16.msra.mxu0 %v2167
    %2228 = vmatpush.bf16.msra.mxu0 %v2163
    %2229 = vmatpush.bf16.msra.mxu0 %v2159
    %2230 = vmatpush.bf16.msra.mxu0 %v2155
    %2231 = vmatpush.bf16.msra.mxu0 %v2151
    %2232 = vmatpush.bf16.msra.mxu0 %v2147
    %2233 = vmatpush.bf16.msra.mxu0 %v2143
    %2234 = vmatpush.bf16.msra.mxu0 %v2139
    %2235 = vmatmul.bf16.gmra.mxu0 %v2008
    %v2236 = vpop.f32.mrf.mxu0
    %v2237 = vadd.f32 0.0, %v2236
    %v2238 = vpop.f32.mrf.mxu0
    %2239 = vdwg.mxu0
    %2240 = vmatpush.bf16.msra.mxu0 %v2168
    %2241 = vmatpush.bf16.msra.mxu0 %v2164
    %2242 = vmatpush.bf16.msra.mxu0 %v2160
    %2243 = vmatpush.bf16.msra.mxu0 %v2156
    %2244 = vmatpush.bf16.msra.mxu0 %v2152
    %2245 = vmatpush.bf16.msra.mxu0 %v2148
    %2246 = vmatpush.bf16.msra.mxu0 %v2144
    %2247 = vmatpush.bf16.msra.mxu0 %v2140
    %2248 = vmatmul.bf16.gmra.mxu0 %v2008
    %v2249 = vpop.f32.mrf.mxu0
    %v2250 = vadd.f32 0.0, %v2249
    %v2251 = vpop.f32.mrf.mxu0
    %2252 = vdwg.mxu0
    %v2255 = vunpack.c.l.b16 %v2005
    %v2256 = vunpack.c.h.b16 %v2005
    %v2257 = vunpack.c.l.b16 %v2006
    %v2258 = vunpack.c.h.b16 %v2006
    %v2259 = vpack.c.b16 %v2255, %v2255
    %v2260 = vpack.c.b16 %v2256, %v2256
    %v2261 = vpack.c.b16 %v2257, %v2257
    %v2262 = vpack.c.b16 %v2258, %v2258
    %v2264 = vsel %vm296, %v2004, 0
    %v2267 = vsel %vm300, %v2259, 0
    %v2270 = vsel %vm300, %v2260, 0
    %v2273 = vsel %vm300, %v2261, 0
    %v2276 = vsel %vm300, %v2262, 0
    %2278 = vmatpush.bf16.msra.mxu0 0
    %2279 = vmatpush.bf16.msra.mxu0 0
    %2280 = vmatpush.bf16.msra.mxu0 0
    %2281 = vmatpush.bf16.msra.mxu0 0
    %2282 = vmatpush.bf16.msra.mxu0 0
    %2283 = vmatpush.bf16.msra.mxu0 0
    %2284 = vmatpush.bf16.msra.mxu0 0
    %2285 = vmatpush.bf16.msra.mxu0 %v2267
    %2286 = vmatmul.bf16.gmra.mxu0 %v2264
    %v2287 = vpop.f32.mrf.mxu0
    %v2288 = vadd.f32 %v2211, %v2287
    %v2289 = vpop.f32.mrf.mxu0
    %2290 = vdwg.mxu0
    %2291 = vmatpush.bf16.msra.mxu0 0
    %2292 = vmatpush.bf16.msra.mxu0 0
    %2293 = vmatpush.bf16.msra.mxu0 0
    %2294 = vmatpush.bf16.msra.mxu0 0
    %2295 = vmatpush.bf16.msra.mxu0 0
    %2296 = vmatpush.bf16.msra.mxu0 0
    %2297 = vmatpush.bf16.msra.mxu0 0
    %2298 = vmatpush.bf16.msra.mxu0 %v2270
    %2299 = vmatmul.bf16.gmra.mxu0 %v2264
    %v2300 = vpop.f32.mrf.mxu0
    %v2301 = vadd.f32 %v2224, %v2300
    %v2302 = vpop.f32.mrf.mxu0
    %2303 = vdwg.mxu0
    %2304 = vmatpush.bf16.msra.mxu0 0
    %2305 = vmatpush.bf16.msra.mxu0 0
    %2306 = vmatpush.bf16.msra.mxu0 0
    %2307 = vmatpush.bf16.msra.mxu0 0
    %2308 = vmatpush.bf16.msra.mxu0 0
    %2309 = vmatpush.bf16.msra.mxu0 0
    %2310 = vmatpush.bf16.msra.mxu0 0
    %2311 = vmatpush.bf16.msra.mxu0 %v2273
    %2312 = vmatmul.bf16.gmra.mxu0 %v2264
    %v2313 = vpop.f32.mrf.mxu0
    %v2314 = vadd.f32 %v2237, %v2313
    %v2315 = vpop.f32.mrf.mxu0
    %2316 = vdwg.mxu0
    %2317 = vmatpush.bf16.msra.mxu0 0
    %2318 = vmatpush.bf16.msra.mxu0 0
    %2319 = vmatpush.bf16.msra.mxu0 0
    %2320 = vmatpush.bf16.msra.mxu0 0
    %2321 = vmatpush.bf16.msra.mxu0 0
    %2322 = vmatpush.bf16.msra.mxu0 0
    %2323 = vmatpush.bf16.msra.mxu0 0
    %2324 = vmatpush.bf16.msra.mxu0 %v2276
    %2325 = vmatmul.bf16.gmra.mxu0 %v2264
    %v2326 = vpop.f32.mrf.mxu0
    %v2327 = vadd.f32 %v2250, %v2326
    %v2328 = vpop.f32.mrf.mxu0
    %2329 = vdwg.mxu0
    %v2330 = vxor.u32 %v2288, 2147483648
    %v2331 = vmul.f32 %v2330, 1.442695
    %v2332 = vpow.pop %v2331
    %v2333 = vadd.f32 %v2332, 1.0
    %v2334 = vrcp.pop %v2333
    %v2335 = vmul.f32 %v2333, %v2334
    %v2336 = vsub.f32 1.0, %v2335
    %v2337 = vmul.f32 %v2334, %v2336
    %v2338 = vadd.f32 %v2334, %v2337
    %vm2339 = vweird.f32 %v2333
    %vm2340 = vweird.f32 %v2334
    %vm2341 = vmor %vm2339, %vm2340
    %v2342 = vsel %vm2341, %v2334, %v2338
    %v2343 = vand.u32 2147483647, %v2333
    %vm2344 = vcmp.eq.f32.partialorder %v2343, 8.507059e+37
    %v2345 = vand.u32 %v2333, 2147483648
    %v2346 = vor.u32 1.1754944e-38, %v2345
    %v2347 = vsel %vm2344, %v2346, %v2342
    %v2348 = vmul.f32 1.0, %v2347
    %v2349 = vxor.u32 %v2301, 2147483648
    %v2350 = vmul.f32 %v2349, 1.442695
    %v2351 = vpow.pop %v2350
    %v2352 = vadd.f32 %v2351, 1.0
    %v2353 = vrcp.pop %v2352
    %v2354 = vmul.f32 %v2352, %v2353
    %v2355 = vsub.f32 1.0, %v2354
    %v2356 = vmul.f32 %v2353, %v2355
    %v2357 = vadd.f32 %v2353, %v2356
    %vm2358 = vweird.f32 %v2352
    %vm2359 = vweird.f32 %v2353
    %vm2360 = vmor %vm2358, %vm2359
    %v2361 = vsel %vm2360, %v2353, %v2357
    %v2362 = vand.u32 2147483647, %v2352
    %vm2363 = vcmp.eq.f32.partialorder %v2362, 8.507059e+37
    %v2364 = vand.u32 %v2352, 2147483648
    %v2365 = vor.u32 1.1754944e-38, %v2364
    %v2366 = vsel %vm2363, %v2365, %v2361
    %v2367 = vmul.f32 1.0, %v2366
    %v2368 = vtanh.pop %v2314
    %v2369 = vxor.u32 %v2327, 2147483648
    %v2370 = vmul.f32 %v2369, 1.442695
    %v2371 = vpow.pop %v2370
    %v2372 = vadd.f32 %v2371, 1.0
    %v2373 = vrcp.pop %v2372
    %v2374 = vmul.f32 %v2372, %v2373
    %v2375 = vsub.f32 1.0, %v2374
    %v2376 = vmul.f32 %v2373, %v2375
    %v2377 = vadd.f32 %v2373, %v2376
    %vm2378 = vweird.f32 %v2372
    %vm2379 = vweird.f32 %v2373
    %vm2380 = vmor %vm2378, %vm2379
    %v2381 = vsel %vm2380, %v2373, %v2377
    %v2382 = vand.u32 2147483647, %v2372
    %vm2383 = vcmp.eq.f32.partialorder %v2382, 8.507059e+37
    %v2384 = vand.u32 %v2372, 2147483648
    %v2385 = vor.u32 1.1754944e-38, %v2384
    %v2386 = vsel %vm2383, %v2385, %v2381
    %v2387 = vmul.f32 1.0, %v2386
    %v2388 = vld [vmem:[#allocation3] sm:$0xff]
    %v2389 = vmul.f32 %v2367, %v2388
    %v2390 = vmul.f32 %v2348, %v2368
    %v2391 = vadd.f32 %v2389, %v2390
    %v2392 = vtanh.pop %v2391
    %v2393 = vmul.f32 %v2387, %v2392
    %2394 = vst [vmem:[#allocation2] sm:$0xff] %v2393
    %2395 = vst [vmem:[#allocation3] sm:$0xff] %v2391
    %s2396 = scalar_lea.vmem %s0, 24
    %v2397 = vld [vmem:[%s2396] sm:$0xf]
    %v2398 = vld [vmem:[%s1] sm:$0xff]
    %v2399 = vld [vmem:[%s1 + $0x8] sm:$0xff]
    %v2400 = vld [vmem:[#allocation2] sm:$0xff]
    %v2401 = vpack.c.bf16 %v2400, %v2400
    %v2402 = vld [vmem:[%s2] sm:$0xff]
    %v2403 = vld [vmem:[%s2 + $0x8] sm:$0xff]
    %v2404 = vld [vmem:[%s2 + $0x10] sm:$0xff]
    %v2405 = vld [vmem:[%s2 + $0x18] sm:$0xff]
    %v2406 = vld [vmem:[%s2 + $0x20] sm:$0xff]
    %v2407 = vld [vmem:[%s2 + $0x28] sm:$0xff]
    %v2408 = vld [vmem:[%s2 + $0x30] sm:$0xff]
    %v2409 = vld [vmem:[%s2 + $0x38] sm:$0xff]
    %v2410 = vld [vmem:[%s2 + $0x40] sm:$0xff]
    %v2411 = vld [vmem:[%s2 + $0x48] sm:$0xff]
    %v2412 = vld [vmem:[%s2 + $0x50] sm:$0xff]
    %v2413 = vld [vmem:[%s2 + $0x58] sm:$0xff]
    %v2414 = vld [vmem:[%s2 + $0x60] sm:$0xff]
    %v2415 = vld [vmem:[%s2 + $0x68] sm:$0xff]
    %v2416 = vld [vmem:[%s2 + $0x70] sm:$0xff]
    %v2417 = vld [vmem:[%s2 + $0x78] sm:$0xff]
    %v2418 = vld [vmem:[%s2 + $0x80] sm:$0xff]
    %v2419 = vld [vmem:[%s2 + $0x88] sm:$0xff]
    %v2420 = vld [vmem:[%s2 + $0x90] sm:$0xff]
    %v2421 = vld [vmem:[%s2 + $0x98] sm:$0xff]
    %v2422 = vld [vmem:[%s2 + $0xa0] sm:$0xff]
    %v2423 = vld [vmem:[%s2 + $0xa8] sm:$0xff]
    %v2424 = vld [vmem:[%s2 + $0xb0] sm:$0xff]
    %v2425 = vld [vmem:[%s2 + $0xb8] sm:$0xff]
    %v2426 = vld [vmem:[%s2 + $0xc0] sm:$0xff]
    %v2427 = vld [vmem:[%s2 + $0xc8] sm:$0xff]
    %v2428 = vld [vmem:[%s2 + $0xd0] sm:$0xff]
    %v2429 = vld [vmem:[%s2 + $0xd8] sm:$0xff]
    %v2430 = vld [vmem:[%s2 + $0xe0] sm:$0xff]
    %v2431 = vld [vmem:[%s2 + $0xe8] sm:$0xff]
    %v2432 = vld [vmem:[%s2 + $0xf0] sm:$0xff]
    %v2433 = vld [vmem:[%s2 + $0xf8] sm:$0xff]
    %v2466 = vunpack.c.l.b16 %v2402
    %v2467 = vunpack.c.h.b16 %v2402
    %v2468 = vunpack.c.l.b16 %v2403
    %v2469 = vunpack.c.h.b16 %v2403
    %v2470 = vunpack.c.l.b16 %v2404
    %v2471 = vunpack.c.h.b16 %v2404
    %v2472 = vunpack.c.l.b16 %v2405
    %v2473 = vunpack.c.h.b16 %v2405
    %v2474 = vunpack.c.l.b16 %v2406
    %v2475 = vunpack.c.h.b16 %v2406
    %v2476 = vunpack.c.l.b16 %v2407
    %v2477 = vunpack.c.h.b16 %v2407
    %v2478 = vunpack.c.l.b16 %v2408
    %v2479 = vunpack.c.h.b16 %v2408
    %v2480 = vunpack.c.l.b16 %v2409
    %v2481 = vunpack.c.h.b16 %v2409
    %v2482 = vunpack.c.l.b16 %v2410
    %v2483 = vunpack.c.h.b16 %v2410
    %v2484 = vunpack.c.l.b16 %v2411
    %v2485 = vunpack.c.h.b16 %v2411
    %v2486 = vunpack.c.l.b16 %v2412
    %v2487 = vunpack.c.h.b16 %v2412
    %v2488 = vunpack.c.l.b16 %v2413
    %v2489 = vunpack.c.h.b16 %v2413
    %v2490 = vunpack.c.l.b16 %v2414
    %v2491 = vunpack.c.h.b16 %v2414
    %v2492 = vunpack.c.l.b16 %v2415
    %v2493 = vunpack.c.h.b16 %v2415
    %v2494 = vunpack.c.l.b16 %v2416
    %v2495 = vunpack.c.h.b16 %v2416
    %v2496 = vunpack.c.l.b16 %v2417
    %v2497 = vunpack.c.h.b16 %v2417
    %v2498 = vunpack.c.l.b16 %v2418
    %v2499 = vunpack.c.h.b16 %v2418
    %v2500 = vunpack.c.l.b16 %v2419
    %v2501 = vunpack.c.h.b16 %v2419
    %v2502 = vunpack.c.l.b16 %v2420
    %v2503 = vunpack.c.h.b16 %v2420
    %v2504 = vunpack.c.l.b16 %v2421
    %v2505 = vunpack.c.h.b16 %v2421
    %v2506 = vunpack.c.l.b16 %v2422
    %v2507 = vunpack.c.h.b16 %v2422
    %v2508 = vunpack.c.l.b16 %v2423
    %v2509 = vunpack.c.h.b16 %v2423
    %v2510 = vunpack.c.l.b16 %v2424
    %v2511 = vunpack.c.h.b16 %v2424
    %v2512 = vunpack.c.l.b16 %v2425
    %v2513 = vunpack.c.h.b16 %v2425
    %v2514 = vunpack.c.l.b16 %v2426
    %v2515 = vunpack.c.h.b16 %v2426
    %v2516 = vunpack.c.l.b16 %v2427
    %v2517 = vunpack.c.h.b16 %v2427
    %v2518 = vunpack.c.l.b16 %v2428
    %v2519 = vunpack.c.h.b16 %v2428
    %v2520 = vunpack.c.l.b16 %v2429
    %v2521 = vunpack.c.h.b16 %v2429
    %v2522 = vunpack.c.l.b16 %v2430
    %v2523 = vunpack.c.h.b16 %v2430
    %v2524 = vunpack.c.l.b16 %v2431
    %v2525 = vunpack.c.h.b16 %v2431
    %v2526 = vunpack.c.l.b16 %v2432
    %v2527 = vunpack.c.h.b16 %v2432
    %v2528 = vunpack.c.l.b16 %v2433
    %v2529 = vunpack.c.h.b16 %v2433
    %v2530 = vpack.c.b16 %v2470, %v2466
    %v2531 = vpack.c.b16 %v2471, %v2467
    %v2532 = vpack.c.b16 %v2472, %v2468
    %v2533 = vpack.c.b16 %v2473, %v2469
    %v2534 = vpack.c.b16 %v2478, %v2474
    %v2535 = vpack.c.b16 %v2479, %v2475
    %v2536 = vpack.c.b16 %v2480, %v2476
    %v2537 = vpack.c.b16 %v2481, %v2477
    %v2538 = vpack.c.b16 %v2486, %v2482
    %v2539 = vpack.c.b16 %v2487, %v2483
    %v2540 = vpack.c.b16 %v2488, %v2484
    %v2541 = vpack.c.b16 %v2489, %v2485
    %v2542 = vpack.c.b16 %v2494, %v2490
    %v2543 = vpack.c.b16 %v2495, %v2491
    %v2544 = vpack.c.b16 %v2496, %v2492
    %v2545 = vpack.c.b16 %v2497, %v2493
    %v2546 = vpack.c.b16 %v2502, %v2498
    %v2547 = vpack.c.b16 %v2503, %v2499
    %v2548 = vpack.c.b16 %v2504, %v2500
    %v2549 = vpack.c.b16 %v2505, %v2501
    %v2550 = vpack.c.b16 %v2510, %v2506
    %v2551 = vpack.c.b16 %v2511, %v2507
    %v2552 = vpack.c.b16 %v2512, %v2508
    %v2553 = vpack.c.b16 %v2513, %v2509
    %v2554 = vpack.c.b16 %v2518, %v2514
    %v2555 = vpack.c.b16 %v2519, %v2515
    %v2556 = vpack.c.b16 %v2520, %v2516
    %v2557 = vpack.c.b16 %v2521, %v2517
    %v2558 = vpack.c.b16 %v2526, %v2522
    %v2559 = vpack.c.b16 %v2527, %v2523
    %v2560 = vpack.c.b16 %v2528, %v2524
    %v2561 = vpack.c.b16 %v2529, %v2525
    %2594 = vmatpush.bf16.msra.mxu0 %v2558
    %2595 = vmatpush.bf16.msra.mxu0 %v2554
    %2596 = vmatpush.bf16.msra.mxu0 %v2550
    %2597 = vmatpush.bf16.msra.mxu0 %v2546
    %2598 = vmatpush.bf16.msra.mxu0 %v2542
    %2599 = vmatpush.bf16.msra.mxu0 %v2538
    %2600 = vmatpush.bf16.msra.mxu0 %v2534
    %2601 = vmatpush.bf16.msra.mxu0 %v2530
    %2602 = vmatmul.bf16.gmra.mxu0 %v2401
    %v2603 = vpop.f32.mrf.mxu0
    %v2604 = vadd.f32 0.0, %v2603
    %v2605 = vpop.f32.mrf.mxu0
    %2606 = vdwg.mxu0
    %2607 = vmatpush.bf16.msra.mxu0 %v2559
    %2608 = vmatpush.bf16.msra.mxu0 %v2555
    %2609 = vmatpush.bf16.msra.mxu0 %v2551
    %2610 = vmatpush.bf16.msra.mxu0 %v2547
    %2611 = vmatpush.bf16.msra.mxu0 %v2543
    %2612 = vmatpush.bf16.msra.mxu0 %v2539
    %2613 = vmatpush.bf16.msra.mxu0 %v2535
    %2614 = vmatpush.bf16.msra.mxu0 %v2531
    %2615 = vmatmul.bf16.gmra.mxu0 %v2401
    %v2616 = vpop.f32.mrf.mxu0
    %v2617 = vadd.f32 0.0, %v2616
    %v2618 = vpop.f32.mrf.mxu0
    %2619 = vdwg.mxu0
    %2620 = vmatpush.bf16.msra.mxu0 %v2560
    %2621 = vmatpush.bf16.msra.mxu0 %v2556
    %2622 = vmatpush.bf16.msra.mxu0 %v2552
    %2623 = vmatpush.bf16.msra.mxu0 %v2548
    %2624 = vmatpush.bf16.msra.mxu0 %v2544
    %2625 = vmatpush.bf16.msra.mxu0 %v2540
    %2626 = vmatpush.bf16.msra.mxu0 %v2536
    %2627 = vmatpush.bf16.msra.mxu0 %v2532
    %2628 = vmatmul.bf16.gmra.mxu0 %v2401
    %v2629 = vpop.f32.mrf.mxu0
    %v2630 = vadd.f32 0.0, %v2629
    %v2631 = vpop.f32.mrf.mxu0
    %2632 = vdwg.mxu0
    %2633 = vmatpush.bf16.msra.mxu0 %v2561
    %2634 = vmatpush.bf16.msra.mxu0 %v2557
    %2635 = vmatpush.bf16.msra.mxu0 %v2553
    %2636 = vmatpush.bf16.msra.mxu0 %v2549
    %2637 = vmatpush.bf16.msra.mxu0 %v2545
    %2638 = vmatpush.bf16.msra.mxu0 %v2541
    %2639 = vmatpush.bf16.msra.mxu0 %v2537
    %2640 = vmatpush.bf16.msra.mxu0 %v2533
    %2641 = vmatmul.bf16.gmra.mxu0 %v2401
    %v2642 = vpop.f32.mrf.mxu0
    %v2643 = vadd.f32 0.0, %v2642
    %v2644 = vpop.f32.mrf.mxu0
    %2645 = vdwg.mxu0
    %v2648 = vunpack.c.l.b16 %v2398
    %v2649 = vunpack.c.h.b16 %v2398
    %v2650 = vunpack.c.l.b16 %v2399
    %v2651 = vunpack.c.h.b16 %v2399
    %v2652 = vpack.c.b16 %v2648, %v2648
    %v2653 = vpack.c.b16 %v2649, %v2649
    %v2654 = vpack.c.b16 %v2650, %v2650
    %v2655 = vpack.c.b16 %v2651, %v2651
    %v2657 = vsel %vm296, %v2397, 0
    %v2660 = vsel %vm300, %v2652, 0
    %v2663 = vsel %vm300, %v2653, 0
    %v2666 = vsel %vm300, %v2654, 0
    %v2669 = vsel %vm300, %v2655, 0
    %2671 = vmatpush.bf16.msra.mxu0 0
    %2672 = vmatpush.bf16.msra.mxu0 0
    %2673 = vmatpush.bf16.msra.mxu0 0
    %2674 = vmatpush.bf16.msra.mxu0 0
    %2675 = vmatpush.bf16.msra.mxu0 0
    %2676 = vmatpush.bf16.msra.mxu0 0
    %2677 = vmatpush.bf16.msra.mxu0 0
    %2678 = vmatpush.bf16.msra.mxu0 %v2660
    %2679 = vmatmul.bf16.gmra.mxu0 %v2657
    %v2680 = vpop.f32.mrf.mxu0
    %v2681 = vadd.f32 %v2604, %v2680
    %v2682 = vpop.f32.mrf.mxu0
    %2683 = vdwg.mxu0
    %2684 = vmatpush.bf16.msra.mxu0 0
    %2685 = vmatpush.bf16.msra.mxu0 0
    %2686 = vmatpush.bf16.msra.mxu0 0
    %2687 = vmatpush.bf16.msra.mxu0 0
    %2688 = vmatpush.bf16.msra.mxu0 0
    %2689 = vmatpush.bf16.msra.mxu0 0
    %2690 = vmatpush.bf16.msra.mxu0 0
    %2691 = vmatpush.bf16.msra.mxu0 %v2663
    %2692 = vmatmul.bf16.gmra.mxu0 %v2657
    %v2693 = vpop.f32.mrf.mxu0
    %v2694 = vadd.f32 %v2617, %v2693
    %v2695 = vpop.f32.mrf.mxu0
    %2696 = vdwg.mxu0
    %2697 = vmatpush.bf16.msra.mxu0 0
    %2698 = vmatpush.bf16.msra.mxu0 0
    %2699 = vmatpush.bf16.msra.mxu0 0
    %2700 = vmatpush.bf16.msra.mxu0 0
    %2701 = vmatpush.bf16.msra.mxu0 0
    %2702 = vmatpush.bf16.msra.mxu0 0
    %2703 = vmatpush.bf16.msra.mxu0 0
    %2704 = vmatpush.bf16.msra.mxu0 %v2666
    %2705 = vmatmul.bf16.gmra.mxu0 %v2657
    %v2706 = vpop.f32.mrf.mxu0
    %v2707 = vadd.f32 %v2630, %v2706
    %v2708 = vpop.f32.mrf.mxu0
    %2709 = vdwg.mxu0
    %2710 = vmatpush.bf16.msra.mxu0 0
    %2711 = vmatpush.bf16.msra.mxu0 0
    %2712 = vmatpush.bf16.msra.mxu0 0
    %2713 = vmatpush.bf16.msra.mxu0 0
    %2714 = vmatpush.bf16.msra.mxu0 0
    %2715 = vmatpush.bf16.msra.mxu0 0
    %2716 = vmatpush.bf16.msra.mxu0 0
    %2717 = vmatpush.bf16.msra.mxu0 %v2669
    %2718 = vmatmul.bf16.gmra.mxu0 %v2657
    %v2719 = vpop.f32.mrf.mxu0
    %v2720 = vadd.f32 %v2643, %v2719
    %v2721 = vpop.f32.mrf.mxu0
    %2722 = vdwg.mxu0
    %v2723 = vxor.u32 %v2681, 2147483648
    %v2724 = vmul.f32 %v2723, 1.442695
    %v2725 = vpow.pop %v2724
    %v2726 = vadd.f32 %v2725, 1.0
    %v2727 = vrcp.pop %v2726
    %v2728 = vmul.f32 %v2726, %v2727
    %v2729 = vsub.f32 1.0, %v2728
    %v2730 = vmul.f32 %v2727, %v2729
    %v2731 = vadd.f32 %v2727, %v2730
    %vm2732 = vweird.f32 %v2726
    %vm2733 = vweird.f32 %v2727
    %vm2734 = vmor %vm2732, %vm2733
    %v2735 = vsel %vm2734, %v2727, %v2731
    %v2736 = vand.u32 2147483647, %v2726
    %vm2737 = vcmp.eq.f32.partialorder %v2736, 8.507059e+37
    %v2738 = vand.u32 %v2726, 2147483648
    %v2739 = vor.u32 1.1754944e-38, %v2738
    %v2740 = vsel %vm2737, %v2739, %v2735
    %v2741 = vmul.f32 1.0, %v2740
    %v2742 = vxor.u32 %v2694, 2147483648
    %v2743 = vmul.f32 %v2742, 1.442695
    %v2744 = vpow.pop %v2743
    %v2745 = vadd.f32 %v2744, 1.0
    %v2746 = vrcp.pop %v2745
    %v2747 = vmul.f32 %v2745, %v2746
    %v2748 = vsub.f32 1.0, %v2747
    %v2749 = vmul.f32 %v2746, %v2748
    %v2750 = vadd.f32 %v2746, %v2749
    %vm2751 = vweird.f32 %v2745
    %vm2752 = vweird.f32 %v2746
    %vm2753 = vmor %vm2751, %vm2752
    %v2754 = vsel %vm2753, %v2746, %v2750
    %v2755 = vand.u32 2147483647, %v2745
    %vm2756 = vcmp.eq.f32.partialorder %v2755, 8.507059e+37
    %v2757 = vand.u32 %v2745, 2147483648
    %v2758 = vor.u32 1.1754944e-38, %v2757
    %v2759 = vsel %vm2756, %v2758, %v2754
    %v2760 = vmul.f32 1.0, %v2759
    %v2761 = vtanh.pop %v2707
    %v2762 = vxor.u32 %v2720, 2147483648
    %v2763 = vmul.f32 %v2762, 1.442695
    %v2764 = vpow.pop %v2763
    %v2765 = vadd.f32 %v2764, 1.0
    %v2766 = vrcp.pop %v2765
    %v2767 = vmul.f32 %v2765, %v2766
    %v2768 = vsub.f32 1.0, %v2767
    %v2769 = vmul.f32 %v2766, %v2768
    %v2770 = vadd.f32 %v2766, %v2769
    %vm2771 = vweird.f32 %v2765
    %vm2772 = vweird.f32 %v2766
    %vm2773 = vmor %vm2771, %vm2772
    %v2774 = vsel %vm2773, %v2766, %v2770
    %v2775 = vand.u32 2147483647, %v2765
    %vm2776 = vcmp.eq.f32.partialorder %v2775, 8.507059e+37
    %v2777 = vand.u32 %v2765, 2147483648
    %v2778 = vor.u32 1.1754944e-38, %v2777
    %v2779 = vsel %vm2776, %v2778, %v2774
    %v2780 = vmul.f32 1.0, %v2779
    %v2781 = vld [vmem:[#allocation3] sm:$0xff]
    %v2782 = vmul.f32 %v2760, %v2781
    %v2783 = vmul.f32 %v2741, %v2761
    %v2784 = vadd.f32 %v2782, %v2783
    %v2785 = vtanh.pop %v2784
    %v2786 = vmul.f32 %v2780, %v2785
    %2787 = vst [vmem:[#allocation2] sm:$0xff] %v2786
    %2788 = vst [vmem:[#allocation3] sm:$0xff] %v2784
    %s2789 = scalar_lea.vmem %s0, 28
    %v2790 = vld [vmem:[%s2789] sm:$0xf]
    %v2791 = vld [vmem:[%s1] sm:$0xff]
    %v2792 = vld [vmem:[%s1 + $0x8] sm:$0xff]
    %v2793 = vld [vmem:[#allocation2] sm:$0xff]
    %v2794 = vpack.c.bf16 %v2793, %v2793
    %v2795 = vld [vmem:[%s2] sm:$0xff]
    %v2796 = vld [vmem:[%s2 + $0x8] sm:$0xff]
    %v2797 = vld [vmem:[%s2 + $0x10] sm:$0xff]
    %v2798 = vld [vmem:[%s2 + $0x18] sm:$0xff]
    %v2799 = vld [vmem:[%s2 + $0x20] sm:$0xff]
    %v2800 = vld [vmem:[%s2 + $0x28] sm:$0xff]
    %v2801 = vld [vmem:[%s2 + $0x30] sm:$0xff]
    %v2802 = vld [vmem:[%s2 + $0x38] sm:$0xff]
    %v2803 = vld [vmem:[%s2 + $0x40] sm:$0xff]
    %v2804 = vld [vmem:[%s2 + $0x48] sm:$0xff]
    %v2805 = vld [vmem:[%s2 + $0x50] sm:$0xff]
    %v2806 = vld [vmem:[%s2 + $0x58] sm:$0xff]
    %v2807 = vld [vmem:[%s2 + $0x60] sm:$0xff]
    %v2808 = vld [vmem:[%s2 + $0x68] sm:$0xff]
    %v2809 = vld [vmem:[%s2 + $0x70] sm:$0xff]
    %v2810 = vld [vmem:[%s2 + $0x78] sm:$0xff]
    %v2811 = vld [vmem:[%s2 + $0x80] sm:$0xff]
    %v2812 = vld [vmem:[%s2 + $0x88] sm:$0xff]
    %v2813 = vld [vmem:[%s2 + $0x90] sm:$0xff]
    %v2814 = vld [vmem:[%s2 + $0x98] sm:$0xff]
    %v2815 = vld [vmem:[%s2 + $0xa0] sm:$0xff]
    %v2816 = vld [vmem:[%s2 + $0xa8] sm:$0xff]
    %v2817 = vld [vmem:[%s2 + $0xb0] sm:$0xff]
    %v2818 = vld [vmem:[%s2 + $0xb8] sm:$0xff]
    %v2819 = vld [vmem:[%s2 + $0xc0] sm:$0xff]
    %v2820 = vld [vmem:[%s2 + $0xc8] sm:$0xff]
    %v2821 = vld [vmem:[%s2 + $0xd0] sm:$0xff]
    %v2822 = vld [vmem:[%s2 + $0xd8] sm:$0xff]
    %v2823 = vld [vmem:[%s2 + $0xe0] sm:$0xff]
    %v2824 = vld [vmem:[%s2 + $0xe8] sm:$0xff]
    %v2825 = vld [vmem:[%s2 + $0xf0] sm:$0xff]
    %v2826 = vld [vmem:[%s2 + $0xf8] sm:$0xff]
    %v2859 = vunpack.c.l.b16 %v2795
    %v2860 = vunpack.c.h.b16 %v2795
    %v2861 = vunpack.c.l.b16 %v2796
    %v2862 = vunpack.c.h.b16 %v2796
    %v2863 = vunpack.c.l.b16 %v2797
    %v2864 = vunpack.c.h.b16 %v2797
    %v2865 = vunpack.c.l.b16 %v2798
    %v2866 = vunpack.c.h.b16 %v2798
    %v2867 = vunpack.c.l.b16 %v2799
    %v2868 = vunpack.c.h.b16 %v2799
    %v2869 = vunpack.c.l.b16 %v2800
    %v2870 = vunpack.c.h.b16 %v2800
    %v2871 = vunpack.c.l.b16 %v2801
    %v2872 = vunpack.c.h.b16 %v2801
    %v2873 = vunpack.c.l.b16 %v2802
    %v2874 = vunpack.c.h.b16 %v2802
    %v2875 = vunpack.c.l.b16 %v2803
    %v2876 = vunpack.c.h.b16 %v2803
    %v2877 = vunpack.c.l.b16 %v2804
    %v2878 = vunpack.c.h.b16 %v2804
    %v2879 = vunpack.c.l.b16 %v2805
    %v2880 = vunpack.c.h.b16 %v2805
    %v2881 = vunpack.c.l.b16 %v2806
    %v2882 = vunpack.c.h.b16 %v2806
    %v2883 = vunpack.c.l.b16 %v2807
    %v2884 = vunpack.c.h.b16 %v2807
    %v2885 = vunpack.c.l.b16 %v2808
    %v2886 = vunpack.c.h.b16 %v2808
    %v2887 = vunpack.c.l.b16 %v2809
    %v2888 = vunpack.c.h.b16 %v2809
    %v2889 = vunpack.c.l.b16 %v2810
    %v2890 = vunpack.c.h.b16 %v2810
    %v2891 = vunpack.c.l.b16 %v2811
    %v2892 = vunpack.c.h.b16 %v2811
    %v2893 = vunpack.c.l.b16 %v2812
    %v2894 = vunpack.c.h.b16 %v2812
    %v2895 = vunpack.c.l.b16 %v2813
    %v2896 = vunpack.c.h.b16 %v2813
    %v2897 = vunpack.c.l.b16 %v2814
    %v2898 = vunpack.c.h.b16 %v2814
    %v2899 = vunpack.c.l.b16 %v2815
    %v2900 = vunpack.c.h.b16 %v2815
    %v2901 = vunpack.c.l.b16 %v2816
    %v2902 = vunpack.c.h.b16 %v2816
    %v2903 = vunpack.c.l.b16 %v2817
    %v2904 = vunpack.c.h.b16 %v2817
    %v2905 = vunpack.c.l.b16 %v2818
    %v2906 = vunpack.c.h.b16 %v2818
    %v2907 = vunpack.c.l.b16 %v2819
    %v2908 = vunpack.c.h.b16 %v2819
    %v2909 = vunpack.c.l.b16 %v2820
    %v2910 = vunpack.c.h.b16 %v2820
    %v2911 = vunpack.c.l.b16 %v2821
    %v2912 = vunpack.c.h.b16 %v2821
    %v2913 = vunpack.c.l.b16 %v2822
    %v2914 = vunpack.c.h.b16 %v2822
    %v2915 = vunpack.c.l.b16 %v2823
    %v2916 = vunpack.c.h.b16 %v2823
    %v2917 = vunpack.c.l.b16 %v2824
    %v2918 = vunpack.c.h.b16 %v2824
    %v2919 = vunpack.c.l.b16 %v2825
    %v2920 = vunpack.c.h.b16 %v2825
    %v2921 = vunpack.c.l.b16 %v2826
    %v2922 = vunpack.c.h.b16 %v2826
    %v2923 = vpack.c.b16 %v2863, %v2859
    %v2924 = vpack.c.b16 %v2864, %v2860
    %v2925 = vpack.c.b16 %v2865, %v2861
    %v2926 = vpack.c.b16 %v2866, %v2862
    %v2927 = vpack.c.b16 %v2871, %v2867
    %v2928 = vpack.c.b16 %v2872, %v2868
    %v2929 = vpack.c.b16 %v2873, %v2869
    %v2930 = vpack.c.b16 %v2874, %v2870
    %v2931 = vpack.c.b16 %v2879, %v2875
    %v2932 = vpack.c.b16 %v2880, %v2876
    %v2933 = vpack.c.b16 %v2881, %v2877
    %v2934 = vpack.c.b16 %v2882, %v2878
    %v2935 = vpack.c.b16 %v2887, %v2883
    %v2936 = vpack.c.b16 %v2888, %v2884
    %v2937 = vpack.c.b16 %v2889, %v2885
    %v2938 = vpack.c.b16 %v2890, %v2886
    %v2939 = vpack.c.b16 %v2895, %v2891
    %v2940 = vpack.c.b16 %v2896, %v2892
    %v2941 = vpack.c.b16 %v2897, %v2893
    %v2942 = vpack.c.b16 %v2898, %v2894
    %v2943 = vpack.c.b16 %v2903, %v2899
    %v2944 = vpack.c.b16 %v2904, %v2900
    %v2945 = vpack.c.b16 %v2905, %v2901
    %v2946 = vpack.c.b16 %v2906, %v2902
    %v2947 = vpack.c.b16 %v2911, %v2907
    %v2948 = vpack.c.b16 %v2912, %v2908
    %v2949 = vpack.c.b16 %v2913, %v2909
    %v2950 = vpack.c.b16 %v2914, %v2910
    %v2951 = vpack.c.b16 %v2919, %v2915
    %v2952 = vpack.c.b16 %v2920, %v2916
    %v2953 = vpack.c.b16 %v2921, %v2917
    %v2954 = vpack.c.b16 %v2922, %v2918
    %2987 = vmatpush.bf16.msra.mxu0 %v2951
    %2988 = vmatpush.bf16.msra.mxu0 %v2947
    %2989 = vmatpush.bf16.msra.mxu0 %v2943
    %2990 = vmatpush.bf16.msra.mxu0 %v2939
    %2991 = vmatpush.bf16.msra.mxu0 %v2935
    %2992 = vmatpush.bf16.msra.mxu0 %v2931
    %2993 = vmatpush.bf16.msra.mxu0 %v2927
    %2994 = vmatpush.bf16.msra.mxu0 %v2923
    %2995 = vmatmul.bf16.gmra.mxu0 %v2794
    %v2996 = vpop.f32.mrf.mxu0
    %v2997 = vadd.f32 0.0, %v2996
    %v2998 = vpop.f32.mrf.mxu0
    %2999 = vdwg.mxu0
    %3000 = vmatpush.bf16.msra.mxu0 %v2952
    %3001 = vmatpush.bf16.msra.mxu0 %v2948
    %3002 = vmatpush.bf16.msra.mxu0 %v2944
    %3003 = vmatpush.bf16.msra.mxu0 %v2940
    %3004 = vmatpush.bf16.msra.mxu0 %v2936
    %3005 = vmatpush.bf16.msra.mxu0 %v2932
    %3006 = vmatpush.bf16.msra.mxu0 %v2928
    %3007 = vmatpush.bf16.msra.mxu0 %v2924
    %3008 = vmatmul.bf16.gmra.mxu0 %v2794
    %v3009 = vpop.f32.mrf.mxu0
    %v3010 = vadd.f32 0.0, %v3009
    %v3011 = vpop.f32.mrf.mxu0
    %3012 = vdwg.mxu0
    %3013 = vmatpush.bf16.msra.mxu0 %v2953
    %3014 = vmatpush.bf16.msra.mxu0 %v2949
    %3015 = vmatpush.bf16.msra.mxu0 %v2945
    %3016 = vmatpush.bf16.msra.mxu0 %v2941
    %3017 = vmatpush.bf16.msra.mxu0 %v2937
    %3018 = vmatpush.bf16.msra.mxu0 %v2933
    %3019 = vmatpush.bf16.msra.mxu0 %v2929
    %3020 = vmatpush.bf16.msra.mxu0 %v2925
    %3021 = vmatmul.bf16.gmra.mxu0 %v2794
    %v3022 = vpop.f32.mrf.mxu0
    %v3023 = vadd.f32 0.0, %v3022
    %v3024 = vpop.f32.mrf.mxu0
    %3025 = vdwg.mxu0
    %3026 = vmatpush.bf16.msra.mxu0 %v2954
    %3027 = vmatpush.bf16.msra.mxu0 %v2950
    %3028 = vmatpush.bf16.msra.mxu0 %v2946
    %3029 = vmatpush.bf16.msra.mxu0 %v2942
    %3030 = vmatpush.bf16.msra.mxu0 %v2938
    %3031 = vmatpush.bf16.msra.mxu0 %v2934
    %3032 = vmatpush.bf16.msra.mxu0 %v2930
    %3033 = vmatpush.bf16.msra.mxu0 %v2926
    %3034 = vmatmul.bf16.gmra.mxu0 %v2794
    %v3035 = vpop.f32.mrf.mxu0
    %v3036 = vadd.f32 0.0, %v3035
    %v3037 = vpop.f32.mrf.mxu0
    %3038 = vdwg.mxu0
    %v3041 = vunpack.c.l.b16 %v2791
    %v3042 = vunpack.c.h.b16 %v2791
    %v3043 = vunpack.c.l.b16 %v2792
    %v3044 = vunpack.c.h.b16 %v2792
    %v3045 = vpack.c.b16 %v3041, %v3041
    %v3046 = vpack.c.b16 %v3042, %v3042
    %v3047 = vpack.c.b16 %v3043, %v3043
    %v3048 = vpack.c.b16 %v3044, %v3044
    %v3050 = vsel %vm296, %v2790, 0
    %v3053 = vsel %vm300, %v3045, 0
    %v3056 = vsel %vm300, %v3046, 0
    %v3059 = vsel %vm300, %v3047, 0
    %v3062 = vsel %vm300, %v3048, 0
    %3064 = vmatpush.bf16.msra.mxu0 0
    %3065 = vmatpush.bf16.msra.mxu0 0
    %3066 = vmatpush.bf16.msra.mxu0 0
    %3067 = vmatpush.bf16.msra.mxu0 0
    %3068 = vmatpush.bf16.msra.mxu0 0
    %3069 = vmatpush.bf16.msra.mxu0 0
    %3070 = vmatpush.bf16.msra.mxu0 0
    %3071 = vmatpush.bf16.msra.mxu0 %v3053
    %3072 = vmatmul.bf16.gmra.mxu0 %v3050
    %v3073 = vpop.f32.mrf.mxu0
    %v3074 = vadd.f32 %v2997, %v3073
    %v3075 = vpop.f32.mrf.mxu0
    %3076 = vdwg.mxu0
    %3077 = vmatpush.bf16.msra.mxu0 0
    %3078 = vmatpush.bf16.msra.mxu0 0
    %3079 = vmatpush.bf16.msra.mxu0 0
    %3080 = vmatpush.bf16.msra.mxu0 0
    %3081 = vmatpush.bf16.msra.mxu0 0
    %3082 = vmatpush.bf16.msra.mxu0 0
    %3083 = vmatpush.bf16.msra.mxu0 0
    %3084 = vmatpush.bf16.msra.mxu0 %v3056
    %3085 = vmatmul.bf16.gmra.mxu0 %v3050
    %v3086 = vpop.f32.mrf.mxu0
    %v3087 = vadd.f32 %v3010, %v3086
    %v3088 = vpop.f32.mrf.mxu0
    %3089 = vdwg.mxu0
    %3090 = vmatpush.bf16.msra.mxu0 0
    %3091 = vmatpush.bf16.msra.mxu0 0
    %3092 = vmatpush.bf16.msra.mxu0 0
    %3093 = vmatpush.bf16.msra.mxu0 0
    %3094 = vmatpush.bf16.msra.mxu0 0
    %3095 = vmatpush.bf16.msra.mxu0 0
    %3096 = vmatpush.bf16.msra.mxu0 0
    %3097 = vmatpush.bf16.msra.mxu0 %v3059
    %3098 = vmatmul.bf16.gmra.mxu0 %v3050
    %v3099 = vpop.f32.mrf.mxu0
    %v3100 = vadd.f32 %v3023, %v3099
    %v3101 = vpop.f32.mrf.mxu0
    %3102 = vdwg.mxu0
    %3103 = vmatpush.bf16.msra.mxu0 0
    %3104 = vmatpush.bf16.msra.mxu0 0
    %3105 = vmatpush.bf16.msra.mxu0 0
    %3106 = vmatpush.bf16.msra.mxu0 0
    %3107 = vmatpush.bf16.msra.mxu0 0
    %3108 = vmatpush.bf16.msra.mxu0 0
    %3109 = vmatpush.bf16.msra.mxu0 0
    %3110 = vmatpush.bf16.msra.mxu0 %v3062
    %3111 = vmatmul.bf16.gmra.mxu0 %v3050
    %v3112 = vpop.f32.mrf.mxu0
    %v3113 = vadd.f32 %v3036, %v3112
    %v3114 = vpop.f32.mrf.mxu0
    %3115 = vdwg.mxu0
    %v3116 = vxor.u32 %v3074, 2147483648
    %v3117 = vmul.f32 %v3116, 1.442695
    %v3118 = vpow.pop %v3117
    %v3119 = vadd.f32 %v3118, 1.0
    %v3120 = vrcp.pop %v3119
    %v3121 = vmul.f32 %v3119, %v3120
    %v3122 = vsub.f32 1.0, %v3121
    %v3123 = vmul.f32 %v3120, %v3122
    %v3124 = vadd.f32 %v3120, %v3123
    %vm3125 = vweird.f32 %v3119
    %vm3126 = vweird.f32 %v3120
    %vm3127 = vmor %vm3125, %vm3126
    %v3128 = vsel %vm3127, %v3120, %v3124
    %v3129 = vand.u32 2147483647, %v3119
    %vm3130 = vcmp.eq.f32.partialorder %v3129, 8.507059e+37
    %v3131 = vand.u32 %v3119, 2147483648
    %v3132 = vor.u32 1.1754944e-38, %v3131
    %v3133 = vsel %vm3130, %v3132, %v3128
    %v3134 = vmul.f32 1.0, %v3133
    %v3135 = vxor.u32 %v3087, 2147483648
    %v3136 = vmul.f32 %v3135, 1.442695
    %v3137 = vpow.pop %v3136
    %v3138 = vadd.f32 %v3137, 1.0
    %v3139 = vrcp.pop %v3138
    %v3140 = vmul.f32 %v3138, %v3139
    %v3141 = vsub.f32 1.0, %v3140
    %v3142 = vmul.f32 %v3139, %v3141
    %v3143 = vadd.f32 %v3139, %v3142
    %vm3144 = vweird.f32 %v3138
    %vm3145 = vweird.f32 %v3139
    %vm3146 = vmor %vm3144, %vm3145
    %v3147 = vsel %vm3146, %v3139, %v3143
    %v3148 = vand.u32 2147483647, %v3138
    %vm3149 = vcmp.eq.f32.partialorder %v3148, 8.507059e+37
    %v3150 = vand.u32 %v3138, 2147483648
    %v3151 = vor.u32 1.1754944e-38, %v3150
    %v3152 = vsel %vm3149, %v3151, %v3147
    %v3153 = vmul.f32 1.0, %v3152
    %v3154 = vtanh.pop %v3100
    %v3155 = vxor.u32 %v3113, 2147483648
    %v3156 = vmul.f32 %v3155, 1.442695
    %v3157 = vpow.pop %v3156
    %v3158 = vadd.f32 %v3157, 1.0
    %v3159 = vrcp.pop %v3158
    %v3160 = vmul.f32 %v3158, %v3159
    %v3161 = vsub.f32 1.0, %v3160
    %v3162 = vmul.f32 %v3159, %v3161
    %v3163 = vadd.f32 %v3159, %v3162
    %vm3164 = vweird.f32 %v3158
    %vm3165 = vweird.f32 %v3159
    %vm3166 = vmor %vm3164, %vm3165
    %v3167 = vsel %vm3166, %v3159, %v3163
    %v3168 = vand.u32 2147483647, %v3158
    %vm3169 = vcmp.eq.f32.partialorder %v3168, 8.507059e+37
    %v3170 = vand.u32 %v3158, 2147483648
    %v3171 = vor.u32 1.1754944e-38, %v3170
    %v3172 = vsel %vm3169, %v3171, %v3167
    %v3173 = vmul.f32 1.0, %v3172
    %v3174 = vld [vmem:[#allocation3] sm:$0xff]
    %v3175 = vmul.f32 %v3153, %v3174
    %v3176 = vmul.f32 %v3134, %v3154
    %v3177 = vadd.f32 %v3175, %v3176
    %v3178 = vtanh.pop %v3177
    %v3179 = vmul.f32 %v3173, %v3178
    %3180 = vst [vmem:[#allocation2] sm:$0xff] %v3179
    %3181 = vst [vmem:[#allocation3] sm:$0xff] %v3177
    %v3182 = vld [vmem:[#allocation2] sm:$0xff]
    %v3183 = vld [vmem:[%s5] sm:$0x3]
    %v3185 = vsel %vm296, %v3183, 0
    %3187 = vmatpush.msra.mxu0 0.0
    %3188 = vmatpush.msra.mxu0 0.0
    %3189 = vmatpush.msra.mxu0 0.0
    %3190 = vmatpush.msra.mxu0 0.0
    %3191 = vmatpush.msra.mxu0 0.0
    %3192 = vmatpush.msra.mxu0 0.0
    %3193 = vmatpush.msra.mxu0 0.0
    %3194 = vmatpush.msra.mxu0 0.0
    %3195 = vmatpush.msra.mxu0 0.0
    %3196 = vmatpush.msra.mxu0 0.0
    %3197 = vmatpush.msra.mxu0 0.0
    %3198 = vmatpush.msra.mxu0 0.0
    %3199 = vmatpush.msra.mxu0 0.0
    %3200 = vmatpush.msra.mxu0 0.0
    %3201 = vmatpush.msra.mxu0 0.0
    %3202 = vmatpush.msra.mxu0 %v3182
    %3203 = vmatmul.f32.gmra.mxu0 %v3185
    %v3204 = vpop.f32.mrf.mxu0
    %v3205 = vadd.f32 0.0, %v3204
    %3206 = vdwg.mxu0
    %v3207 = vld [vmem:[%s7] sm:$0xff]
    %vm3208 = vcmask 15360
    %v3210 = vsel %vm3208, %v3207, 0
    %vm3212 = vcmask 1041408
    %v3214 = vsel %vm3212, %v3205, 0
    %3216 = vmatpush.msra.mxu0 0.0
    %3217 = vmatpush.msra.mxu0 0.0
    %3218 = vmatpush.msra.mxu0 0.0
    %3219 = vmatpush.msra.mxu0 0.0
    %3220 = vmatpush.msra.mxu0 0.0
    %3221 = vmatpush.msra.mxu0 0.0
    %3222 = vmatpush.msra.mxu0 0.0
    %3223 = vmatpush.msra.mxu0 0.0
    %3224 = vmatpush.msra.mxu0 0.0
    %3225 = vmatpush.msra.mxu0 0.0
    %3226 = vmatpush.msra.mxu0 0.0
    %3227 = vmatpush.msra.mxu0 0.0
    %3228 = vmatpush.msra.mxu0 0.0
    %3229 = vmatpush.msra.mxu0 0.0
    %3230 = vmatpush.msra.mxu0 0.0
    %3231 = vmatpush.msra.mxu0 %v3214
    %3232 = vmatmul.f32.gmra.mxu0 %v3210
    %v3233 = vpop.f32.mrf.mxu0
    %v3234 = vadd.f32 0.0, %v3233
    %3235 = vdwg.mxu0
    %v3236 = vmul.f32 %v3234, %v3182
    %3237 = vadd.xlane.f32.xlu0 %v3236
    %v3238 = vpop.xlane.xlu0 %3237
    %v3239 = vmul.f32 %v3238, 0.17677669
    %v3240 = vrot.slane %v3239, 4
    %v3241 = vmax.f32 %v3239, %v3240
    %v3242 = vrot.slane %v3241, 2
    %v3243 = vmax.f32 %v3241, %v3242
    %v3244 = vrot.slane %v3243, 1
    %v3245 = vmax.f32 %v3243, %v3244
    %v3246 = vsub.f32 %v3239, %v3245
    %v3247 = vmul.f32 %v3246, 1.442695
    %v3248 = vpow.pop %v3247
    %v3249 = vld [vmem:[%s6] sm:$0x3]
    %v3251 = vsel %vm296, %v3249, 0
    %3253 = vmatpush.msra.mxu0 0.0
    %3254 = vmatpush.msra.mxu0 0.0
    %3255 = vmatpush.msra.mxu0 0.0
    %3256 = vmatpush.msra.mxu0 0.0
    %3257 = vmatpush.msra.mxu0 0.0
    %3258 = vmatpush.msra.mxu0 0.0
    %3259 = vmatpush.msra.mxu0 0.0
    %3260 = vmatpush.msra.mxu0 0.0
    %3261 = vmatpush.msra.mxu0 0.0
    %3262 = vmatpush.msra.mxu0 0.0
    %3263 = vmatpush.msra.mxu0 0.0
    %3264 = vmatpush.msra.mxu0 0.0
    %3265 = vmatpush.msra.mxu0 0.0
    %3266 = vmatpush.msra.mxu0 0.0
    %3267 = vmatpush.msra.mxu0 0.0
    %3268 = vmatpush.msra.mxu0 %v3248
    %3269 = vmatmul.f32.gmra.mxu0 %v3251
    %v3270 = vpop.f32.mrf.mxu0
    %v3271 = vadd.f32 0.0, %v3270
    %3272 = vdwg.mxu0
    %v3274 = vsel %vm3212, %v3271, 0
    %3276 = vmatpush.msra.mxu0 0.0
    %3277 = vmatpush.msra.mxu0 0.0
    %3278 = vmatpush.msra.mxu0 0.0
    %3279 = vmatpush.msra.mxu0 0.0
    %3280 = vmatpush.msra.mxu0 0.0
    %3281 = vmatpush.msra.mxu0 0.0
    %3282 = vmatpush.msra.mxu0 0.0
    %3283 = vmatpush.msra.mxu0 0.0
    %3284 = vmatpush.msra.mxu0 0.0
    %3285 = vmatpush.msra.mxu0 0.0
    %3286 = vmatpush.msra.mxu0 0.0
    %3287 = vmatpush.msra.mxu0 0.0
    %3288 = vmatpush.msra.mxu0 0.0
    %3289 = vmatpush.msra.mxu0 0.0
    %3290 = vmatpush.msra.mxu0 0.0
    %3291 = vmatpush.msra.mxu0 %v3274
    %3292 = vmatmul.f32.gmra.mxu0 %v3210
    %v3293 = vpop.f32.mrf.mxu0
    %v3294 = vadd.f32 0.0, %v3293
    %3295 = vdwg.mxu0
    %v3296 = vrcp.pop %v3294
    %v3297 = vmul.f32 %v3248, %v3296
    %3299 = vset.pattern.permute.xlu0 0
    %3300 = vperm.xlu0 %3299, %v3297
    %v3301 = vpop.permute.xlu0 %3300
    %v3303 = vmul.f32 %v3301, %v3182
    %3304 = vmatpush.msra.mxu0 0.0
    %3305 = vmatpush.msra.mxu0 0.0
    %3306 = vmatpush.msra.mxu0 0.0
    %3307 = vmatpush.msra.mxu0 0.0
    %3308 = vmatpush.msra.mxu0 0.0
    %3309 = vmatpush.msra.mxu0 0.0
    %3310 = vmatpush.msra.mxu0 0.0
    %3311 = vmatpush.msra.mxu0 0.0
    %3312 = vmatpush.msra.mxu0 0.0
    %3313 = vmatpush.msra.mxu0 0.0
    %3314 = vmatpush.msra.mxu0 0.0
    %3315 = vmatpush.msra.mxu0 0.0
    %3316 = vmatpush.msra.mxu0 0.0
    %3317 = vmatpush.msra.mxu0 0.0
    %3318 = vmatpush.msra.mxu0 0.0
    %3319 = vmatpush.msra.mxu0 %v3303
    %3320 = vmatmul.f32.gmra.mxu0 %v3251
    %v3321 = vpop.f32.mrf.mxu0
    %v3322 = vadd.f32 0.0, %v3321
    %3323 = vdwg.mxu0
    %v3324 = vpack.c.bf16 %v3322, %v3322
    %v3325 = vld [vmem:[%s3] sm:$0xf]
    %v3326 = vld [vmem:[%s3 + $0x4] sm:$0xf]
    %v3327 = vld [vmem:[%s3 + $0x8] sm:$0xf]
    %v3328 = vld [vmem:[%s3 + $0xc] sm:$0xf]
    %v3329 = vld [vmem:[%s3 + $0x10] sm:$0xf]
    %v3330 = vld [vmem:[%s3 + $0x14] sm:$0xf]
    %v3331 = vld [vmem:[%s3 + $0x18] sm:$0xf]
    %v3332 = vld [vmem:[%s3 + $0x1c] sm:$0xf]
    %v3333 = vld [vmem:[%s3 + $0x20] sm:$0xf]
    %v3334 = vld [vmem:[%s3 + $0x24] sm:$0xf]
    %v3335 = vld [vmem:[%s3 + $0x28] sm:$0xf]
    %v3336 = vld [vmem:[%s3 + $0x2c] sm:$0xf]
    %v3337 = vld [vmem:[%s3 + $0x30] sm:$0xf]
    %v3338 = vld [vmem:[%s3 + $0x34] sm:$0xf]
    %v3339 = vld [vmem:[%s3 + $0x38] sm:$0xf]
    %v3340 = vld [vmem:[%s3 + $0x3c] sm:$0xf]
    %v3341 = vld [vmem:[%s4] sm:$0x1]
    %v3343 = vperm.slane %v3341, 0
    %v3361 = vunpack.c.l.b16 %v3325
    %v3362 = vunpack.c.l.b16 %v3326
    %v3363 = vunpack.c.l.b16 %v3327
    %v3364 = vunpack.c.l.b16 %v3328
    %v3365 = vunpack.c.l.b16 %v3329
    %v3366 = vunpack.c.l.b16 %v3330
    %v3367 = vunpack.c.l.b16 %v3331
    %v3368 = vunpack.c.l.b16 %v3332
    %v3369 = vunpack.c.l.b16 %v3333
    %v3370 = vunpack.c.l.b16 %v3334
    %v3371 = vunpack.c.l.b16 %v3335
    %v3372 = vunpack.c.l.b16 %v3336
    %v3373 = vunpack.c.l.b16 %v3337
    %v3374 = vunpack.c.l.b16 %v3338
    %v3375 = vunpack.c.l.b16 %v3339
    %v3376 = vunpack.c.l.b16 %v3340
    %v3377 = vpack.c.b16 %v3362, %v3361
    %v3378 = vpack.c.b16 %v3364, %v3363
    %v3379 = vpack.c.b16 %v3366, %v3365
    %v3380 = vpack.c.b16 %v3368, %v3367
    %v3381 = vpack.c.b16 %v3370, %v3369
    %v3382 = vpack.c.b16 %v3372, %v3371
    %v3383 = vpack.c.b16 %v3374, %v3373
    %v3384 = vpack.c.b16 %v3376, %v3375
    %3393 = vmatpush.bf16.msra.mxu0 %v3384
    %3394 = vmatpush.bf16.msra.mxu0 %v3383
    %3395 = vmatpush.bf16.msra.mxu0 %v3382
    %3396 = vmatpush.bf16.msra.mxu0 %v3381
    %3397 = vmatpush.bf16.msra.mxu0 %v3380
    %3398 = vmatpush.bf16.msra.mxu0 %v3379
    %3399 = vmatpush.bf16.msra.mxu0 %v3378
    %3400 = vmatpush.bf16.msra.mxu0 %v3377
    %3401 = vmatmul.bf16.gmra.mxu0 %v3324
    %v3402 = vpop.f32.mrf.mxu0
    %v3403 = vadd.f32 %v3343, %v3402
    %v3404 = vpop.f32.mrf.mxu0
    %3405 = vdwg.mxu0
    %3406 = vst [vmem:[#allocation4] sm:$0x3] %v3403
    %3407 = vst [vmem:[#allocation6] sm:$0x3] %v3205
    %v3408 = vld [vmem:[%s5] sm:$0x3]
    %v3409 = vld [vmem:[#allocation3] sm:$0xff]
    %v3411 = vsel %vm296, %v3408, 0
    %3413 = vmatpush.msra.mxu0 0.0
    %3414 = vmatpush.msra.mxu0 0.0
    %3415 = vmatpush.msra.mxu0 0.0
    %3416 = vmatpush.msra.mxu0 0.0
    %3417 = vmatpush.msra.mxu0 0.0
    %3418 = vmatpush.msra.mxu0 0.0
    %3419 = vmatpush.msra.mxu0 0.0
    %3420 = vmatpush.msra.mxu0 0.0
    %3421 = vmatpush.msra.mxu0 0.0
    %3422 = vmatpush.msra.mxu0 0.0
    %3423 = vmatpush.msra.mxu0 0.0
    %3424 = vmatpush.msra.mxu0 0.0
    %3425 = vmatpush.msra.mxu0 0.0
    %3426 = vmatpush.msra.mxu0 0.0
    %3427 = vmatpush.msra.mxu0 0.0
    %3428 = vmatpush.msra.mxu0 %v3409
    %3429 = vmatmul.f32.gmra.mxu0 %v3411
    %v3430 = vpop.f32.mrf.mxu0
    %v3431 = vadd.f32 0.0, %v3430
    %3432 = vdwg.mxu0
    %3433 = vst [vmem:[#allocation8] sm:$0x3] %v3431
    // Predicated region
    $region34: #{lstm_attention_forward.1} parent=1 // pred_check
      _
    $region35: #{lstm_attention_forward.1} parent=1 // pred_check_branch
      %3435 = sbr.rel (0) target = $region37
    $region36: #{lstm_attention_forward.1} parent=1 // pred_region
      %3437 = vsyncadd [#allocation5], 0
      %s3439 = sshll.u32 [#allocation4], 4
      %s3440 = int_to_ptr.vmem [resolvable:$true] %s3439
      %s3441 = sshll.u32 %s8, 4
      %s3442 = int_to_ptr.hbm [resolvable:$true] %s3441
      %3444 = dma.vmem_to_hbm [thread:$0]  %s3440, 32, %s3442, [#allocation5]
    $region37: #{lstm_attention_forward.1} parent=1 // pred_fallthru
      _
    // Predicated region
    $region38: #{lstm_attention_forward.1} parent=1 // pred_check
      _
    $region39: #{lstm_attention_forward.1} parent=1 // pred_check_branch
      %3446 = sbr.rel (0) target = $region41
    $region40: #{lstm_attention_forward.1} parent=1 // pred_region
      %3448 = vsyncadd [#allocation7], 0
      %s3450 = sshll.u32 [#allocation6], 4
      %s3451 = int_to_ptr.vmem [resolvable:$true] %s3450
      %s3452 = sshll.u32 %s9, 4
      %s3453 = int_to_ptr.hbm [resolvable:$true] %s3452
      %3455 = dma.vmem_to_hbm [thread:$0]  %s3451, 32, %s3453, [#allocation7]
    $region41: #{lstm_attention_forward.1} parent=1 // pred_fallthru
      _
    // Predicated region
    $region42: #{lstm_attention_forward.1} parent=1 // pred_check
      _
    $region43: #{lstm_attention_forward.1} parent=1 // pred_check_branch
      %3457 = sbr.rel (0) target = $region45
    $region44: #{lstm_attention_forward.1} parent=1 // pred_region
      %3459 = vsyncadd [#allocation7], 0
      %s3461 = sshll.u32 [#allocation8], 4
      %s3462 = int_to_ptr.vmem [resolvable:$true] %s3461
      %s3463 = sshll.u32 %s10, 4
      %s3464 = int_to_ptr.hbm [resolvable:$true] %s3463
      %3466 = dma.vmem_to_hbm [thread:$0]  %s3462, 32, %s3464, [#allocation7]
    $region45: #{lstm_attention_forward.1} parent=1 // pred_fallthru
      _
    // Predicated region
    $region46: #{lstm_attention_forward.1} parent=1 // pred_check
      _
    $region47: #{lstm_attention_forward.1} parent=1 // pred_check_branch
      %3468 = sbr.rel (0) target = $region49
    $region48: #{lstm_attention_forward.1} parent=1 // pred_region
      %3470 = dma.done [#allocation5], 32
    $region49: #{lstm_attention_forward.1} parent=1 // pred_fallthru
      _
    // Predicated region
    $region50: #{lstm_attention_forward.1} parent=1 // pred_check
      _
    $region51: #{lstm_attention_forward.1} parent=1 // pred_check_branch
      %3472 = sbr.rel (0) target = $region53
    $region52: #{lstm_attention_forward.1} parent=1 // pred_region
      %3474 = dma.done [#allocation7], 32
    $region53: #{lstm_attention_forward.1} parent=1 // pred_fallthru
      _
    // Predicated region
    $region54: #{lstm_attention_forward.1} parent=1 // pred_check
      _
    $region55: #{lstm_attention_forward.1} parent=1 // pred_check_branch
      %3476 = sbr.rel (0) target = $region57
    $region56: #{lstm_attention_forward.1} parent=1 // pred_region
      %3478 = dma.done [#allocation7], 32
    $region57: #{lstm_attention_forward.1} parent=1 // pred_fallthru
      _
    %3479 = vsyncpa [#allocation5], 1
    %3480 = vsyncpa [#allocation7], 1

</llo_original>
